<compile_context>
chip_gen: v7x
topology: tpu7x:2x2x1
jax: 0.10.0
libtpu: 0.0.40
codegen_flags: <defaults>
</compile_context>

<pallas_src>
import jax
import jax.numpy as jnp
from jax.experimental import pallas as pl
from jax.experimental.pallas import tpu as pltpu


def _round_up(x, m):
    return (x + m - 1) // m * m


# ---------------- Pallas kernels ----------------

def conv_relu_pool_kernel(p_ref, w_ref, b_ref, o_ref):
    # p_ref: (13, 16, TB)  patches: [pooled pos within block, 4x4 pixel, sample]
    # w_ref: (64, 16)      footprint weight: rows = pool-branch*16 + out-channel
    # b_ref: (16, 1)       conv bias (per out-channel)
    # o_ref: (208, TB)     featsT slab: rows = local pooled pos * 16 + out-channel
    w = w_ref[...]                                    # (64, 16)
    b = b_ref[...]                                    # (16, 1)
    for i in range(13):                               # static unroll over pooled positions
        y = jnp.dot(w, p_ref[i], preferred_element_type=jnp.float32)      # (64, TB)
        # 2x2 max-pool == max over the 4 row groups; bias/ReLU hoisted after the max.
        m = jnp.maximum(jnp.maximum(y[0:16], y[16:32]),
                        jnp.maximum(y[32:48], y[48:64]))                   # (16, TB)
        o_ref[i * 16:(i + 1) * 16, :] = jnp.maximum(m + b, 0.0)


def fc_kernel(f_ref, w1_ref, b1_ref, w2_ref, b2_ref, o_ref):
    # f_ref: (2704, TB) transposed pooled features, w1_ref: (64, 2704), b1_ref: (64, 1)
    # w2_ref: (16, 64) fc2 weight row-padded to 16, b2_ref: (16, 1)
    # o_ref: (16, TB)  transposed logits (rows 10..15 are zero padding)
    h = jnp.dot(w1_ref[...], f_ref[...], preferred_element_type=jnp.float32) + b1_ref[...]
    h = jnp.maximum(h, 0.0)                                                # (64, TB)
    o_ref[...] = jnp.dot(w2_ref[...], h, preferred_element_type=jnp.float32) + b2_ref[...]


# ---------------- glue (gather / transpose only, fused by XLA) ----------------

def build_patches(xs):
    """xs: (n_pad, 28, 28) -> (169, 16, n_pad) patch tensor.

    patches[p, s, n] = xs[n, 2i + s//4, 2j + s%4]  with p = i*13 + j  (pooled position),
    i.e. the 4x4 input footprint of each pooled output position.
    """
    n_pad = xs.shape[0]
    cols = []
    for a in range(4):
        for b in range(4):
            sub = xs[:, a:a + 25:2, b:b + 25:2]          # (n_pad, 13, 13)
            cols.append(sub.reshape(n_pad, 169))
    pat = jnp.stack(cols, axis=0)                        # (16, n_pad, 169)
    return pat.transpose(2, 0, 1)                        # (169, 16, n_pad)


def prepare_params(conv_w, conv_b, fc1_w, fc1_b, fc2_w, fc2_b):
    """One-time weight massaging, done OUTSIDE the jitted forward."""
    # 4x4-footprint conv weight: row (q*16 + c) holds the 3x3 weights of out-channel c
    # scattered at the pixel offsets of pool branch q = (u, v); other entries are exactly 0.
    w_comb = jnp.zeros((64, 16), jnp.float32)
    for q, (u, v) in enumerate(((0, 0), (0, 1), (1, 0), (1, 1))):
        for di in range(3):
            for dj in range(3):
                s = (u + di) * 4 + (v + dj)
                w_comb = w_comb.at[q * 16:(q + 1) * 16, s].set(
                    conv_w[:, 0, di, dj].astype(jnp.float32))
    b_conv = conv_b.reshape(16, 1).astype(jnp.float32)

    # featsT rows are ordered p*16 + c; PyTorch flatten order is c*169 + p. Permute fc1_w's
    # input columns once here so the kernel needs no activation relayout at forward time.
    w1T = fc1_w.reshape(64, 16, 169).transpose(0, 2, 1).reshape(64, 2704).astype(jnp.float32)
    b1 = fc1_b.reshape(64, 1).astype(jnp.float32)

    w2p = jnp.zeros((16, 64), jnp.float32).at[:10].set(fc2_w.astype(jnp.float32))
    b2p = jnp.zeros((16, 1), jnp.float32).at[:10, 0].set(fc2_b.astype(jnp.float32))
    return w_comb, b_conv, w1T, b1, w2p, b2p


@jax.jit
def cnn_forward(x, w_comb, b_conv, w1T, b1, w2p, b2p):
    N = x.shape[0]
    if N >= 128:
        n_pad = _round_up(N, 128)
        tb = 256 if (n_pad % 256 == 0 and n_pad >= 512) else 128
    else:
        n_pad = _round_up(N, 8)
        tb = n_pad

    xs = x[:, 0].astype(jnp.float32)                     # (N, 28, 28)
    if n_pad != N:                                        # pad ONCE, at the raw input
        xs = jnp.pad(xs, ((0, n_pad - N), (0, 0), (0, 0)))
    patches = build_patches(xs)                           # (169, 16, n_pad)

    # ---- conv + ReLU + 2x2 max-pool -> featsT (2704, n_pad), lane-dense ----
    conv_flops = 2 * 64 * 16 * 169 * n_pad
    conv_bytes = 4 * (169 * 16 * n_pad + 2704 * n_pad + 64 * 16 + 16)
    featsT = pl.pallas_call(
        conv_relu_pool_kernel,
        out_shape=jax.ShapeDtypeStruct((2704, n_pad), jnp.float32),
        grid=(13, n_pad // tb),
        in_specs=[pl.BlockSpec((13, 16, tb), lambda pb, nb: (pb, 0, nb)),
                  pl.BlockSpec((64, 16), lambda pb, nb: (0, 0)),
                  pl.BlockSpec((16, 1), lambda pb, nb: (0, 0))],
        out_specs=pl.BlockSpec((208, tb), lambda pb, nb: (pb, nb)),
        compiler_params=pltpu.CompilerParams(
            dimension_semantics=("parallel", "parallel"),
            vmem_limit_bytes=32 * 1024 * 1024),
        cost_estimate=pl.CostEstimate(flops=conv_flops, transcendentals=0,
                                      bytes_accessed=conv_bytes),
    )(patches, w_comb, b_conv)

    # ---- Linear(2704,64) -> ReLU -> Linear(64,10), transposed; consumes featsT directly ----
    fc_flops = 2 * (2704 * 64 + 64 * 16) * n_pad
    fc_bytes = 4 * (2704 * n_pad + 64 * 2704 + 64 + 16 * 64 + 16 + 16 * n_pad)
    logitsT = pl.pallas_call(
        fc_kernel,
        out_shape=jax.ShapeDtypeStruct((16, n_pad), jnp.float32),
        grid=(n_pad // tb,),
        in_specs=[pl.BlockSpec((2704, tb), lambda nb: (0, nb)),
                  pl.BlockSpec((64, 2704), lambda nb: (0, 0)),
                  pl.BlockSpec((64, 1), lambda nb: (0, 0)),
                  pl.BlockSpec((16, 64), lambda nb: (0, 0)),
                  pl.BlockSpec((16, 1), lambda nb: (0, 0))],
        out_specs=pl.BlockSpec((16, tb), lambda nb: (0, nb)),
        compiler_params=pltpu.CompilerParams(
            dimension_semantics=("parallel",),
            vmem_limit_bytes=32 * 1024 * 1024),
        cost_estimate=pl.CostEstimate(flops=fc_flops, transcendentals=0,
                                      bytes_accessed=fc_bytes),
    )(featsT, w1T, b1, w2p, b2p)

    # Padded samples / padded logit rows are sliced off here (they hold relu(bias) garbage).
    return logitsT[:10, :N].T                              # (N, 10)


# ---------------- pure-JAX reference for verification ----------------

def reference_forward(x, conv_w, conv_b, fc1_w, fc1_b, fc2_w, fc2_b):
    y = jax.lax.conv_general_dilated(
        x, conv_w, window_strides=(1, 1), padding="VALID",
        dimension_numbers=("NCHW", "OIHW", "NCHW"))
    y = jnp.maximum(y + conv_b.reshape(1, 16, 1, 1), 0.0)
    y = jax.lax.reduce_window(y, -jnp.inf, jax.lax.max,
                              window_dimensions=(1, 1, 2, 2),
                              window_strides=(1, 1, 2, 2), padding="VALID")
    f = y.reshape(x.shape[0], -1)
    h = jnp.maximum(f @ fc1_w.T + fc1_b, 0.0)
    return h @ fc2_w.T + fc2_b


if __name__ == "__main__":
    key = jax.random.PRNGKey(0)
    k_x, k_cw, k_cb, k_w1, k_b1, k_w2, k_b2 = jax.random.split(key, 7)

    N = 2  # batch; spatial size is fixed to 28x28 by the Linear(16*13*13, 64) layer
    x = jax.random.normal(k_x, (N, 1, 28, 28), jnp.float32)

    # Deterministic parameter init (PyTorch shapes)
    conv_w = jax.random.uniform(k_cw, (16, 1, 3, 3), jnp.float32, -0.3, 0.3)
    conv_b = jax.random.uniform(k_cb, (16,), jnp.float32, -0.3, 0.3)
    fc1_w = jax.random.uniform(k_w1, (64, 16 * 13 * 13), jnp.float32, -0.02, 0.02)
    fc1_b = jax.random.uniform(k_b1, (64,), jnp.float32, -0.02, 0.02)
    fc2_w = jax.random.uniform(k_w2, (10, 64), jnp.float32, -0.1, 0.1)
    fc2_b = jax.random.uniform(k_b2, (10,), jnp.float32, -0.1, 0.1)

    # One-time weight prep outside the jitted forward.
    params = prepare_params(conv_w, conv_b, fc1_w, fc1_b, fc2_w, fc2_b)

    out = cnn_forward(x, *params)
    out = jax.block_until_ready(out)

    ref = reference_forward(x, conv_w, conv_b, fc1_w, fc1_b, fc2_w, fc2_b)
    assert out.shape == (N, 10)
    assert jnp.allclose(out, ref, rtol=1e-3, atol=1e-3), (out, ref)

    print("KERNEL_OK")
</pallas_src>

<mosaic_0001>
module attributes {stable_mosaic.version = 11 : i64} {
  func.func @fc_kernel(%arg0: i32, %arg1: memref<2704x8xf32, #tpu.memory_space<vmem>>, %arg2: memref<64x2704xf32, #tpu.memory_space<vmem>>, %arg3: memref<64x1xf32, #tpu.memory_space<vmem>>, %arg4: memref<16x64xf32, #tpu.memory_space<vmem>>, %arg5: memref<16x1xf32, #tpu.memory_space<vmem>>, %arg6: memref<16x8xf32, #tpu.memory_space<vmem>>) attributes {dimension_semantics = [#tpu.dimension_semantics<parallel>], iteration_bounds = array<i64: 1>, scalar_prefetch = 0 : i64, scratch_operands = 0 : i64, tpu.core_type = #tpu.core_type<tc>, window_params = [{transform_indices = @transform_0, window_bounds = array<i64: 2704, 8>}, {pipeline_mode = #tpu.pipeline_mode<synchronous>, transform_indices = @transform_1, window_bounds = array<i64: 64, 2704>}, {pipeline_mode = #tpu.pipeline_mode<synchronous>, transform_indices = @transform_2, window_bounds = array<i64: 64, 1>}, {pipeline_mode = #tpu.pipeline_mode<synchronous>, transform_indices = @transform_3, window_bounds = array<i64: 16, 64>}, {pipeline_mode = #tpu.pipeline_mode<synchronous>, transform_indices = @transform_4, window_bounds = array<i64: 16, 1>}, {transform_indices = @transform_5, window_bounds = array<i64: 16, 8>}]} {
    %c0 = arith.constant 0 : index
    %c0_0 = arith.constant 0 : index
    %0 = vector.load %arg2[%c0, %c0_0] : memref<64x2704xf32, #tpu.memory_space<vmem>>, vector<64x2704xf32>
    %c0_1 = arith.constant 0 : index
    %c0_2 = arith.constant 0 : index
    %1 = vector.load %arg1[%c0_1, %c0_2] : memref<2704x8xf32, #tpu.memory_space<vmem>>, vector<2704x8xf32>
    %cst = arith.constant dense<0.000000e+00> : vector<64x8xf32>
    %2 = tpu.matmul %0, %1, %cst {dimension_numbers = #tpu.dot_dimension_numbers<[1], [0], [0], [1], [0, 0, 1, 1], [], []>} : vector<64x2704xf32>, vector<2704x8xf32>, vector<64x8xf32> -> vector<64x8xf32>
    %c0_3 = arith.constant 0 : index
    %c0_4 = arith.constant 0 : index
    %3 = vector.load %arg3[%c0_3, %c0_4] : memref<64x1xf32, #tpu.memory_space<vmem>>, vector<64x1xf32>
    %4 = vector.broadcast %3 : vector<64x1xf32> to vector<64x8xf32>
    %5 = arith.addf %2, %4 : vector<64x8xf32>
    %cst_5 = arith.constant 0.000000e+00 : f32
    %6 = vector.broadcast %cst_5 : f32 to vector<64x8xf32>
    %7 = arith.maximumf %5, %6 : vector<64x8xf32>
    %c0_6 = arith.constant 0 : index
    %c0_7 = arith.constant 0 : index
    %8 = vector.load %arg4[%c0_6, %c0_7] : memref<16x64xf32, #tpu.memory_space<vmem>>, vector<16x64xf32>
    %cst_8 = arith.constant dense<0.000000e+00> : vector<16x8xf32>
    %9 = tpu.matmul %8, %7, %cst_8 {dimension_numbers = #tpu.dot_dimension_numbers<[1], [0], [0], [1], [0, 0, 1, 1], [], []>} : vector<16x64xf32>, vector<64x8xf32>, vector<16x8xf32> -> vector<16x8xf32>
    %c0_9 = arith.constant 0 : index
    %c0_10 = arith.constant 0 : index
    %10 = vector.load %arg5[%c0_9, %c0_10] : memref<16x1xf32, #tpu.memory_space<vmem>>, vector<16x1xf32>
    %11 = vector.broadcast %10 : vector<16x1xf32> to vector<16x8xf32>
    %12 = arith.addf %9, %11 : vector<16x8xf32>
    %c0_11 = arith.constant 0 : index
    %c0_12 = arith.constant 0 : index
    %13 = vector.load %arg6[%c0_11, %c0_12] : memref<16x8xf32, #tpu.memory_space<vmem>>, vector<16x8xf32>
    tpu.vector_store %arg6[%c0_11, %c0_12], %12 {strides = array<i32>} : memref<16x8xf32, #tpu.memory_space<vmem>>, vector<16x8xf32>,
    return
  }
  func.func @transform_0(%arg0: i32) -> (i32, i32) {
    %c0_i32 = arith.constant 0 : i32
    %c0_i32_0 = arith.constant 0 : i32
    return %c0_i32, %arg0 : i32, i32
  }
  func.func @transform_1(%arg0: i32) -> (i32, i32) {
    %c0_i32 = arith.constant 0 : i32
    %c0_i32_0 = arith.constant 0 : i32
    %c0_i32_1 = arith.constant 0 : i32
    return %c0_i32, %c0_i32_0 : i32, i32
  }
  func.func @transform_2(%arg0: i32) -> (i32, i32) {
    %c0_i32 = arith.constant 0 : i32
    %c0_i32_0 = arith.constant 0 : i32
    %c0_i32_1 = arith.constant 0 : i32
    return %c0_i32, %c0_i32_0 : i32, i32
  }
  func.func @transform_3(%arg0: i32) -> (i32, i32) {
    %c0_i32 = arith.constant 0 : i32
    %c0_i32_0 = arith.constant 0 : i32
    %c0_i32_1 = arith.constant 0 : i32
    return %c0_i32, %c0_i32_0 : i32, i32
  }
  func.func @transform_4(%arg0: i32) -> (i32, i32) {
    %c0_i32 = arith.constant 0 : i32
    %c0_i32_0 = arith.constant 0 : i32
    %c0_i32_1 = arith.constant 0 : i32
    return %c0_i32, %c0_i32_0 : i32, i32
  }
  func.func @transform_5(%arg0: i32) -> (i32, i32) {
    %c0_i32 = arith.constant 0 : i32
    %c0_i32_0 = arith.constant 0 : i32
    return %c0_i32, %arg0 : i32, i32
  }
}

module attributes {stable_mosaic.version = 11 : i64} {
  func.func @conv_relu_pool_kernel(%arg0: i32, %arg1: i32, %arg2: memref<13x16x8xf32, #tpu.memory_space<vmem>>, %arg3: memref<64x16xf32, #tpu.memory_space<vmem>>, %arg4: memref<16x1xf32, #tpu.memory_space<vmem>>, %arg5: memref<208x8xf32, #tpu.memory_space<vmem>>) attributes {dimension_semantics = [#tpu.dimension_semantics<parallel>, #tpu.dimension_semantics<parallel>], iteration_bounds = array<i64: 13, 1>, scalar_prefetch = 0 : i64, scratch_operands = 0 : i64, tpu.core_type = #tpu.core_type<tc>, window_params = [{transform_indices = @transform_0, window_bounds = array<i64: 13, 16, 8>}, {pipeline_mode = #tpu.pipeline_mode<synchronous>, transform_indices = @transform_1, window_bounds = array<i64: 64, 16>}, {pipeline_mode = #tpu.pipeline_mode<synchronous>, transform_indices = @transform_2, window_bounds = array<i64: 16, 1>}, {transform_indices = @transform_3, window_bounds = array<i64: 208, 8>}]} {
    %c0 = arith.constant 0 : index
    %c0_0 = arith.constant 0 : index
    %0 = vector.load %arg3[%c0, %c0_0] : memref<64x16xf32, #tpu.memory_space<vmem>>, vector<64x16xf32>
    %c0_1 = arith.constant 0 : index
    %c0_2 = arith.constant 0 : index
    %1 = vector.load %arg4[%c0_1, %c0_2] : memref<16x1xf32, #tpu.memory_space<vmem>>, vector<16x1xf32>
    %c0_3 = arith.constant 0 : index
    %c0_4 = arith.constant 0 : index
    %c0_5 = arith.constant 0 : index
    %2 = vector.load %arg2[%c0_3, %c0_4, %c0_5] : memref<13x16x8xf32, #tpu.memory_space<vmem>>, vector<1x16x8xf32>
    %3 = vector.shape_cast %2 : vector<1x16x8xf32> to vector<16x8xf32>
    %cst = arith.constant dense<0.000000e+00> : vector<64x8xf32>
    %4 = tpu.matmul %0, %3, %cst {dimension_numbers = #tpu.dot_dimension_numbers<[1], [0], [0], [1], [0, 0, 1, 1], [], []>} : vector<64x16xf32>, vector<16x8xf32>, vector<64x8xf32> -> vector<64x8xf32>
    %5 = vector.extract_strided_slice %4 {offsets = [0, 0], sizes = [16, 8], strides = [1, 1]} : vector<64x8xf32> to vector<16x8xf32>
    %6 = vector.extract_strided_slice %4 {offsets = [16, 0], sizes = [16, 8], strides = [1, 1]} : vector<64x8xf32> to vector<16x8xf32>
    %7 = arith.maximumf %5, %6 : vector<16x8xf32>
    %8 = vector.extract_strided_slice %4 {offsets = [32, 0], sizes = [16, 8], strides = [1, 1]} : vector<64x8xf32> to vector<16x8xf32>
    %9 = vector.extract_strided_slice %4 {offsets = [48, 0], sizes = [16, 8], strides = [1, 1]} : vector<64x8xf32> to vector<16x8xf32>
    %10 = arith.maximumf %8, %9 : vector<16x8xf32>
    %11 = arith.maximumf %7, %10 : vector<16x8xf32>
    %12 = vector.broadcast %1 : vector<16x1xf32> to vector<16x8xf32>
    %13 = arith.addf %11, %12 : vector<16x8xf32>
    %cst_6 = arith.constant 0.000000e+00 : f32
    %14 = vector.broadcast %cst_6 : f32 to vector<16x8xf32>
    %15 = arith.maximumf %13, %14 : vector<16x8xf32>
    %c0_7 = arith.constant 0 : index
    %c0_8 = arith.constant 0 : index
    %16 = vector.load %arg5[%c0_7, %c0_8] : memref<208x8xf32, #tpu.memory_space<vmem>>, vector<16x8xf32>
    tpu.vector_store %arg5[%c0_7, %c0_8], %15 {strides = array<i32>} : memref<208x8xf32, #tpu.memory_space<vmem>>, vector<16x8xf32>,
    %c1 = arith.constant 1 : index
    %c0_9 = arith.constant 0 : index
    %c0_10 = arith.constant 0 : index
    %17 = vector.load %arg2[%c1, %c0_9, %c0_10] : memref<13x16x8xf32, #tpu.memory_space<vmem>>, vector<1x16x8xf32>
    %18 = vector.shape_cast %17 : vector<1x16x8xf32> to vector<16x8xf32>
    %cst_11 = arith.constant dense<0.000000e+00> : vector<64x8xf32>
    %19 = tpu.matmul %0, %18, %cst_11 {dimension_numbers = #tpu.dot_dimension_numbers<[1], [0], [0], [1], [0, 0, 1, 1], [], []>} : vector<64x16xf32>, vector<16x8xf32>, vector<64x8xf32> -> vector<64x8xf32>
    %20 = vector.extract_strided_slice %19 {offsets = [0, 0], sizes = [16, 8], strides = [1, 1]} : vector<64x8xf32> to vector<16x8xf32>
    %21 = vector.extract_strided_slice %19 {offsets = [16, 0], sizes = [16, 8], strides = [1, 1]} : vector<64x8xf32> to vector<16x8xf32>
    %22 = arith.maximumf %20, %21 : vector<16x8xf32>
    %23 = vector.extract_strided_slice %19 {offsets = [32, 0], sizes = [16, 8], strides = [1, 1]} : vector<64x8xf32> to vector<16x8xf32>
    %24 = vector.extract_strided_slice %19 {offsets = [48, 0], sizes = [16, 8], strides = [1, 1]} : vector<64x8xf32> to vector<16x8xf32>
    %25 = arith.maximumf %23, %24 : vector<16x8xf32>
    %26 = arith.maximumf %22, %25 : vector<16x8xf32>
    %27 = vector.broadcast %1 : vector<16x1xf32> to vector<16x8xf32>
    %28 = arith.addf %26, %27 : vector<16x8xf32>
    %cst_12 = arith.constant 0.000000e+00 : f32
    %29 = vector.broadcast %cst_12 : f32 to vector<16x8xf32>
    %30 = arith.maximumf %28, %29 : vector<16x8xf32>
    %c16 = arith.constant 16 : index
    %c0_13 = arith.constant 0 : index
    %31 = vector.load %arg5[%c16, %c0_13] : memref<208x8xf32, #tpu.memory_space<vmem>>, vector<16x8xf32>
    tpu.vector_store %arg5[%c16, %c0_13], %30 {strides = array<i32>} : memref<208x8xf32, #tpu.memory_space<vmem>>, vector<16x8xf32>,
    %c2 = arith.constant 2 : index
    %c0_14 = arith.constant 0 : index
    %c0_15 = arith.constant 0 : index
    %32 = vector.load %arg2[%c2, %c0_14, %c0_15] : memref<13x16x8xf32, #tpu.memory_space<vmem>>, vector<1x16x8xf32>
    %33 = vector.shape_cast %32 : vector<1x16x8xf32> to vector<16x8xf32>
    %cst_16 = arith.constant dense<0.000000e+00> : vector<64x8xf32>
    %34 = tpu.matmul %0, %33, %cst_16 {dimension_numbers = #tpu.dot_dimension_numbers<[1], [0], [0], [1], [0, 0, 1, 1], [], []>} : vector<64x16xf32>, vector<16x8xf32>, vector<64x8xf32> -> vector<64x8xf32>
    %35 = vector.extract_strided_slice %34 {offsets = [0, 0], sizes = [16, 8], strides = [1, 1]} : vector<64x8xf32> to vector<16x8xf32>
    %36 = vector.extract_strided_slice %34 {offsets = [16, 0], sizes = [16, 8], strides = [1, 1]} : vector<64x8xf32> to vector<16x8xf32>
    %37 = arith.maximumf %35, %36 : vector<16x8xf32>
    %38 = vector.extract_strided_slice %34 {offsets = [32, 0], sizes = [16, 8], strides = [1, 1]} : vector<64x8xf32> to vector<16x8xf32>
    %39 = vector.extract_strided_slice %34 {offsets = [48, 0], sizes = [16, 8], strides = [1, 1]} : vector<64x8xf32> to vector<16x8xf32>
    %40 = arith.maximumf %38, %39 : vector<16x8xf32>
    %41 = arith.maximumf %37, %40 : vector<16x8xf32>
    %42 = vector.broadcast %1 : vector<16x1xf32> to vector<16x8xf32>
    %43 = arith.addf %41, %42 : vector<16x8xf32>
    %cst_17 = arith.constant 0.000000e+00 : f32
    %44 = vector.broadcast %cst_17 : f32 to vector<16x8xf32>
    %45 = arith.maximumf %43, %44 : vector<16x8xf32>
    %c32 = arith.constant 32 : index
    %c0_18 = arith.constant 0 : index
    %46 = vector.load %arg5[%c32, %c0_18] : memref<208x8xf32, #tpu.memory_space<vmem>>, vector<16x8xf32>
    tpu.vector_store %arg5[%c32, %c0_18], %45 {strides = array<i32>} : memref<208x8xf32, #tpu.memory_space<vmem>>, vector<16x8xf32>,
    %c3 = arith.constant 3 : index
    %c0_19 = arith.constant 0 : index
    %c0_20 = arith.constant 0 : index
    %47 = vector.load %arg2[%c3, %c0_19, %c0_20] : memref<13x16x8xf32, #tpu.memory_space<vmem>>, vector<1x16x8xf32>
    %48 = vector.shape_cast %47 : vector<1x16x8xf32> to vector<16x8xf32>
    %cst_21 = arith.constant dense<0.000000e+00> : vector<64x8xf32>
    %49 = tpu.matmul %0, %48, %cst_21 {dimension_numbers = #tpu.dot_dimension_numbers<[1], [0], [0], [1], [0, 0, 1, 1], [], []>} : vector<64x16xf32>, vector<16x8xf32>, vector<64x8xf32> -> vector<64x8xf32>
    %50 = vector.extract_strided_slice %49 {offsets = [0, 0], sizes = [16, 8], strides = [1, 1]} : vector<64x8xf32> to vector<16x8xf32>
    %51 = vector.extract_strided_slice %49 {offsets = [16, 0], sizes = [16, 8], strides = [1, 1]} : vector<64x8xf32> to vector<16x8xf32>
    %52 = arith.maximumf %50, %51 : vector<16x8xf32>
    %53 = vector.extract_strided_slice %49 {offsets = [32, 0], sizes = [16, 8], strides = [1, 1]} : vector<64x8xf32> to vector<16x8xf32>
    %54 = vector.extract_strided_slice %49 {offsets = [48, 0], sizes = [16, 8], strides = [1, 1]} : vector<64x8xf32> to vector<16x8xf32>
    %55 = arith.maximumf %53, %54 : vector<16x8xf32>
    %56 = arith.maximumf %52, %55 : vector<16x8xf32>
    %57 = vector.broadcast %1 : vector<16x1xf32> to vector<16x8xf32>
    %58 = arith.addf %56, %57 : vector<16x8xf32>
    %cst_22 = arith.constant 0.000000e+00 : f32
    %59 = vector.broadcast %cst_22 : f32 to vector<16x8xf32>
    %60 = arith.maximumf %58, %59 : vector<16x8xf32>
    %c48 = arith.constant 48 : index
    %c0_23 = arith.constant 0 : index
    %61 = vector.load %arg5[%c48, %c0_23] : memref<208x8xf32, #tpu.memory_space<vmem>>, vector<16x8xf32>
    tpu.vector_store %arg5[%c48, %c0_23], %60 {strides = array<i32>} : memref<208x8xf32, #tpu.memory_space<vmem>>, vector<16x8xf32>,
    %c4 = arith.constant 4 : index
    %c0_24 = arith.constant 0 : index
    %c0_25 = arith.constant 0 : index
    %62 = vector.load %arg2[%c4, %c0_24, %c0_25] : memref<13x16x8xf32, #tpu.memory_space<vmem>>, vector<1x16x8xf32>
    %63 = vector.shape_cast %62 : vector<1x16x8xf32> to vector<16x8xf32>
    %cst_26 = arith.constant dense<0.000000e+00> : vector<64x8xf32>
    %64 = tpu.matmul %0, %63, %cst_26 {dimension_numbers = #tpu.dot_dimension_numbers<[1], [0], [0], [1], [0, 0, 1, 1], [], []>} : vector<64x16xf32>, vector<16x8xf32>, vector<64x8xf32> -> vector<64x8xf32>
    %65 = vector.extract_strided_slice %64 {offsets = [0, 0], sizes = [16, 8], strides = [1, 1]} : vector<64x8xf32> to vector<16x8xf32>
    %66 = vector.extract_strided_slice %64 {offsets = [16, 0], sizes = [16, 8], strides = [1, 1]} : vector<64x8xf32> to vector<16x8xf32>
    %67 = arith.maximumf %65, %66 : vector<16x8xf32>
    %68 = vector.extract_strided_slice %64 {offsets = [32, 0], sizes = [16, 8], strides = [1, 1]} : vector<64x8xf32> to vector<16x8xf32>
    %69 = vector.extract_strided_slice %64 {offsets = [48, 0], sizes = [16, 8], strides = [1, 1]} : vector<64x8xf32> to vector<16x8xf32>
    %70 = arith.maximumf %68, %69 : vector<16x8xf32>
    %71 = arith.maximumf %67, %70 : vector<16x8xf32>
    %72 = vector.broadcast %1 : vector<16x1xf32> to vector<16x8xf32>
    %73 = arith.addf %71, %72 : vector<16x8xf32>
    %cst_27 = arith.constant 0.000000e+00 : f32
    %74 = vector.broadcast %cst_27 : f32 to vector<16x8xf32>
    %75 = arith.maximumf %73, %74 : vector<16x8xf32>
    %c64 = arith.constant 64 : index
    %c0_28 = arith.constant 0 : index
    %76 = vector.load %arg5[%c64, %c0_28] : memref<208x8xf32, #tpu.memory_space<vmem>>, vector<16x8xf32>
    tpu.vector_store %arg5[%c64, %c0_28], %75 {strides = array<i32>} : memref<208x8xf32, #tpu.memory_space<vmem>>, vector<16x8xf32>,
    %c5 = arith.constant 5 : index
    %c0_29 = arith.constant 0 : index
    %c0_30 = arith.constant 0 : index
    %77 = vector.load %arg2[%c5, %c0_29, %c0_30] : memref<13x16x8xf32, #tpu.memory_space<vmem>>, vector<1x16x8xf32>
    %78 = vector.shape_cast %77 : vector<1x16x8xf32> to vector<16x8xf32>
    %cst_31 = arith.constant dense<0.000000e+00> : vector<64x8xf32>
    %79 = tpu.matmul %0, %78, %cst_31 {dimension_numbers = #tpu.dot_dimension_numbers<[1], [0], [0], [1], [0, 0, 1, 1], [], []>} : vector<64x16xf32>, vector<16x8xf32>, vector<64x8xf32> -> vector<64x8xf32>
    %80 = vector.extract_strided_slice %79 {offsets = [0, 0], sizes = [16, 8], strides = [1, 1]} : vector<64x8xf32> to vector<16x8xf32>
    %81 = vector.extract_strided_slice %79 {offsets = [16, 0], sizes = [16, 8], strides = [1, 1]} : vector<64x8xf32> to vector<16x8xf32>
    %82 = arith.maximumf %80, %81 : vector<16x8xf32>
    %83 = vector.extract_strided_slice %79 {offsets = [32, 0], sizes = [16, 8], strides = [1, 1]} : vector<64x8xf32> to vector<16x8xf32>
    %84 = vector.extract_strided_slice %79 {offsets = [48, 0], sizes = [16, 8], strides = [1, 1]} : vector<64x8xf32> to vector<16x8xf32>
    %85 = arith.maximumf %83, %84 : vector<16x8xf32>
    %86 = arith.maximumf %82, %85 : vector<16x8xf32>
    %87 = vector.broadcast %1 : vector<16x1xf32> to vector<16x8xf32>
    %88 = arith.addf %86, %87 : vector<16x8xf32>
    %cst_32 = arith.constant 0.000000e+00 : f32
    %89 = vector.broadcast %cst_32 : f32 to vector<16x8xf32>
    %90 = arith.maximumf %88, %89 : vector<16x8xf32>
    %c80 = arith.constant 80 : index
    %c0_33 = arith.constant 0 : index
    %91 = vector.load %arg5[%c80, %c0_33] : memref<208x8xf32, #tpu.memory_space<vmem>>, vector<16x8xf32>
    tpu.vector_store %arg5[%c80, %c0_33], %90 {strides = array<i32>} : memref<208x8xf32, #tpu.memory_space<vmem>>, vector<16x8xf32>,
    %c6 = arith.constant 6 : index
    %c0_34 = arith.constant 0 : index
    %c0_35 = arith.constant 0 : index
    %92 = vector.load %arg2[%c6, %c0_34, %c0_35] : memref<13x16x8xf32, #tpu.memory_space<vmem>>, vector<1x16x8xf32>
    %93 = vector.shape_cast %92 : vector<1x16x8xf32> to vector<16x8xf32>
    %cst_36 = arith.constant dense<0.000000e+00> : vector<64x8xf32>
    %94 = tpu.matmul %0, %93, %cst_36 {dimension_numbers = #tpu.dot_dimension_numbers<[1], [0], [0], [1], [0, 0, 1, 1], [], []>} : vector<64x16xf32>, vector<16x8xf32>, vector<64x8xf32> -> vector<64x8xf32>
    %95 = vector.extract_strided_slice %94 {offsets = [0, 0], sizes = [16, 8], strides = [1, 1]} : vector<64x8xf32> to vector<16x8xf32>
    %96 = vector.extract_strided_slice %94 {offsets = [16, 0], sizes = [16, 8], strides = [1, 1]} : vector<64x8xf32> to vector<16x8xf32>
    %97 = arith.maximumf %95, %96 : vector<16x8xf32>
    %98 = vector.extract_strided_slice %94 {offsets = [32, 0], sizes = [16, 8], strides = [1, 1]} : vector<64x8xf32> to vector<16x8xf32>
    %99 = vector.extract_strided_slice %94 {offsets = [48, 0], sizes = [16, 8], strides = [1, 1]} : vector<64x8xf32> to vector<16x8xf32>
    %100 = arith.maximumf %98, %99 : vector<16x8xf32>
    %101 = arith.maximumf %97, %100 : vector<16x8xf32>
    %102 = vector.broadcast %1 : vector<16x1xf32> to vector<16x8xf32>
    %103 = arith.addf %101, %102 : vector<16x8xf32>
    %cst_37 = arith.constant 0.000000e+00 : f32
    %104 = vector.broadcast %cst_37 : f32 to vector<16x8xf32>
    %105 = arith.maximumf %103, %104 : vector<16x8xf32>
    %c96 = arith.constant 96 : index
    %c0_38 = arith.constant 0 : index
    %106 = vector.load %arg5[%c96, %c0_38] : memref<208x8xf32, #tpu.memory_space<vmem>>, vector<16x8xf32>
    tpu.vector_store %arg5[%c96, %c0_38], %105 {strides = array<i32>} : memref<208x8xf32, #tpu.memory_space<vmem>>, vector<16x8xf32>,
    %c7 = arith.constant 7 : index
    %c0_39 = arith.constant 0 : index
    %c0_40 = arith.constant 0 : index
    %107 = vector.load %arg2[%c7, %c0_39, %c0_40] : memref<13x16x8xf32, #tpu.memory_space<vmem>>, vector<1x16x8xf32>
    %108 = vector.shape_cast %107 : vector<1x16x8xf32> to vector<16x8xf32>
    %cst_41 = arith.constant dense<0.000000e+00> : vector<64x8xf32>
    %109 = tpu.matmul %0, %108, %cst_41 {dimension_numbers = #tpu.dot_dimension_numbers<[1], [0], [0], [1], [0, 0, 1, 1], [], []>} : vector<64x16xf32>, vector<16x8xf32>, vector<64x8xf32> -> vector<64x8xf32>
    %110 = vector.extract_strided_slice %109 {offsets = [0, 0], sizes = [16, 8], strides = [1, 1]} : vector<64x8xf32> to vector<16x8xf32>
    %111 = vector.extract_strided_slice %109 {offsets = [16, 0], sizes = [16, 8], strides = [1, 1]} : vector<64x8xf32> to vector<16x8xf32>
    %112 = arith.maximumf %110, %111 : vector<16x8xf32>
    %113 = vector.extract_strided_slice %109 {offsets = [32, 0], sizes = [16, 8], strides = [1, 1]} : vector<64x8xf32> to vector<16x8xf32>
    %114 = vector.extract_strided_slice %109 {offsets = [48, 0], sizes = [16, 8], strides = [1, 1]} : vector<64x8xf32> to vector<16x8xf32>
    %115 = arith.maximumf %113, %114 : vector<16x8xf32>
    %116 = arith.maximumf %112, %115 : vector<16x8xf32>
    %117 = vector.broadcast %1 : vector<16x1xf32> to vector<16x8xf32>
    %118 = arith.addf %116, %117 : vector<16x8xf32>
    %cst_42 = arith.constant 0.000000e+00 : f32
    %119 = vector.broadcast %cst_42 : f32 to vector<16x8xf32>
    %120 = arith.maximumf %118, %119 : vector<16x8xf32>
    %c112 = arith.constant 112 : index
    %c0_43 = arith.constant 0 : index
    %121 = vector.load %arg5[%c112, %c0_43] : memref<208x8xf32, #tpu.memory_space<vmem>>, vector<16x8xf32>
    tpu.vector_store %arg5[%c112, %c0_43], %120 {strides = array<i32>} : memref<208x8xf32, #tpu.memory_space<vmem>>, vector<16x8xf32>,
    %c8 = arith.constant 8 : index
    %c0_44 = arith.constant 0 : index
    %c0_45 = arith.constant 0 : index
    %122 = vector.load %arg2[%c8, %c0_44, %c0_45] : memref<13x16x8xf32, #tpu.memory_space<vmem>>, vector<1x16x8xf32>
    %123 = vector.shape_cast %122 : vector<1x16x8xf32> to vector<16x8xf32>
    %cst_46 = arith.constant dense<0.000000e+00> : vector<64x8xf32>
    %124 = tpu.matmul %0, %123, %cst_46 {dimension_numbers = #tpu.dot_dimension_numbers<[1], [0], [0], [1], [0, 0, 1, 1], [], []>} : vector<64x16xf32>, vector<16x8xf32>, vector<64x8xf32> -> vector<64x8xf32>
    %125 = vector.extract_strided_slice %124 {offsets = [0, 0], sizes = [16, 8], strides = [1, 1]} : vector<64x8xf32> to vector<16x8xf32>
    %126 = vector.extract_strided_slice %124 {offsets = [16, 0], sizes = [16, 8], strides = [1, 1]} : vector<64x8xf32> to vector<16x8xf32>
    %127 = arith.maximumf %125, %126 : vector<16x8xf32>
    %128 = vector.extract_strided_slice %124 {offsets = [32, 0], sizes = [16, 8], strides = [1, 1]} : vector<64x8xf32> to vector<16x8xf32>
    %129 = vector.extract_strided_slice %124 {offsets = [48, 0], sizes = [16, 8], strides = [1, 1]} : vector<64x8xf32> to vector<16x8xf32>
    %130 = arith.maximumf %128, %129 : vector<16x8xf32>
    %131 = arith.maximumf %127, %130 : vector<16x8xf32>
    %132 = vector.broadcast %1 : vector<16x1xf32> to vector<16x8xf32>
    %133 = arith.addf %131, %132 : vector<16x8xf32>
    %cst_47 = arith.constant 0.000000e+00 : f32
    %134 = vector.broadcast %cst_47 : f32 to vector<16x8xf32>
    %135 = arith.maximumf %133, %134 : vector<16x8xf32>
    %c128 = arith.constant 128 : index
    %c0_48 = arith.constant 0 : index
    %136 = vector.load %arg5[%c128, %c0_48] : memref<208x8xf32, #tpu.memory_space<vmem>>, vector<16x8xf32>
    tpu.vector_store %arg5[%c128, %c0_48], %135 {strides = array<i32>} : memref<208x8xf32, #tpu.memory_space<vmem>>, vector<16x8xf32>,
    %c9 = arith.constant 9 : index
    %c0_49 = arith.constant 0 : index
    %c0_50 = arith.constant 0 : index
    %137 = vector.load %arg2[%c9, %c0_49, %c0_50] : memref<13x16x8xf32, #tpu.memory_space<vmem>>, vector<1x16x8xf32>
    %138 = vector.shape_cast %137 : vector<1x16x8xf32> to vector<16x8xf32>
    %cst_51 = arith.constant dense<0.000000e+00> : vector<64x8xf32>
    %139 = tpu.matmul %0, %138, %cst_51 {dimension_numbers = #tpu.dot_dimension_numbers<[1], [0], [0], [1], [0, 0, 1, 1], [], []>} : vector<64x16xf32>, vector<16x8xf32>, vector<64x8xf32> -> vector<64x8xf32>
    %140 = vector.extract_strided_slice %139 {offsets = [0, 0], sizes = [16, 8], strides = [1, 1]} : vector<64x8xf32> to vector<16x8xf32>
    %141 = vector.extract_strided_slice %139 {offsets = [16, 0], sizes = [16, 8], strides = [1, 1]} : vector<64x8xf32> to vector<16x8xf32>
    %142 = arith.maximumf %140, %141 : vector<16x8xf32>
    %143 = vector.extract_strided_slice %139 {offsets = [32, 0], sizes = [16, 8], strides = [1, 1]} : vector<64x8xf32> to vector<16x8xf32>
    %144 = vector.extract_strided_slice %139 {offsets = [48, 0], sizes = [16, 8], strides = [1, 1]} : vector<64x8xf32> to vector<16x8xf32>
    %145 = arith.maximumf %143, %144 : vector<16x8xf32>
    %146 = arith.maximumf %142, %145 : vector<16x8xf32>
    %147 = vector.broadcast %1 : vector<16x1xf32> to vector<16x8xf32>
    %148 = arith.addf %146, %147 : vector<16x8xf32>
    %cst_52 = arith.constant 0.000000e+00 : f32
    %149 = vector.broadcast %cst_52 : f32 to vector<16x8xf32>
    %150 = arith.maximumf %148, %149 : vector<16x8xf32>
    %c144 = arith.constant 144 : index
    %c0_53 = arith.constant 0 : index
    %151 = vector.load %arg5[%c144, %c0_53] : memref<208x8xf32, #tpu.memory_space<vmem>>, vector<16x8xf32>
    tpu.vector_store %arg5[%c144, %c0_53], %150 {strides = array<i32>} : memref<208x8xf32, #tpu.memory_space<vmem>>, vector<16x8xf32>,
    %c10 = arith.constant 10 : index
    %c0_54 = arith.constant 0 : index
    %c0_55 = arith.constant 0 : index
    %152 = vector.load %arg2[%c10, %c0_54, %c0_55] : memref<13x16x8xf32, #tpu.memory_space<vmem>>, vector<1x16x8xf32>
    %153 = vector.shape_cast %152 : vector<1x16x8xf32> to vector<16x8xf32>
    %cst_56 = arith.constant dense<0.000000e+00> : vector<64x8xf32>
    %154 = tpu.matmul %0, %153, %cst_56 {dimension_numbers = #tpu.dot_dimension_numbers<[1], [0], [0], [1], [0, 0, 1, 1], [], []>} : vector<64x16xf32>, vector<16x8xf32>, vector<64x8xf32> -> vector<64x8xf32>
    %155 = vector.extract_strided_slice %154 {offsets = [0, 0], sizes = [16, 8], strides = [1, 1]} : vector<64x8xf32> to vector<16x8xf32>
    %156 = vector.extract_strided_slice %154 {offsets = [16, 0], sizes = [16, 8], strides = [1, 1]} : vector<64x8xf32> to vector<16x8xf32>
    %157 = arith.maximumf %155, %156 : vector<16x8xf32>
    %158 = vector.extract_strided_slice %154 {offsets = [32, 0], sizes = [16, 8], strides = [1, 1]} : vector<64x8xf32> to vector<16x8xf32>
    %159 = vector.extract_strided_slice %154 {offsets = [48, 0], sizes = [16, 8], strides = [1, 1]} : vector<64x8xf32> to vector<16x8xf32>
    %160 = arith.maximumf %158, %159 : vector<16x8xf32>
    %161 = arith.maximumf %157, %160 : vector<16x8xf32>
    %162 = vector.broadcast %1 : vector<16x1xf32> to vector<16x8xf32>
    %163 = arith.addf %161, %162 : vector<16x8xf32>
    %cst_57 = arith.constant 0.000000e+00 : f32
    %164 = vector.broadcast %cst_57 : f32 to vector<16x8xf32>
    %165 = arith.maximumf %163, %164 : vector<16x8xf32>
    %c160 = arith.constant 160 : index
    %c0_58 = arith.constant 0 : index
    %166 = vector.load %arg5[%c160, %c0_58] : memref<208x8xf32, #tpu.memory_space<vmem>>, vector<16x8xf32>
    tpu.vector_store %arg5[%c160, %c0_58], %165 {strides = array<i32>} : memref<208x8xf32, #tpu.memory_space<vmem>>, vector<16x8xf32>,
    %c11 = arith.constant 11 : index
    %c0_59 = arith.constant 0 : index
    %c0_60 = arith.constant 0 : index
    %167 = vector.load %arg2[%c11, %c0_59, %c0_60] : memref<13x16x8xf32, #tpu.memory_space<vmem>>, vector<1x16x8xf32>
    %168 = vector.shape_cast %167 : vector<1x16x8xf32> to vector<16x8xf32>
    %cst_61 = arith.constant dense<0.000000e+00> : vector<64x8xf32>
    %169 = tpu.matmul %0, %168, %cst_61 {dimension_numbers = #tpu.dot_dimension_numbers<[1], [0], [0], [1], [0, 0, 1, 1], [], []>} : vector<64x16xf32>, vector<16x8xf32>, vector<64x8xf32> -> vector<64x8xf32>
    %170 = vector.extract_strided_slice %169 {offsets = [0, 0], sizes = [16, 8], strides = [1, 1]} : vector<64x8xf32> to vector<16x8xf32>
    %171 = vector.extract_strided_slice %169 {offsets = [16, 0], sizes = [16, 8], strides = [1, 1]} : vector<64x8xf32> to vector<16x8xf32>
    %172 = arith.maximumf %170, %171 : vector<16x8xf32>
    %173 = vector.extract_strided_slice %169 {offsets = [32, 0], sizes = [16, 8], strides = [1, 1]} : vector<64x8xf32> to vector<16x8xf32>
    %174 = vector.extract_strided_slice %169 {offsets = [48, 0], sizes = [16, 8], strides = [1, 1]} : vector<64x8xf32> to vector<16x8xf32>
    %175 = arith.maximumf %173, %174 : vector<16x8xf32>
    %176 = arith.maximumf %172, %175 : vector<16x8xf32>
    %177 = vector.broadcast %1 : vector<16x1xf32> to vector<16x8xf32>
    %178 = arith.addf %176, %177 : vector<16x8xf32>
    %cst_62 = arith.constant 0.000000e+00 : f32
    %179 = vector.broadcast %cst_62 : f32 to vector<16x8xf32>
    %180 = arith.maximumf %178, %179 : vector<16x8xf32>
    %c176 = arith.constant 176 : index
    %c0_63 = arith.constant 0 : index
    %181 = vector.load %arg5[%c176, %c0_63] : memref<208x8xf32, #tpu.memory_space<vmem>>, vector<16x8xf32>
    tpu.vector_store %arg5[%c176, %c0_63], %180 {strides = array<i32>} : memref<208x8xf32, #tpu.memory_space<vmem>>, vector<16x8xf32>,
    %c12 = arith.constant 12 : index
    %c0_64 = arith.constant 0 : index
    %c0_65 = arith.constant 0 : index
    %182 = vector.load %arg2[%c12, %c0_64, %c0_65] : memref<13x16x8xf32, #tpu.memory_space<vmem>>, vector<1x16x8xf32>
    %183 = vector.shape_cast %182 : vector<1x16x8xf32> to vector<16x8xf32>
    %cst_66 = arith.constant dense<0.000000e+00> : vector<64x8xf32>
    %184 = tpu.matmul %0, %183, %cst_66 {dimension_numbers = #tpu.dot_dimension_numbers<[1], [0], [0], [1], [0, 0, 1, 1], [], []>} : vector<64x16xf32>, vector<16x8xf32>, vector<64x8xf32> -> vector<64x8xf32>
    %185 = vector.extract_strided_slice %184 {offsets = [0, 0], sizes = [16, 8], strides = [1, 1]} : vector<64x8xf32> to vector<16x8xf32>
    %186 = vector.extract_strided_slice %184 {offsets = [16, 0], sizes = [16, 8], strides = [1, 1]} : vector<64x8xf32> to vector<16x8xf32>
    %187 = arith.maximumf %185, %186 : vector<16x8xf32>
    %188 = vector.extract_strided_slice %184 {offsets = [32, 0], sizes = [16, 8], strides = [1, 1]} : vector<64x8xf32> to vector<16x8xf32>
    %189 = vector.extract_strided_slice %184 {offsets = [48, 0], sizes = [16, 8], strides = [1, 1]} : vector<64x8xf32> to vector<16x8xf32>
    %190 = arith.maximumf %188, %189 : vector<16x8xf32>
    %191 = arith.maximumf %187, %190 : vector<16x8xf32>
    %192 = vector.broadcast %1 : vector<16x1xf32> to vector<16x8xf32>
    %193 = arith.addf %191, %192 : vector<16x8xf32>
    %cst_67 = arith.constant 0.000000e+00 : f32
    %194 = vector.broadcast %cst_67 : f32 to vector<16x8xf32>
    %195 = arith.maximumf %193, %194 : vector<16x8xf32>
    %c192 = arith.constant 192 : index
    %c0_68 = arith.constant 0 : index
    %196 = vector.load %arg5[%c192, %c0_68] : memref<208x8xf32, #tpu.memory_space<vmem>>, vector<16x8xf32>
    tpu.vector_store %arg5[%c192, %c0_68], %195 {strides = array<i32>} : memref<208x8xf32, #tpu.memory_space<vmem>>, vector<16x8xf32>,
    return
  }
  func.func @transform_0(%arg0: i32, %arg1: i32) -> (i32, i32, i32) {
    %c0_i32 = arith.constant 0 : i32
    %c0_i32_0 = arith.constant 0 : i32
    return %arg0, %c0_i32, %arg1 : i32, i32, i32
  }
  func.func @transform_1(%arg0: i32, %arg1: i32) -> (i32, i32) {
    %c0_i32 = arith.constant 0 : i32
    %c0_i32_0 = arith.constant 0 : i32
    %c0_i32_1 = arith.constant 0 : i32
    return %c0_i32, %c0_i32_0 : i32, i32
  }
  func.func @transform_2(%arg0: i32, %arg1: i32) -> (i32, i32) {
    %c0_i32 = arith.constant 0 : i32
    %c0_i32_0 = arith.constant 0 : i32
    %c0_i32_1 = arith.constant 0 : i32
    return %c0_i32, %c0_i32_0 : i32, i32
  }
  func.func @transform_3(%arg0: i32, %arg1: i32) -> (i32, i32) {
    %c0_i32 = arith.constant 0 : i32
    return %arg0, %arg1 : i32, i32
  }
}

</mosaic_0001>

<llo_original>
// kernel: cnn_forward.2
$region0: #{cnn_forward.2}
  #allocation0 [shape = 'u32[]', space=smem, size = 0x4, offset = 0x4, fixed_abs, tag = 'smem constant byte address 0x4 - core index']
  #allocation1 [shape = 'u32[144,128]{1,0:T(1,128)}', space=vmem, size = 0x12000, scoped, tag = 'internal scratch']
  %s0 = inlined_call_operand.vmem [shape: f32[169,16,8], index: 0, kind: input, shape index: {}]
  %s1 = inlined_call_operand.vmem [shape: f32[64,16], index: 1, kind: input, shape index: {}]
  %s2 = inlined_call_operand.vmem [shape: f32[16,1], index: 2, kind: input, shape index: {}]
  %s3 = inlined_call_operand.vmem [shape: f32[2704,8], index: 3, kind: output, shape index: {}]
  %s4 = sld [smem:[#allocation0]]
  $region45: #{cnn_forward.2} parent=0
    _
  %s6 = ssub.s32 1, %s4
  %s7 = scalar_select 0, %s6, %s4
  loop: start=0, step=1, limit=15
  $region2: #{cnn_forward.2} parent=0 // loop_pre_header
    _
  $region3: #{cnn_forward.2} parent=0 // loop_header
    %s9 = sphi 0, %s13
    %p10 = scmp.ge.s32.totalorder %s9, 15
    %s16 = sphi 0, %s28
    %s17 = sphi 0, %s24
    %s18 = sphi 0, %s16
    %s19 = sphi 0, %s17
    %s20 = sphi 0, %s18
    %s21 = sphi 0, %s19
    %s33 = sphi 0, %s35
    %s36 = sphi 0, %s33
    %s37 = sphi 0, %s36
    %s53 = sphi 0, %s37
    %s57 = sphi 0, %s57
    %s59 = sphi 0, %s57
    %s60 = sphi 0, %s59
    %s74 = sphi 0, %s60
    %s78 = sphi 0, %s78
    %s80 = sphi 0, %s78
    %s81 = sphi 0, %s80
    %s95 = sphi 0, %s81
    %s103 = sphi 0, %s105
    %s106 = sphi 0, %s103
    %s107 = sphi 0, %s106
    %s123 = sphi 0, %s107
  $region4: #{cnn_forward.2} parent=0 // loop_header_branch
    %12 = sbr.rel (%p10) target = $region8
  $region5: #{cnn_forward.2} parent=0 // loop_body
    %s14 = ssub.s32 %s9, 1
    %s15 = ssub.s32 %s9, 2
    %s22 = sadd.s32 1, %s17
    %p23 = scmp.ge.s32.totalorder %s22, 1
    %s24 = scalar_select %p23, 0, %s22
    %s25 = sadd.s32 1, %s16
    %s26 = scalar_select %p23, %s25, %s16
    %p27 = scmp.ge.s32.totalorder %s26, 13
    %s28 = scalar_select %p27, 0, %s26
    %s29 = ssub.s32 %s16, %s28
    %s30 = ssub.s32 %s17, %s24
    %s31 = sor.u32 %s29, %s30
    %p32 = scmp.eq.s32.totalorder %s31, 0
    %s34 = sadd.s32 %s33, 1
    %s35 = scalar_select %p32, %s33, %s34
    %p38 = pneg %p32
    %p39 = scmp.eq.s32.totalorder %s9, 12
    %p40 = por %p38, %p39
    %p41 = scmp.ne.s32.totalorder %s33, %s36
    %p42 = scmp.eq.s32.totalorder %s9, 0
    %p43 = por %p41, %p42
    %p44 = scmp.ne.s32.totalorder %s33, %s36
    %p45 = scmp.eq.s32.totalorder %s14, 12
    %p46 = por %p44, %p45
    %p47 = scmp.ne.s32.totalorder %s36, %s37
    %p48 = scmp.eq.s32.totalorder %s14, 0
    %p49 = por %p47, %p48
    %p50 = scmp.ne.s32.totalorder %s36, %s37
    %p51 = scmp.eq.s32.totalorder %s15, 12
    %p52 = por %p50, %p51
    %p54 = scmp.ne.s32.totalorder %s37, %s53
    %p55 = scmp.eq.s32.totalorder %s15, 0
    %p56 = por %p54, %p55
    %s58 = sadd.s32 %s57, 1
    %p61 = scmp.eq.s32.totalorder %s9, 12
    %p62 = scmp.ne.s32.totalorder %s57, %s59
    %p63 = scmp.eq.s32.totalorder %s9, 0
    %p64 = por %p62, %p63
    %p65 = scmp.ne.s32.totalorder %s57, %s59
    %p66 = scmp.eq.s32.totalorder %s14, 12
    %p67 = por %p65, %p66
    %p68 = scmp.ne.s32.totalorder %s59, %s60
    %p69 = scmp.eq.s32.totalorder %s14, 0
    %p70 = por %p68, %p69
    %p71 = scmp.ne.s32.totalorder %s59, %s60
    %p72 = scmp.eq.s32.totalorder %s15, 12
    %p73 = por %p71, %p72
    %p75 = scmp.ne.s32.totalorder %s60, %s74
    %p76 = scmp.eq.s32.totalorder %s15, 0
    %p77 = por %p75, %p76
    %s79 = sadd.s32 %s78, 1
    %p82 = scmp.eq.s32.totalorder %s9, 12
    %p83 = scmp.ne.s32.totalorder %s78, %s80
    %p84 = scmp.eq.s32.totalorder %s9, 0
    %p85 = por %p83, %p84
    %p86 = scmp.ne.s32.totalorder %s78, %s80
    %p87 = scmp.eq.s32.totalorder %s14, 12
    %p88 = por %p86, %p87
    %p89 = scmp.ne.s32.totalorder %s80, %s81
    %p90 = scmp.eq.s32.totalorder %s14, 0
    %p91 = por %p89, %p90
    %p92 = scmp.ne.s32.totalorder %s80, %s81
    %p93 = scmp.eq.s32.totalorder %s15, 12
    %p94 = por %p92, %p93
    %p96 = scmp.ne.s32.totalorder %s81, %s95
    %p97 = scmp.eq.s32.totalorder %s15, 0
    %p98 = por %p96, %p97
    %s99 = ssub.s32 %s16, %s28
    %s100 = ssub.s32 %s17, %s24
    %s101 = sor.u32 %s99, %s100
    %p102 = scmp.eq.s32.totalorder %s101, 0
    %s104 = sadd.s32 %s103, 1
    %s105 = scalar_select %p102, %s103, %s104
    %p108 = pneg %p102
    %p109 = scmp.eq.s32.totalorder %s9, 12
    %p110 = por %p108, %p109
    %p111 = scmp.ne.s32.totalorder %s103, %s106
    %p112 = scmp.eq.s32.totalorder %s9, 0
    %p113 = por %p111, %p112
    %p114 = scmp.ne.s32.totalorder %s103, %s106
    %p115 = scmp.eq.s32.totalorder %s14, 12
    %p116 = por %p114, %p115
    %p117 = scmp.ne.s32.totalorder %s106, %s107
    %p118 = scmp.eq.s32.totalorder %s14, 0
    %p119 = por %p117, %p118
    %p120 = scmp.ne.s32.totalorder %s106, %s107
    %p121 = scmp.eq.s32.totalorder %s15, 12
    %p122 = por %p120, %p121
    %p124 = scmp.ne.s32.totalorder %s107, %s123
    %p125 = scmp.eq.s32.totalorder %s15, 0
    %p126 = por %p124, %p125
    %p127 = scmp.le.s32.totalorder 1, %s9
    %p128 = scmp.lt.s32.totalorder %s9, 14
    %p129 = pnand %p127, %p128
    %p130 = pneg %p129
    // Predicated region
    $region9: #{cnn_forward.2} parent=5 // pred_check
      _
    $region10: #{cnn_forward.2} parent=5 // pred_check_branch
      %132 = sbr.rel (%p129) target = $region12
    $region11: #{cnn_forward.2} parent=5 // pred_region
      %s133 = ssub.s32 %s9, 1
      // Predicated region
      $region13: #{cnn_forward.2} parent=11 // pred_check
        %p134 = pneg %p70
      $region14: #{cnn_forward.2} parent=11 // pred_check_branch
        %136 = sbr.rel (%p134) target = $region16
      $region15: #{cnn_forward.2} parent=11 // pred_region
        _
      $region16: #{cnn_forward.2} parent=11 // pred_fallthru
        _
      // Predicated region
      $region17: #{cnn_forward.2} parent=11 // pred_check
        %p137 = pneg %p91
      $region18: #{cnn_forward.2} parent=11 // pred_check_branch
        %139 = sbr.rel (%p137) target = $region20
      $region19: #{cnn_forward.2} parent=11 // pred_region
        _
      $region20: #{cnn_forward.2} parent=11 // pred_fallthru
        _
    $region12: #{cnn_forward.2} parent=5 // pred_fallthru
      _
    %p140 = scmp.lt.s32.totalorder %s9, 13
    // Predicated region
    $region21: #{cnn_forward.2} parent=5 // pred_check
      %p141 = pneg %p140
    $region22: #{cnn_forward.2} parent=5 // pred_check_branch
      %143 = sbr.rel (%p141) target = $region24
    $region23: #{cnn_forward.2} parent=5 // pred_region
      // Predicated region
      $region25: #{cnn_forward.2} parent=23 // pred_check
        %p144 = pneg %p43
      $region26: #{cnn_forward.2} parent=23 // pred_check_branch
        %146 = sbr.rel (%p144) target = $region28
      $region27: #{cnn_forward.2} parent=23 // pred_region
        %s147 = smul.u32 13, %s16
        %p148 = scmp.lt.s32.totalorder %s147, 168
        %s149 = scalar_select %p148, %s147, 168
        %p150 = scmp.lt.s32.totalorder %s17, 0
        %s151 = scalar_select %p150, %s17, 0
        %s152 = smul.addr %s149, 2
        %s153 = sadd.s32 %s151, %s152
        %s154 = smul.addr %s153, 8
        %s155 = scalar_lea.vmem %s0, %s154
        %s156 = smul.u32 13, %s16
      $region28: #{cnn_forward.2} parent=23 // pred_fallthru
        _
    $region24: #{cnn_forward.2} parent=5 // pred_fallthru
      _
    %p157 = scmp.le.s32.totalorder 1, %s9
    %p158 = scmp.lt.s32.totalorder %s9, 14
    %p159 = pnand %p157, %p158
    %p160 = pneg %p159
    // Predicated region
    $region29: #{cnn_forward.2} parent=5 // pred_check
      _
    $region30: #{cnn_forward.2} parent=5 // pred_check_branch
      %162 = sbr.rel (%p159) target = $region32
    $region31: #{cnn_forward.2} parent=5 // pred_region
      %s163 = ssub.s32 %s9, 1
      %s164 = smul.u32 13, %s18
      %p165 = scmp.lt.s32.totalorder %s164, 168
      %s166 = scalar_select %p165, %s164, 168
      %p167 = scmp.lt.s32.totalorder %s19, 0
      %s168 = scalar_select %p167, %s19, 0
      %s169 = smul.addr %s166, 2
      %s170 = sadd.s32 %s168, %s169
      %s171 = smul.addr %s170, 8
      %s172 = scalar_lea.vmem %s0, %s171
      %p173 = pneg %p49
      %p174 = pneg %p46
      %p175 = pneg %p70
      %p176 = pneg %p67
      %p177 = pneg %p91
      %p178 = pneg %p88
      %p179 = pneg %p119
      %p180 = pneg %p116
      %s181 = smul.u32 26, %s18
      %p182 = scmp.lt.s32.totalorder %s181, 337
      %s183 = scalar_select %p182, %s181, 337
      %p184 = scmp.lt.s32.totalorder %s19, 0
      %s185 = scalar_select %p184, %s19, 0
      %s186 = sadd.s32 %s185, %s183
      %s187 = smul.addr %s186, 8
      %s188 = scalar_lea.vmem %s3, %s187
      %s189 = smul.u32 13, %s18
      %p190 = scmp.lt.s32.totalorder %s189, 168
      %s191 = scalar_select %p190, %s189, 168
      %p192 = scmp.lt.s32.totalorder %s19, 0
      %s193 = scalar_select %p192, %s19, 0
      %s194 = smul.addr %s191, 2
      %s195 = sadd.s32 %s193, %s194
      %s196 = smul.addr %s195, 8
      %s197 = scalar_lea.vmem %s0, %s196
      %s198 = smul.u32 13, %s18
      %s199 = smul.u32 26, %s18
      %p200 = scmp.lt.s32.totalorder %s199, 337
      %s201 = scalar_select %p200, %s199, 337
      %p202 = scmp.lt.s32.totalorder %s19, 0
      %s203 = scalar_select %p202, %s19, 0
      %s204 = sadd.s32 %s203, %s201
      %s205 = smul.addr %s204, 8
      %s206 = scalar_lea.vmem %s3, %s205
      %s207 = smul.u32 26, %s18
      %v208 = vld [vmem:[%s1] sm:$0xff]
      %v209 = vld [vmem:[%s1 + $0x8] sm:$0xff]
      %v210 = vld [vmem:[%s1 + $0x10] sm:$0xff]
      %v211 = vld [vmem:[%s1 + $0x18] sm:$0xff]
      %v212 = vld [vmem:[%s1 + $0x20] sm:$0xff]
      %v213 = vld [vmem:[%s1 + $0x28] sm:$0xff]
      %v214 = vld [vmem:[%s1 + $0x30] sm:$0xff]
      %v215 = vld [vmem:[%s1 + $0x38] sm:$0xff]
      %v216 = vld [vmem:[%s2] sm:$0xff]
      %v217 = vld [vmem:[%s2 + $0x8] sm:$0xff]
      %v218 = vld [vmem:[%s197] sm:$0xff]
      %v219 = vld [vmem:[%s197 + $0x8] sm:$0xff]
      %vm220 = vcmask 130048
      %v222 = vsel %vm220, %v208, 0
      %v225 = vsel %vm220, %v209, 0
      %v228 = vsel %vm220, %v210, 0
      %v231 = vsel %vm220, %v211, 0
      %v234 = vsel %vm220, %v212, 0
      %v237 = vsel %vm220, %v213, 0
      %v240 = vsel %vm220, %v214, 0
      %v243 = vsel %vm220, %v215, 0
      %245 = vmatprep.subr.mxu0 0.0
      %246 = vmatpush1.msra.mxu0 %v218
      %247 = vmatprep.subr.mxu0 0.0
      %248 = vmatpush1.msra.mxu0 %v219
      %249 = vmatprep.subr.mxu0 0.0
      %250 = vmatpush1.msra.mxu0 0.0
      %251 = vmatprep.subr.mxu0 0.0
      %252 = vmatpush1.msra.mxu0 0.0
      %253 = vmatprep.subr.mxu0 0.0
      %254 = vmatpush1.msra.mxu0 0.0
      %255 = vmatprep.subr.mxu0 0.0
      %256 = vmatpush1.msra.mxu0 0.0
      %257 = vmatprep.subr.mxu0 0.0
      %258 = vmatpush1.msra.mxu0 0.0
      %259 = vmatprep.subr.mxu0 0.0
      %260 = vmatpush1.msra.mxu0 0.0
      %261 = vmatprep.subr.mxu0 0.0
      %262 = vmatpush1.msra.mxu0 0.0
      %263 = vmatprep.subr.mxu0 0.0
      %264 = vmatpush1.msra.mxu0 0.0
      %265 = vmatprep.subr.mxu0 0.0
      %266 = vmatpush1.msra.mxu0 0.0
      %267 = vmatprep.subr.mxu0 0.0
      %268 = vmatpush1.msra.mxu0 0.0
      %269 = vmatprep.subr.mxu0 0.0
      %270 = vmatpush1.msra.mxu0 0.0
      %271 = vmatprep.subr.mxu0 0.0
      %272 = vmatpush1.msra.mxu0 0.0
      %273 = vmatprep.subr.mxu0 0.0
      %274 = vmatpush1.msra.mxu0 0.0
      %275 = vmatprep.subr.mxu0 0.0
      %276 = vmatpush1.msra.mxu0 0.0
      %277 = vmatprep.subr.mxu0 0.0
      %278 = vmatpush1.msra.mxu0 0.0
      %279 = vmatprep.subr.mxu0 0.0
      %280 = vmatpush1.msra.mxu0 0.0
      %281 = vmatprep.subr.mxu0 0.0
      %282 = vmatpush1.msra.mxu0 0.0
      %283 = vmatprep.subr.mxu0 0.0
      %284 = vmatpush1.msra.mxu0 0.0
      %285 = vmatprep.subr.mxu0 0.0
      %286 = vmatpush1.msra.mxu0 0.0
      %287 = vmatprep.subr.mxu0 0.0
      %288 = vmatpush1.msra.mxu0 0.0
      %289 = vmatprep.subr.mxu0 0.0
      %290 = vmatpush1.msra.mxu0 0.0
      %291 = vmatprep.subr.mxu0 0.0
      %292 = vmatpush1.msra.mxu0 0.0
      %293 = vmatprep.subr.mxu0 0.0
      %294 = vmatpush1.msra.mxu0 0.0
      %295 = vmatprep.subr.mxu0 0.0
      %296 = vmatpush1.msra.mxu0 0.0
      %297 = vmatprep.subr.mxu0 0.0
      %298 = vmatpush1.msra.mxu0 0.0
      %299 = vmatprep.subr.mxu0 0.0
      %300 = vmatpush1.msra.mxu0 0.0
      %301 = vmatprep.subr.mxu0 0.0
      %302 = vmatpush1.msra.mxu0 0.0
      %303 = vmatprep.subr.mxu0 0.0
      %304 = vmatpush1.msra.mxu0 0.0
      %305 = vmatprep.subr.mxu0 0.0
      %306 = vmatpush1.msra.mxu0 0.0
      %307 = vmatprep.subr.mxu0 0.0
      %308 = vmatpush1.msra.mxu0 0.0
      %309 = vmatprep.mubr.f32.mxu0 0.0
      %310 = vmatmul.mubr.f32.gmra.mrb[0].mxu0 %v222
      %v311 = vpop.f32.mrb[0].mxu0
      %v312 = vadd.f32 0.0, %v311
      %v313 = vpop.f32.mrb[0].mxu0
      %314 = vmatprep.mubr.f32.mxu0 0.0
      %315 = vmatmul.mubr.f32.gmra.mrb[0].mxu0 %v225
      %v316 = vpop.f32.mrb[0].mxu0
      %v317 = vadd.f32 0.0, %v316
      %v318 = vpop.f32.mrb[0].mxu0
      %319 = vmatprep.mubr.f32.mxu0 0.0
      %320 = vmatmul.mubr.f32.gmra.mrb[0].mxu0 %v228
      %v321 = vpop.f32.mrb[0].mxu0
      %v322 = vadd.f32 0.0, %v321
      %v323 = vpop.f32.mrb[0].mxu0
      %324 = vmatprep.mubr.f32.mxu0 0.0
      %325 = vmatmul.mubr.f32.gmra.mrb[0].mxu0 %v231
      %v326 = vpop.f32.mrb[0].mxu0
      %v327 = vadd.f32 0.0, %v326
      %v328 = vpop.f32.mrb[0].mxu0
      %329 = vmatprep.mubr.f32.mxu0 0.0
      %330 = vmatmul.mubr.f32.gmra.mrb[0].mxu0 %v234
      %v331 = vpop.f32.mrb[0].mxu0
      %v332 = vadd.f32 0.0, %v331
      %v333 = vpop.f32.mrb[0].mxu0
      %334 = vmatprep.mubr.f32.mxu0 0.0
      %335 = vmatmul.mubr.f32.gmra.mrb[0].mxu0 %v237
      %v336 = vpop.f32.mrb[0].mxu0
      %v337 = vadd.f32 0.0, %v336
      %v338 = vpop.f32.mrb[0].mxu0
      %339 = vmatprep.mubr.f32.mxu0 0.0
      %340 = vmatmul.mubr.f32.gmra.mrb[0].mxu0 %v240
      %v341 = vpop.f32.mrb[0].mxu0
      %v342 = vadd.f32 0.0, %v341
      %v343 = vpop.f32.mrb[0].mxu0
      %344 = vmatprep.mubr.f32.mxu0 0.0
      %345 = vmatmul.mubr.f32.gmra.mrb[0].mxu0 %v243
      %v346 = vpop.f32.mrb[0].mxu0
      %v347 = vadd.f32 0.0, %v346
      %v348 = vpop.f32.mrb[0].mxu0
      %349 = vdwg.mxu0
      %v350 = vmax.f32 %v312, %v322
      %v351 = vmax.f32 %v317, %v327
      %v352 = vmax.f32 %v332, %v342
      %v353 = vmax.f32 %v337, %v347
      %v354 = vmax.f32 %v350, %v352
      %v355 = vmax.f32 %v351, %v353
      %357 = vset.pattern.permute.xlu0 0
      %358 = vperm.xlu0 %357, %v216
      %v359 = vpop.permute.xlu0 %358
      %362 = vset.pattern.permute.xlu0 0
      %363 = vperm.xlu0 %362, %v217
      %v364 = vpop.permute.xlu0 %363
      %v366 = vadd.f32 %v354, %v359
      %v367 = vadd.f32 %v355, %v364
      %v368 = vmax.f32 %v366, 0.0
      %v369 = vmax.f32 %v367, 0.0
      %vm370 = vcmask 64512
      %371 = vst.msk [vmem:[%s206] sm:$0xff] %vm370, %v368
      %372 = vst.msk [vmem:[%s206 + $0x8] sm:$0xff] %vm370, %v369
      %s373 = scalar_lea.vmem %s197, 16
      %v374 = vld [vmem:[%s373] sm:$0xff]
      %v375 = vld [vmem:[%s373 + $0x8] sm:$0xff]
      %376 = vmatprep.subr.mxu0 0.0
      %377 = vmatpush1.msra.mxu0 %v374
      %378 = vmatprep.subr.mxu0 0.0
      %379 = vmatpush1.msra.mxu0 %v375
      %380 = vmatprep.subr.mxu0 0.0
      %381 = vmatpush1.msra.mxu0 0.0
      %382 = vmatprep.subr.mxu0 0.0
      %383 = vmatpush1.msra.mxu0 0.0
      %384 = vmatprep.subr.mxu0 0.0
      %385 = vmatpush1.msra.mxu0 0.0
      %386 = vmatprep.subr.mxu0 0.0
      %387 = vmatpush1.msra.mxu0 0.0
      %388 = vmatprep.subr.mxu0 0.0
      %389 = vmatpush1.msra.mxu0 0.0
      %390 = vmatprep.subr.mxu0 0.0
      %391 = vmatpush1.msra.mxu0 0.0
      %392 = vmatprep.subr.mxu0 0.0
      %393 = vmatpush1.msra.mxu0 0.0
      %394 = vmatprep.subr.mxu0 0.0
      %395 = vmatpush1.msra.mxu0 0.0
      %396 = vmatprep.subr.mxu0 0.0
      %397 = vmatpush1.msra.mxu0 0.0
      %398 = vmatprep.subr.mxu0 0.0
      %399 = vmatpush1.msra.mxu0 0.0
      %400 = vmatprep.subr.mxu0 0.0
      %401 = vmatpush1.msra.mxu0 0.0
      %402 = vmatprep.subr.mxu0 0.0
      %403 = vmatpush1.msra.mxu0 0.0
      %404 = vmatprep.subr.mxu0 0.0
      %405 = vmatpush1.msra.mxu0 0.0
      %406 = vmatprep.subr.mxu0 0.0
      %407 = vmatpush1.msra.mxu0 0.0
      %408 = vmatprep.subr.mxu0 0.0
      %409 = vmatpush1.msra.mxu0 0.0
      %410 = vmatprep.subr.mxu0 0.0
      %411 = vmatpush1.msra.mxu0 0.0
      %412 = vmatprep.subr.mxu0 0.0
      %413 = vmatpush1.msra.mxu0 0.0
      %414 = vmatprep.subr.mxu0 0.0
      %415 = vmatpush1.msra.mxu0 0.0
      %416 = vmatprep.subr.mxu0 0.0
      %417 = vmatpush1.msra.mxu0 0.0
      %418 = vmatprep.subr.mxu0 0.0
      %419 = vmatpush1.msra.mxu0 0.0
      %420 = vmatprep.subr.mxu0 0.0
      %421 = vmatpush1.msra.mxu0 0.0
      %422 = vmatprep.subr.mxu0 0.0
      %423 = vmatpush1.msra.mxu0 0.0
      %424 = vmatprep.subr.mxu0 0.0
      %425 = vmatpush1.msra.mxu0 0.0
      %426 = vmatprep.subr.mxu0 0.0
      %427 = vmatpush1.msra.mxu0 0.0
      %428 = vmatprep.subr.mxu0 0.0
      %429 = vmatpush1.msra.mxu0 0.0
      %430 = vmatprep.subr.mxu0 0.0
      %431 = vmatpush1.msra.mxu0 0.0
      %432 = vmatprep.subr.mxu0 0.0
      %433 = vmatpush1.msra.mxu0 0.0
      %434 = vmatprep.subr.mxu0 0.0
      %435 = vmatpush1.msra.mxu0 0.0
      %436 = vmatprep.subr.mxu0 0.0
      %437 = vmatpush1.msra.mxu0 0.0
      %438 = vmatprep.subr.mxu0 0.0
      %439 = vmatpush1.msra.mxu0 0.0
      %440 = vmatprep.mubr.f32.mxu0 0.0
      %441 = vmatmul.mubr.f32.gmra.mrb[0].mxu0 %v222
      %v442 = vpop.f32.mrb[0].mxu0
      %v443 = vadd.f32 0.0, %v442
      %v444 = vpop.f32.mrb[0].mxu0
      %445 = vmatprep.mubr.f32.mxu0 0.0
      %446 = vmatmul.mubr.f32.gmra.mrb[0].mxu0 %v225
      %v447 = vpop.f32.mrb[0].mxu0
      %v448 = vadd.f32 0.0, %v447
      %v449 = vpop.f32.mrb[0].mxu0
      %450 = vmatprep.mubr.f32.mxu0 0.0
      %451 = vmatmul.mubr.f32.gmra.mrb[0].mxu0 %v228
      %v452 = vpop.f32.mrb[0].mxu0
      %v453 = vadd.f32 0.0, %v452
      %v454 = vpop.f32.mrb[0].mxu0
      %455 = vmatprep.mubr.f32.mxu0 0.0
      %456 = vmatmul.mubr.f32.gmra.mrb[0].mxu0 %v231
      %v457 = vpop.f32.mrb[0].mxu0
      %v458 = vadd.f32 0.0, %v457
      %v459 = vpop.f32.mrb[0].mxu0
      %460 = vmatprep.mubr.f32.mxu0 0.0
      %461 = vmatmul.mubr.f32.gmra.mrb[0].mxu0 %v234
      %v462 = vpop.f32.mrb[0].mxu0
      %v463 = vadd.f32 0.0, %v462
      %v464 = vpop.f32.mrb[0].mxu0
      %465 = vmatprep.mubr.f32.mxu0 0.0
      %466 = vmatmul.mubr.f32.gmra.mrb[0].mxu0 %v237
      %v467 = vpop.f32.mrb[0].mxu0
      %v468 = vadd.f32 0.0, %v467
      %v469 = vpop.f32.mrb[0].mxu0
      %470 = vmatprep.mubr.f32.mxu0 0.0
      %471 = vmatmul.mubr.f32.gmra.mrb[0].mxu0 %v240
      %v472 = vpop.f32.mrb[0].mxu0
      %v473 = vadd.f32 0.0, %v472
      %v474 = vpop.f32.mrb[0].mxu0
      %475 = vmatprep.mubr.f32.mxu0 0.0
      %476 = vmatmul.mubr.f32.gmra.mrb[0].mxu0 %v243
      %v477 = vpop.f32.mrb[0].mxu0
      %v478 = vadd.f32 0.0, %v477
      %v479 = vpop.f32.mrb[0].mxu0
      %480 = vdwg.mxu0
      %v481 = vmax.f32 %v443, %v453
      %v482 = vmax.f32 %v448, %v458
      %v483 = vmax.f32 %v463, %v473
      %v484 = vmax.f32 %v468, %v478
      %v485 = vmax.f32 %v481, %v483
      %v486 = vmax.f32 %v482, %v484
      %v487 = vadd.f32 %v485, %v359
      %v488 = vadd.f32 %v486, %v364
      %v489 = vmax.f32 %v487, 0.0
      %v490 = vmax.f32 %v488, 0.0
      %491 = vst.msk [vmem:[%s206 + $0x10] sm:$0xff] %vm370, %v489
      %492 = vst.msk [vmem:[%s206 + $0x18] sm:$0xff] %vm370, %v490
      %s493 = scalar_lea.vmem %s197, 32
      %v494 = vld [vmem:[%s493] sm:$0xff]
      %v495 = vld [vmem:[%s493 + $0x8] sm:$0xff]
      %496 = vmatprep.subr.mxu0 0.0
      %497 = vmatpush1.msra.mxu0 %v494
      %498 = vmatprep.subr.mxu0 0.0
      %499 = vmatpush1.msra.mxu0 %v495
      %500 = vmatprep.subr.mxu0 0.0
      %501 = vmatpush1.msra.mxu0 0.0
      %502 = vmatprep.subr.mxu0 0.0
      %503 = vmatpush1.msra.mxu0 0.0
      %504 = vmatprep.subr.mxu0 0.0
      %505 = vmatpush1.msra.mxu0 0.0
      %506 = vmatprep.subr.mxu0 0.0
      %507 = vmatpush1.msra.mxu0 0.0
      %508 = vmatprep.subr.mxu0 0.0
      %509 = vmatpush1.msra.mxu0 0.0
      %510 = vmatprep.subr.mxu0 0.0
      %511 = vmatpush1.msra.mxu0 0.0
      %512 = vmatprep.subr.mxu0 0.0
      %513 = vmatpush1.msra.mxu0 0.0
      %514 = vmatprep.subr.mxu0 0.0
      %515 = vmatpush1.msra.mxu0 0.0
      %516 = vmatprep.subr.mxu0 0.0
      %517 = vmatpush1.msra.mxu0 0.0
      %518 = vmatprep.subr.mxu0 0.0
      %519 = vmatpush1.msra.mxu0 0.0
      %520 = vmatprep.subr.mxu0 0.0
      %521 = vmatpush1.msra.mxu0 0.0
      %522 = vmatprep.subr.mxu0 0.0
      %523 = vmatpush1.msra.mxu0 0.0
      %524 = vmatprep.subr.mxu0 0.0
      %525 = vmatpush1.msra.mxu0 0.0
      %526 = vmatprep.subr.mxu0 0.0
      %527 = vmatpush1.msra.mxu0 0.0
      %528 = vmatprep.subr.mxu0 0.0
      %529 = vmatpush1.msra.mxu0 0.0
      %530 = vmatprep.subr.mxu0 0.0
      %531 = vmatpush1.msra.mxu0 0.0
      %532 = vmatprep.subr.mxu0 0.0
      %533 = vmatpush1.msra.mxu0 0.0
      %534 = vmatprep.subr.mxu0 0.0
      %535 = vmatpush1.msra.mxu0 0.0
      %536 = vmatprep.subr.mxu0 0.0
      %537 = vmatpush1.msra.mxu0 0.0
      %538 = vmatprep.subr.mxu0 0.0
      %539 = vmatpush1.msra.mxu0 0.0
      %540 = vmatprep.subr.mxu0 0.0
      %541 = vmatpush1.msra.mxu0 0.0
      %542 = vmatprep.subr.mxu0 0.0
      %543 = vmatpush1.msra.mxu0 0.0
      %544 = vmatprep.subr.mxu0 0.0
      %545 = vmatpush1.msra.mxu0 0.0
      %546 = vmatprep.subr.mxu0 0.0
      %547 = vmatpush1.msra.mxu0 0.0
      %548 = vmatprep.subr.mxu0 0.0
      %549 = vmatpush1.msra.mxu0 0.0
      %550 = vmatprep.subr.mxu0 0.0
      %551 = vmatpush1.msra.mxu0 0.0
      %552 = vmatprep.subr.mxu0 0.0
      %553 = vmatpush1.msra.mxu0 0.0
      %554 = vmatprep.subr.mxu0 0.0
      %555 = vmatpush1.msra.mxu0 0.0
      %556 = vmatprep.subr.mxu0 0.0
      %557 = vmatpush1.msra.mxu0 0.0
      %558 = vmatprep.subr.mxu0 0.0
      %559 = vmatpush1.msra.mxu0 0.0
      %560 = vmatprep.mubr.f32.mxu0 0.0
      %561 = vmatmul.mubr.f32.gmra.mrb[0].mxu0 %v222
      %v562 = vpop.f32.mrb[0].mxu0
      %v563 = vadd.f32 0.0, %v562
      %v564 = vpop.f32.mrb[0].mxu0
      %565 = vmatprep.mubr.f32.mxu0 0.0
      %566 = vmatmul.mubr.f32.gmra.mrb[0].mxu0 %v225
      %v567 = vpop.f32.mrb[0].mxu0
      %v568 = vadd.f32 0.0, %v567
      %v569 = vpop.f32.mrb[0].mxu0
      %570 = vmatprep.mubr.f32.mxu0 0.0
      %571 = vmatmul.mubr.f32.gmra.mrb[0].mxu0 %v228
      %v572 = vpop.f32.mrb[0].mxu0
      %v573 = vadd.f32 0.0, %v572
      %v574 = vpop.f32.mrb[0].mxu0
      %575 = vmatprep.mubr.f32.mxu0 0.0
      %576 = vmatmul.mubr.f32.gmra.mrb[0].mxu0 %v231
      %v577 = vpop.f32.mrb[0].mxu0
      %v578 = vadd.f32 0.0, %v577
      %v579 = vpop.f32.mrb[0].mxu0
      %580 = vmatprep.mubr.f32.mxu0 0.0
      %581 = vmatmul.mubr.f32.gmra.mrb[0].mxu0 %v234
      %v582 = vpop.f32.mrb[0].mxu0
      %v583 = vadd.f32 0.0, %v582
      %v584 = vpop.f32.mrb[0].mxu0
      %585 = vmatprep.mubr.f32.mxu0 0.0
      %586 = vmatmul.mubr.f32.gmra.mrb[0].mxu0 %v237
      %v587 = vpop.f32.mrb[0].mxu0
      %v588 = vadd.f32 0.0, %v587
      %v589 = vpop.f32.mrb[0].mxu0
      %590 = vmatprep.mubr.f32.mxu0 0.0
      %591 = vmatmul.mubr.f32.gmra.mrb[0].mxu0 %v240
      %v592 = vpop.f32.mrb[0].mxu0
      %v593 = vadd.f32 0.0, %v592
      %v594 = vpop.f32.mrb[0].mxu0
      %595 = vmatprep.mubr.f32.mxu0 0.0
      %596 = vmatmul.mubr.f32.gmra.mrb[0].mxu0 %v243
      %v597 = vpop.f32.mrb[0].mxu0
      %v598 = vadd.f32 0.0, %v597
      %v599 = vpop.f32.mrb[0].mxu0
      %600 = vdwg.mxu0
      %v601 = vmax.f32 %v563, %v573
      %v602 = vmax.f32 %v568, %v578
      %v603 = vmax.f32 %v583, %v593
      %v604 = vmax.f32 %v588, %v598
      %v605 = vmax.f32 %v601, %v603
      %v606 = vmax.f32 %v602, %v604
      %v607 = vadd.f32 %v605, %v359
      %v608 = vadd.f32 %v606, %v364
      %v609 = vmax.f32 %v607, 0.0
      %v610 = vmax.f32 %v608, 0.0
      %611 = vst.msk [vmem:[%s206 + $0x20] sm:$0xff] %vm370, %v609
      %612 = vst.msk [vmem:[%s206 + $0x28] sm:$0xff] %vm370, %v610
      %s613 = scalar_lea.vmem %s197, 48
      %v614 = vld [vmem:[%s613] sm:$0xff]
      %v615 = vld [vmem:[%s613 + $0x8] sm:$0xff]
      %616 = vmatprep.subr.mxu0 0.0
      %617 = vmatpush1.msra.mxu0 %v614
      %618 = vmatprep.subr.mxu0 0.0
      %619 = vmatpush1.msra.mxu0 %v615
      %620 = vmatprep.subr.mxu0 0.0
      %621 = vmatpush1.msra.mxu0 0.0
      %622 = vmatprep.subr.mxu0 0.0
      %623 = vmatpush1.msra.mxu0 0.0
      %624 = vmatprep.subr.mxu0 0.0
      %625 = vmatpush1.msra.mxu0 0.0
      %626 = vmatprep.subr.mxu0 0.0
      %627 = vmatpush1.msra.mxu0 0.0
      %628 = vmatprep.subr.mxu0 0.0
      %629 = vmatpush1.msra.mxu0 0.0
      %630 = vmatprep.subr.mxu0 0.0
      %631 = vmatpush1.msra.mxu0 0.0
      %632 = vmatprep.subr.mxu0 0.0
      %633 = vmatpush1.msra.mxu0 0.0
      %634 = vmatprep.subr.mxu0 0.0
      %635 = vmatpush1.msra.mxu0 0.0
      %636 = vmatprep.subr.mxu0 0.0
      %637 = vmatpush1.msra.mxu0 0.0
      %638 = vmatprep.subr.mxu0 0.0
      %639 = vmatpush1.msra.mxu0 0.0
      %640 = vmatprep.subr.mxu0 0.0
      %641 = vmatpush1.msra.mxu0 0.0
      %642 = vmatprep.subr.mxu0 0.0
      %643 = vmatpush1.msra.mxu0 0.0
      %644 = vmatprep.subr.mxu0 0.0
      %645 = vmatpush1.msra.mxu0 0.0
      %646 = vmatprep.subr.mxu0 0.0
      %647 = vmatpush1.msra.mxu0 0.0
      %648 = vmatprep.subr.mxu0 0.0
      %649 = vmatpush1.msra.mxu0 0.0
      %650 = vmatprep.subr.mxu0 0.0
      %651 = vmatpush1.msra.mxu0 0.0
      %652 = vmatprep.subr.mxu0 0.0
      %653 = vmatpush1.msra.mxu0 0.0
      %654 = vmatprep.subr.mxu0 0.0
      %655 = vmatpush1.msra.mxu0 0.0
      %656 = vmatprep.subr.mxu0 0.0
      %657 = vmatpush1.msra.mxu0 0.0
      %658 = vmatprep.subr.mxu0 0.0
      %659 = vmatpush1.msra.mxu0 0.0
      %660 = vmatprep.subr.mxu0 0.0
      %661 = vmatpush1.msra.mxu0 0.0
      %662 = vmatprep.subr.mxu0 0.0
      %663 = vmatpush1.msra.mxu0 0.0
      %664 = vmatprep.subr.mxu0 0.0
      %665 = vmatpush1.msra.mxu0 0.0
      %666 = vmatprep.subr.mxu0 0.0
      %667 = vmatpush1.msra.mxu0 0.0
      %668 = vmatprep.subr.mxu0 0.0
      %669 = vmatpush1.msra.mxu0 0.0
      %670 = vmatprep.subr.mxu0 0.0
      %671 = vmatpush1.msra.mxu0 0.0
      %672 = vmatprep.subr.mxu0 0.0
      %673 = vmatpush1.msra.mxu0 0.0
      %674 = vmatprep.subr.mxu0 0.0
      %675 = vmatpush1.msra.mxu0 0.0
      %676 = vmatprep.subr.mxu0 0.0
      %677 = vmatpush1.msra.mxu0 0.0
      %678 = vmatprep.subr.mxu0 0.0
      %679 = vmatpush1.msra.mxu0 0.0
      %680 = vmatprep.mubr.f32.mxu0 0.0
      %681 = vmatmul.mubr.f32.gmra.mrb[0].mxu0 %v222
      %v682 = vpop.f32.mrb[0].mxu0
      %v683 = vadd.f32 0.0, %v682
      %v684 = vpop.f32.mrb[0].mxu0
      %685 = vmatprep.mubr.f32.mxu0 0.0
      %686 = vmatmul.mubr.f32.gmra.mrb[0].mxu0 %v225
      %v687 = vpop.f32.mrb[0].mxu0
      %v688 = vadd.f32 0.0, %v687
      %v689 = vpop.f32.mrb[0].mxu0
      %690 = vmatprep.mubr.f32.mxu0 0.0
      %691 = vmatmul.mubr.f32.gmra.mrb[0].mxu0 %v228
      %v692 = vpop.f32.mrb[0].mxu0
      %v693 = vadd.f32 0.0, %v692
      %v694 = vpop.f32.mrb[0].mxu0
      %695 = vmatprep.mubr.f32.mxu0 0.0
      %696 = vmatmul.mubr.f32.gmra.mrb[0].mxu0 %v231
      %v697 = vpop.f32.mrb[0].mxu0
      %v698 = vadd.f32 0.0, %v697
      %v699 = vpop.f32.mrb[0].mxu0
      %700 = vmatprep.mubr.f32.mxu0 0.0
      %701 = vmatmul.mubr.f32.gmra.mrb[0].mxu0 %v234
      %v702 = vpop.f32.mrb[0].mxu0
      %v703 = vadd.f32 0.0, %v702
      %v704 = vpop.f32.mrb[0].mxu0
      %705 = vmatprep.mubr.f32.mxu0 0.0
      %706 = vmatmul.mubr.f32.gmra.mrb[0].mxu0 %v237
      %v707 = vpop.f32.mrb[0].mxu0
      %v708 = vadd.f32 0.0, %v707
      %v709 = vpop.f32.mrb[0].mxu0
      %710 = vmatprep.mubr.f32.mxu0 0.0
      %711 = vmatmul.mubr.f32.gmra.mrb[0].mxu0 %v240
      %v712 = vpop.f32.mrb[0].mxu0
      %v713 = vadd.f32 0.0, %v712
      %v714 = vpop.f32.mrb[0].mxu0
      %715 = vmatprep.mubr.f32.mxu0 0.0
      %716 = vmatmul.mubr.f32.gmra.mrb[0].mxu0 %v243
      %v717 = vpop.f32.mrb[0].mxu0
      %v718 = vadd.f32 0.0, %v717
      %v719 = vpop.f32.mrb[0].mxu0
      %720 = vdwg.mxu0
      %v721 = vmax.f32 %v683, %v693
      %v722 = vmax.f32 %v688, %v698
      %v723 = vmax.f32 %v703, %v713
      %v724 = vmax.f32 %v708, %v718
      %v725 = vmax.f32 %v721, %v723
      %v726 = vmax.f32 %v722, %v724
      %v727 = vadd.f32 %v725, %v359
      %v728 = vadd.f32 %v726, %v364
      %v729 = vmax.f32 %v727, 0.0
      %v730 = vmax.f32 %v728, 0.0
      %731 = vst.msk [vmem:[%s206 + $0x30] sm:$0xff] %vm370, %v729
      %732 = vst.msk [vmem:[%s206 + $0x38] sm:$0xff] %vm370, %v730
      %s733 = scalar_lea.vmem %s197, 64
      %v734 = vld [vmem:[%s733] sm:$0xff]
      %v735 = vld [vmem:[%s733 + $0x8] sm:$0xff]
      %736 = vmatprep.subr.mxu0 0.0
      %737 = vmatpush1.msra.mxu0 %v734
      %738 = vmatprep.subr.mxu0 0.0
      %739 = vmatpush1.msra.mxu0 %v735
      %740 = vmatprep.subr.mxu0 0.0
      %741 = vmatpush1.msra.mxu0 0.0
      %742 = vmatprep.subr.mxu0 0.0
      %743 = vmatpush1.msra.mxu0 0.0
      %744 = vmatprep.subr.mxu0 0.0
      %745 = vmatpush1.msra.mxu0 0.0
      %746 = vmatprep.subr.mxu0 0.0
      %747 = vmatpush1.msra.mxu0 0.0
      %748 = vmatprep.subr.mxu0 0.0
      %749 = vmatpush1.msra.mxu0 0.0
      %750 = vmatprep.subr.mxu0 0.0
      %751 = vmatpush1.msra.mxu0 0.0
      %752 = vmatprep.subr.mxu0 0.0
      %753 = vmatpush1.msra.mxu0 0.0
      %754 = vmatprep.subr.mxu0 0.0
      %755 = vmatpush1.msra.mxu0 0.0
      %756 = vmatprep.subr.mxu0 0.0
      %757 = vmatpush1.msra.mxu0 0.0
      %758 = vmatprep.subr.mxu0 0.0
      %759 = vmatpush1.msra.mxu0 0.0
      %760 = vmatprep.subr.mxu0 0.0
      %761 = vmatpush1.msra.mxu0 0.0
      %762 = vmatprep.subr.mxu0 0.0
      %763 = vmatpush1.msra.mxu0 0.0
      %764 = vmatprep.subr.mxu0 0.0
      %765 = vmatpush1.msra.mxu0 0.0
      %766 = vmatprep.subr.mxu0 0.0
      %767 = vmatpush1.msra.mxu0 0.0
      %768 = vmatprep.subr.mxu0 0.0
      %769 = vmatpush1.msra.mxu0 0.0
      %770 = vmatprep.subr.mxu0 0.0
      %771 = vmatpush1.msra.mxu0 0.0
      %772 = vmatprep.subr.mxu0 0.0
      %773 = vmatpush1.msra.mxu0 0.0
      %774 = vmatprep.subr.mxu0 0.0
      %775 = vmatpush1.msra.mxu0 0.0
      %776 = vmatprep.subr.mxu0 0.0
      %777 = vmatpush1.msra.mxu0 0.0
      %778 = vmatprep.subr.mxu0 0.0
      %779 = vmatpush1.msra.mxu0 0.0
      %780 = vmatprep.subr.mxu0 0.0
      %781 = vmatpush1.msra.mxu0 0.0
      %782 = vmatprep.subr.mxu0 0.0
      %783 = vmatpush1.msra.mxu0 0.0
      %784 = vmatprep.subr.mxu0 0.0
      %785 = vmatpush1.msra.mxu0 0.0
      %786 = vmatprep.subr.mxu0 0.0
      %787 = vmatpush1.msra.mxu0 0.0
      %788 = vmatprep.subr.mxu0 0.0
      %789 = vmatpush1.msra.mxu0 0.0
      %790 = vmatprep.subr.mxu0 0.0
      %791 = vmatpush1.msra.mxu0 0.0
      %792 = vmatprep.subr.mxu0 0.0
      %793 = vmatpush1.msra.mxu0 0.0
      %794 = vmatprep.subr.mxu0 0.0
      %795 = vmatpush1.msra.mxu0 0.0
      %796 = vmatprep.subr.mxu0 0.0
      %797 = vmatpush1.msra.mxu0 0.0
      %798 = vmatprep.subr.mxu0 0.0
      %799 = vmatpush1.msra.mxu0 0.0
      %800 = vmatprep.mubr.f32.mxu0 0.0
      %801 = vmatmul.mubr.f32.gmra.mrb[0].mxu0 %v222
      %v802 = vpop.f32.mrb[0].mxu0
      %v803 = vadd.f32 0.0, %v802
      %v804 = vpop.f32.mrb[0].mxu0
      %805 = vmatprep.mubr.f32.mxu0 0.0
      %806 = vmatmul.mubr.f32.gmra.mrb[0].mxu0 %v225
      %v807 = vpop.f32.mrb[0].mxu0
      %v808 = vadd.f32 0.0, %v807
      %v809 = vpop.f32.mrb[0].mxu0
      %810 = vmatprep.mubr.f32.mxu0 0.0
      %811 = vmatmul.mubr.f32.gmra.mrb[0].mxu0 %v228
      %v812 = vpop.f32.mrb[0].mxu0
      %v813 = vadd.f32 0.0, %v812
      %v814 = vpop.f32.mrb[0].mxu0
      %815 = vmatprep.mubr.f32.mxu0 0.0
      %816 = vmatmul.mubr.f32.gmra.mrb[0].mxu0 %v231
      %v817 = vpop.f32.mrb[0].mxu0
      %v818 = vadd.f32 0.0, %v817
      %v819 = vpop.f32.mrb[0].mxu0
      %820 = vmatprep.mubr.f32.mxu0 0.0
      %821 = vmatmul.mubr.f32.gmra.mrb[0].mxu0 %v234
      %v822 = vpop.f32.mrb[0].mxu0
      %v823 = vadd.f32 0.0, %v822
      %v824 = vpop.f32.mrb[0].mxu0
      %825 = vmatprep.mubr.f32.mxu0 0.0
      %826 = vmatmul.mubr.f32.gmra.mrb[0].mxu0 %v237
      %v827 = vpop.f32.mrb[0].mxu0
      %v828 = vadd.f32 0.0, %v827
      %v829 = vpop.f32.mrb[0].mxu0
      %830 = vmatprep.mubr.f32.mxu0 0.0
      %831 = vmatmul.mubr.f32.gmra.mrb[0].mxu0 %v240
      %v832 = vpop.f32.mrb[0].mxu0
      %v833 = vadd.f32 0.0, %v832
      %v834 = vpop.f32.mrb[0].mxu0
      %835 = vmatprep.mubr.f32.mxu0 0.0
      %836 = vmatmul.mubr.f32.gmra.mrb[0].mxu0 %v243
      %v837 = vpop.f32.mrb[0].mxu0
      %v838 = vadd.f32 0.0, %v837
      %v839 = vpop.f32.mrb[0].mxu0
      %840 = vdwg.mxu0
      %v841 = vmax.f32 %v803, %v813
      %v842 = vmax.f32 %v808, %v818
      %v843 = vmax.f32 %v823, %v833
      %v844 = vmax.f32 %v828, %v838
      %v845 = vmax.f32 %v841, %v843
      %v846 = vmax.f32 %v842, %v844
      %v847 = vadd.f32 %v845, %v359
      %v848 = vadd.f32 %v846, %v364
      %v849 = vmax.f32 %v847, 0.0
      %v850 = vmax.f32 %v848, 0.0
      %851 = vst.msk [vmem:[%s206 + $0x40] sm:$0xff] %vm370, %v849
      %852 = vst.msk [vmem:[%s206 + $0x48] sm:$0xff] %vm370, %v850
      %s853 = scalar_lea.vmem %s197, 80
      %v854 = vld [vmem:[%s853] sm:$0xff]
      %v855 = vld [vmem:[%s853 + $0x8] sm:$0xff]
      %856 = vmatprep.subr.mxu0 0.0
      %857 = vmatpush1.msra.mxu0 %v854
      %858 = vmatprep.subr.mxu0 0.0
      %859 = vmatpush1.msra.mxu0 %v855
      %860 = vmatprep.subr.mxu0 0.0
      %861 = vmatpush1.msra.mxu0 0.0
      %862 = vmatprep.subr.mxu0 0.0
      %863 = vmatpush1.msra.mxu0 0.0
      %864 = vmatprep.subr.mxu0 0.0
      %865 = vmatpush1.msra.mxu0 0.0
      %866 = vmatprep.subr.mxu0 0.0
      %867 = vmatpush1.msra.mxu0 0.0
      %868 = vmatprep.subr.mxu0 0.0
      %869 = vmatpush1.msra.mxu0 0.0
      %870 = vmatprep.subr.mxu0 0.0
      %871 = vmatpush1.msra.mxu0 0.0
      %872 = vmatprep.subr.mxu0 0.0
      %873 = vmatpush1.msra.mxu0 0.0
      %874 = vmatprep.subr.mxu0 0.0
      %875 = vmatpush1.msra.mxu0 0.0
      %876 = vmatprep.subr.mxu0 0.0
      %877 = vmatpush1.msra.mxu0 0.0
      %878 = vmatprep.subr.mxu0 0.0
      %879 = vmatpush1.msra.mxu0 0.0
      %880 = vmatprep.subr.mxu0 0.0
      %881 = vmatpush1.msra.mxu0 0.0
      %882 = vmatprep.subr.mxu0 0.0
      %883 = vmatpush1.msra.mxu0 0.0
      %884 = vmatprep.subr.mxu0 0.0
      %885 = vmatpush1.msra.mxu0 0.0
      %886 = vmatprep.subr.mxu0 0.0
      %887 = vmatpush1.msra.mxu0 0.0
      %888 = vmatprep.subr.mxu0 0.0
      %889 = vmatpush1.msra.mxu0 0.0
      %890 = vmatprep.subr.mxu0 0.0
      %891 = vmatpush1.msra.mxu0 0.0
      %892 = vmatprep.subr.mxu0 0.0
      %893 = vmatpush1.msra.mxu0 0.0
      %894 = vmatprep.subr.mxu0 0.0
      %895 = vmatpush1.msra.mxu0 0.0
      %896 = vmatprep.subr.mxu0 0.0
      %897 = vmatpush1.msra.mxu0 0.0
      %898 = vmatprep.subr.mxu0 0.0
      %899 = vmatpush1.msra.mxu0 0.0
      %900 = vmatprep.subr.mxu0 0.0
      %901 = vmatpush1.msra.mxu0 0.0
      %902 = vmatprep.subr.mxu0 0.0
      %903 = vmatpush1.msra.mxu0 0.0
      %904 = vmatprep.subr.mxu0 0.0
      %905 = vmatpush1.msra.mxu0 0.0
      %906 = vmatprep.subr.mxu0 0.0
      %907 = vmatpush1.msra.mxu0 0.0
      %908 = vmatprep.subr.mxu0 0.0
      %909 = vmatpush1.msra.mxu0 0.0
      %910 = vmatprep.subr.mxu0 0.0
      %911 = vmatpush1.msra.mxu0 0.0
      %912 = vmatprep.subr.mxu0 0.0
      %913 = vmatpush1.msra.mxu0 0.0
      %914 = vmatprep.subr.mxu0 0.0
      %915 = vmatpush1.msra.mxu0 0.0
      %916 = vmatprep.subr.mxu0 0.0
      %917 = vmatpush1.msra.mxu0 0.0
      %918 = vmatprep.subr.mxu0 0.0
      %919 = vmatpush1.msra.mxu0 0.0
      %920 = vmatprep.mubr.f32.mxu0 0.0
      %921 = vmatmul.mubr.f32.gmra.mrb[0].mxu0 %v222
      %v922 = vpop.f32.mrb[0].mxu0
      %v923 = vadd.f32 0.0, %v922
      %v924 = vpop.f32.mrb[0].mxu0
      %925 = vmatprep.mubr.f32.mxu0 0.0
      %926 = vmatmul.mubr.f32.gmra.mrb[0].mxu0 %v225
      %v927 = vpop.f32.mrb[0].mxu0
      %v928 = vadd.f32 0.0, %v927
      %v929 = vpop.f32.mrb[0].mxu0
      %930 = vmatprep.mubr.f32.mxu0 0.0
      %931 = vmatmul.mubr.f32.gmra.mrb[0].mxu0 %v228
      %v932 = vpop.f32.mrb[0].mxu0
      %v933 = vadd.f32 0.0, %v932
      %v934 = vpop.f32.mrb[0].mxu0
      %935 = vmatprep.mubr.f32.mxu0 0.0
      %936 = vmatmul.mubr.f32.gmra.mrb[0].mxu0 %v231
      %v937 = vpop.f32.mrb[0].mxu0
      %v938 = vadd.f32 0.0, %v937
      %v939 = vpop.f32.mrb[0].mxu0
      %940 = vmatprep.mubr.f32.mxu0 0.0
      %941 = vmatmul.mubr.f32.gmra.mrb[0].mxu0 %v234
      %v942 = vpop.f32.mrb[0].mxu0
      %v943 = vadd.f32 0.0, %v942
      %v944 = vpop.f32.mrb[0].mxu0
      %945 = vmatprep.mubr.f32.mxu0 0.0
      %946 = vmatmul.mubr.f32.gmra.mrb[0].mxu0 %v237
      %v947 = vpop.f32.mrb[0].mxu0
      %v948 = vadd.f32 0.0, %v947
      %v949 = vpop.f32.mrb[0].mxu0
      %950 = vmatprep.mubr.f32.mxu0 0.0
      %951 = vmatmul.mubr.f32.gmra.mrb[0].mxu0 %v240
      %v952 = vpop.f32.mrb[0].mxu0
      %v953 = vadd.f32 0.0, %v952
      %v954 = vpop.f32.mrb[0].mxu0
      %955 = vmatprep.mubr.f32.mxu0 0.0
      %956 = vmatmul.mubr.f32.gmra.mrb[0].mxu0 %v243
      %v957 = vpop.f32.mrb[0].mxu0
      %v958 = vadd.f32 0.0, %v957
      %v959 = vpop.f32.mrb[0].mxu0
      %960 = vdwg.mxu0
      %v961 = vmax.f32 %v923, %v933
      %v962 = vmax.f32 %v928, %v938
      %v963 = vmax.f32 %v943, %v953
      %v964 = vmax.f32 %v948, %v958
      %v965 = vmax.f32 %v961, %v963
      %v966 = vmax.f32 %v962, %v964
      %v967 = vadd.f32 %v965, %v359
      %v968 = vadd.f32 %v966, %v364
      %v969 = vmax.f32 %v967, 0.0
      %v970 = vmax.f32 %v968, 0.0
      %971 = vst.msk [vmem:[%s206 + $0x50] sm:$0xff] %vm370, %v969
      %972 = vst.msk [vmem:[%s206 + $0x58] sm:$0xff] %vm370, %v970
      %s973 = scalar_lea.vmem %s197, 96
      %v974 = vld [vmem:[%s973] sm:$0xff]
      %v975 = vld [vmem:[%s973 + $0x8] sm:$0xff]
      %976 = vmatprep.subr.mxu0 0.0
      %977 = vmatpush1.msra.mxu0 %v974
      %978 = vmatprep.subr.mxu0 0.0
      %979 = vmatpush1.msra.mxu0 %v975
      %980 = vmatprep.subr.mxu0 0.0
      %981 = vmatpush1.msra.mxu0 0.0
      %982 = vmatprep.subr.mxu0 0.0
      %983 = vmatpush1.msra.mxu0 0.0
      %984 = vmatprep.subr.mxu0 0.0
      %985 = vmatpush1.msra.mxu0 0.0
      %986 = vmatprep.subr.mxu0 0.0
      %987 = vmatpush1.msra.mxu0 0.0
      %988 = vmatprep.subr.mxu0 0.0
      %989 = vmatpush1.msra.mxu0 0.0
      %990 = vmatprep.subr.mxu0 0.0
      %991 = vmatpush1.msra.mxu0 0.0
      %992 = vmatprep.subr.mxu0 0.0
      %993 = vmatpush1.msra.mxu0 0.0
      %994 = vmatprep.subr.mxu0 0.0
      %995 = vmatpush1.msra.mxu0 0.0
      %996 = vmatprep.subr.mxu0 0.0
      %997 = vmatpush1.msra.mxu0 0.0
      %998 = vmatprep.subr.mxu0 0.0
      %999 = vmatpush1.msra.mxu0 0.0
      %1000 = vmatprep.subr.mxu0 0.0
      %1001 = vmatpush1.msra.mxu0 0.0
      %1002 = vmatprep.subr.mxu0 0.0
      %1003 = vmatpush1.msra.mxu0 0.0
      %1004 = vmatprep.subr.mxu0 0.0
      %1005 = vmatpush1.msra.mxu0 0.0
      %1006 = vmatprep.subr.mxu0 0.0
      %1007 = vmatpush1.msra.mxu0 0.0
      %1008 = vmatprep.subr.mxu0 0.0
      %1009 = vmatpush1.msra.mxu0 0.0
      %1010 = vmatprep.subr.mxu0 0.0
      %1011 = vmatpush1.msra.mxu0 0.0
      %1012 = vmatprep.subr.mxu0 0.0
      %1013 = vmatpush1.msra.mxu0 0.0
      %1014 = vmatprep.subr.mxu0 0.0
      %1015 = vmatpush1.msra.mxu0 0.0
      %1016 = vmatprep.subr.mxu0 0.0
      %1017 = vmatpush1.msra.mxu0 0.0
      %1018 = vmatprep.subr.mxu0 0.0
      %1019 = vmatpush1.msra.mxu0 0.0
      %1020 = vmatprep.subr.mxu0 0.0
      %1021 = vmatpush1.msra.mxu0 0.0
      %1022 = vmatprep.subr.mxu0 0.0
      %1023 = vmatpush1.msra.mxu0 0.0
      %1024 = vmatprep.subr.mxu0 0.0
      %1025 = vmatpush1.msra.mxu0 0.0
      %1026 = vmatprep.subr.mxu0 0.0
      %1027 = vmatpush1.msra.mxu0 0.0
      %1028 = vmatprep.subr.mxu0 0.0
      %1029 = vmatpush1.msra.mxu0 0.0
      %1030 = vmatprep.subr.mxu0 0.0
      %1031 = vmatpush1.msra.mxu0 0.0
      %1032 = vmatprep.subr.mxu0 0.0
      %1033 = vmatpush1.msra.mxu0 0.0
      %1034 = vmatprep.subr.mxu0 0.0
      %1035 = vmatpush1.msra.mxu0 0.0
      %1036 = vmatprep.subr.mxu0 0.0
      %1037 = vmatpush1.msra.mxu0 0.0
      %1038 = vmatprep.subr.mxu0 0.0
      %1039 = vmatpush1.msra.mxu0 0.0
      %1040 = vmatprep.mubr.f32.mxu0 0.0
      %1041 = vmatmul.mubr.f32.gmra.mrb[0].mxu0 %v222
      %v1042 = vpop.f32.mrb[0].mxu0
      %v1043 = vadd.f32 0.0, %v1042
      %v1044 = vpop.f32.mrb[0].mxu0
      %1045 = vmatprep.mubr.f32.mxu0 0.0
      %1046 = vmatmul.mubr.f32.gmra.mrb[0].mxu0 %v225
      %v1047 = vpop.f32.mrb[0].mxu0
      %v1048 = vadd.f32 0.0, %v1047
      %v1049 = vpop.f32.mrb[0].mxu0
      %1050 = vmatprep.mubr.f32.mxu0 0.0
      %1051 = vmatmul.mubr.f32.gmra.mrb[0].mxu0 %v228
      %v1052 = vpop.f32.mrb[0].mxu0
      %v1053 = vadd.f32 0.0, %v1052
      %v1054 = vpop.f32.mrb[0].mxu0
      %1055 = vmatprep.mubr.f32.mxu0 0.0
      %1056 = vmatmul.mubr.f32.gmra.mrb[0].mxu0 %v231
      %v1057 = vpop.f32.mrb[0].mxu0
      %v1058 = vadd.f32 0.0, %v1057
      %v1059 = vpop.f32.mrb[0].mxu0
      %1060 = vmatprep.mubr.f32.mxu0 0.0
      %1061 = vmatmul.mubr.f32.gmra.mrb[0].mxu0 %v234
      %v1062 = vpop.f32.mrb[0].mxu0
      %v1063 = vadd.f32 0.0, %v1062
      %v1064 = vpop.f32.mrb[0].mxu0
      %1065 = vmatprep.mubr.f32.mxu0 0.0
      %1066 = vmatmul.mubr.f32.gmra.mrb[0].mxu0 %v237
      %v1067 = vpop.f32.mrb[0].mxu0
      %v1068 = vadd.f32 0.0, %v1067
      %v1069 = vpop.f32.mrb[0].mxu0
      %1070 = vmatprep.mubr.f32.mxu0 0.0
      %1071 = vmatmul.mubr.f32.gmra.mrb[0].mxu0 %v240
      %v1072 = vpop.f32.mrb[0].mxu0
      %v1073 = vadd.f32 0.0, %v1072
      %v1074 = vpop.f32.mrb[0].mxu0
      %1075 = vmatprep.mubr.f32.mxu0 0.0
      %1076 = vmatmul.mubr.f32.gmra.mrb[0].mxu0 %v243
      %v1077 = vpop.f32.mrb[0].mxu0
      %v1078 = vadd.f32 0.0, %v1077
      %v1079 = vpop.f32.mrb[0].mxu0
      %1080 = vdwg.mxu0
      %v1081 = vmax.f32 %v1043, %v1053
      %v1082 = vmax.f32 %v1048, %v1058
      %v1083 = vmax.f32 %v1063, %v1073
      %v1084 = vmax.f32 %v1068, %v1078
      %v1085 = vmax.f32 %v1081, %v1083
      %v1086 = vmax.f32 %v1082, %v1084
      %v1087 = vadd.f32 %v1085, %v359
      %v1088 = vadd.f32 %v1086, %v364
      %v1089 = vmax.f32 %v1087, 0.0
      %v1090 = vmax.f32 %v1088, 0.0
      %1091 = vst.msk [vmem:[%s206 + $0x60] sm:$0xff] %vm370, %v1089
      %1092 = vst.msk [vmem:[%s206 + $0x68] sm:$0xff] %vm370, %v1090
      %s1093 = scalar_lea.vmem %s197, 112
      %v1094 = vld [vmem:[%s1093] sm:$0xff]
      %v1095 = vld [vmem:[%s1093 + $0x8] sm:$0xff]
      %1096 = vmatprep.subr.mxu0 0.0
      %1097 = vmatpush1.msra.mxu0 %v1094
      %1098 = vmatprep.subr.mxu0 0.0
      %1099 = vmatpush1.msra.mxu0 %v1095
      %1100 = vmatprep.subr.mxu0 0.0
      %1101 = vmatpush1.msra.mxu0 0.0
      %1102 = vmatprep.subr.mxu0 0.0
      %1103 = vmatpush1.msra.mxu0 0.0
      %1104 = vmatprep.subr.mxu0 0.0
      %1105 = vmatpush1.msra.mxu0 0.0
      %1106 = vmatprep.subr.mxu0 0.0
      %1107 = vmatpush1.msra.mxu0 0.0
      %1108 = vmatprep.subr.mxu0 0.0
      %1109 = vmatpush1.msra.mxu0 0.0
      %1110 = vmatprep.subr.mxu0 0.0
      %1111 = vmatpush1.msra.mxu0 0.0
      %1112 = vmatprep.subr.mxu0 0.0
      %1113 = vmatpush1.msra.mxu0 0.0
      %1114 = vmatprep.subr.mxu0 0.0
      %1115 = vmatpush1.msra.mxu0 0.0
      %1116 = vmatprep.subr.mxu0 0.0
      %1117 = vmatpush1.msra.mxu0 0.0
      %1118 = vmatprep.subr.mxu0 0.0
      %1119 = vmatpush1.msra.mxu0 0.0
      %1120 = vmatprep.subr.mxu0 0.0
      %1121 = vmatpush1.msra.mxu0 0.0
      %1122 = vmatprep.subr.mxu0 0.0
      %1123 = vmatpush1.msra.mxu0 0.0
      %1124 = vmatprep.subr.mxu0 0.0
      %1125 = vmatpush1.msra.mxu0 0.0
      %1126 = vmatprep.subr.mxu0 0.0
      %1127 = vmatpush1.msra.mxu0 0.0
      %1128 = vmatprep.subr.mxu0 0.0
      %1129 = vmatpush1.msra.mxu0 0.0
      %1130 = vmatprep.subr.mxu0 0.0
      %1131 = vmatpush1.msra.mxu0 0.0
      %1132 = vmatprep.subr.mxu0 0.0
      %1133 = vmatpush1.msra.mxu0 0.0
      %1134 = vmatprep.subr.mxu0 0.0
      %1135 = vmatpush1.msra.mxu0 0.0
      %1136 = vmatprep.subr.mxu0 0.0
      %1137 = vmatpush1.msra.mxu0 0.0
      %1138 = vmatprep.subr.mxu0 0.0
      %1139 = vmatpush1.msra.mxu0 0.0
      %1140 = vmatprep.subr.mxu0 0.0
      %1141 = vmatpush1.msra.mxu0 0.0
      %1142 = vmatprep.subr.mxu0 0.0
      %1143 = vmatpush1.msra.mxu0 0.0
      %1144 = vmatprep.subr.mxu0 0.0
      %1145 = vmatpush1.msra.mxu0 0.0
      %1146 = vmatprep.subr.mxu0 0.0
      %1147 = vmatpush1.msra.mxu0 0.0
      %1148 = vmatprep.subr.mxu0 0.0
      %1149 = vmatpush1.msra.mxu0 0.0
      %1150 = vmatprep.subr.mxu0 0.0
      %1151 = vmatpush1.msra.mxu0 0.0
      %1152 = vmatprep.subr.mxu0 0.0
      %1153 = vmatpush1.msra.mxu0 0.0
      %1154 = vmatprep.subr.mxu0 0.0
      %1155 = vmatpush1.msra.mxu0 0.0
      %1156 = vmatprep.subr.mxu0 0.0
      %1157 = vmatpush1.msra.mxu0 0.0
      %1158 = vmatprep.subr.mxu0 0.0
      %1159 = vmatpush1.msra.mxu0 0.0
      %1160 = vmatprep.mubr.f32.mxu0 0.0
      %1161 = vmatmul.mubr.f32.gmra.mrb[0].mxu0 %v222
      %v1162 = vpop.f32.mrb[0].mxu0
      %v1163 = vadd.f32 0.0, %v1162
      %v1164 = vpop.f32.mrb[0].mxu0
      %1165 = vmatprep.mubr.f32.mxu0 0.0
      %1166 = vmatmul.mubr.f32.gmra.mrb[0].mxu0 %v225
      %v1167 = vpop.f32.mrb[0].mxu0
      %v1168 = vadd.f32 0.0, %v1167
      %v1169 = vpop.f32.mrb[0].mxu0
      %1170 = vmatprep.mubr.f32.mxu0 0.0
      %1171 = vmatmul.mubr.f32.gmra.mrb[0].mxu0 %v228
      %v1172 = vpop.f32.mrb[0].mxu0
      %v1173 = vadd.f32 0.0, %v1172
      %v1174 = vpop.f32.mrb[0].mxu0
      %1175 = vmatprep.mubr.f32.mxu0 0.0
      %1176 = vmatmul.mubr.f32.gmra.mrb[0].mxu0 %v231
      %v1177 = vpop.f32.mrb[0].mxu0
      %v1178 = vadd.f32 0.0, %v1177
      %v1179 = vpop.f32.mrb[0].mxu0
      %1180 = vmatprep.mubr.f32.mxu0 0.0
      %1181 = vmatmul.mubr.f32.gmra.mrb[0].mxu0 %v234
      %v1182 = vpop.f32.mrb[0].mxu0
      %v1183 = vadd.f32 0.0, %v1182
      %v1184 = vpop.f32.mrb[0].mxu0
      %1185 = vmatprep.mubr.f32.mxu0 0.0
      %1186 = vmatmul.mubr.f32.gmra.mrb[0].mxu0 %v237
      %v1187 = vpop.f32.mrb[0].mxu0
      %v1188 = vadd.f32 0.0, %v1187
      %v1189 = vpop.f32.mrb[0].mxu0
      %1190 = vmatprep.mubr.f32.mxu0 0.0
      %1191 = vmatmul.mubr.f32.gmra.mrb[0].mxu0 %v240
      %v1192 = vpop.f32.mrb[0].mxu0
      %v1193 = vadd.f32 0.0, %v1192
      %v1194 = vpop.f32.mrb[0].mxu0
      %1195 = vmatprep.mubr.f32.mxu0 0.0
      %1196 = vmatmul.mubr.f32.gmra.mrb[0].mxu0 %v243
      %v1197 = vpop.f32.mrb[0].mxu0
      %v1198 = vadd.f32 0.0, %v1197
      %v1199 = vpop.f32.mrb[0].mxu0
      %1200 = vdwg.mxu0
      %v1201 = vmax.f32 %v1163, %v1173
      %v1202 = vmax.f32 %v1168, %v1178
      %v1203 = vmax.f32 %v1183, %v1193
      %v1204 = vmax.f32 %v1188, %v1198
      %v1205 = vmax.f32 %v1201, %v1203
      %v1206 = vmax.f32 %v1202, %v1204
      %v1207 = vadd.f32 %v1205, %v359
      %v1208 = vadd.f32 %v1206, %v364
      %v1209 = vmax.f32 %v1207, 0.0
      %v1210 = vmax.f32 %v1208, 0.0
      %1211 = vst.msk [vmem:[%s206 + $0x70] sm:$0xff] %vm370, %v1209
      %1212 = vst.msk [vmem:[%s206 + $0x78] sm:$0xff] %vm370, %v1210
      %s1213 = scalar_lea.vmem %s197, 128
      %v1214 = vld [vmem:[%s1213] sm:$0xff]
      %v1215 = vld [vmem:[%s1213 + $0x8] sm:$0xff]
      %1216 = vmatprep.subr.mxu0 0.0
      %1217 = vmatpush1.msra.mxu0 %v1214
      %1218 = vmatprep.subr.mxu0 0.0
      %1219 = vmatpush1.msra.mxu0 %v1215
      %1220 = vmatprep.subr.mxu0 0.0
      %1221 = vmatpush1.msra.mxu0 0.0
      %1222 = vmatprep.subr.mxu0 0.0
      %1223 = vmatpush1.msra.mxu0 0.0
      %1224 = vmatprep.subr.mxu0 0.0
      %1225 = vmatpush1.msra.mxu0 0.0
      %1226 = vmatprep.subr.mxu0 0.0
      %1227 = vmatpush1.msra.mxu0 0.0
      %1228 = vmatprep.subr.mxu0 0.0
      %1229 = vmatpush1.msra.mxu0 0.0
      %1230 = vmatprep.subr.mxu0 0.0
      %1231 = vmatpush1.msra.mxu0 0.0
      %1232 = vmatprep.subr.mxu0 0.0
      %1233 = vmatpush1.msra.mxu0 0.0
      %1234 = vmatprep.subr.mxu0 0.0
      %1235 = vmatpush1.msra.mxu0 0.0
      %1236 = vmatprep.subr.mxu0 0.0
      %1237 = vmatpush1.msra.mxu0 0.0
      %1238 = vmatprep.subr.mxu0 0.0
      %1239 = vmatpush1.msra.mxu0 0.0
      %1240 = vmatprep.subr.mxu0 0.0
      %1241 = vmatpush1.msra.mxu0 0.0
      %1242 = vmatprep.subr.mxu0 0.0
      %1243 = vmatpush1.msra.mxu0 0.0
      %1244 = vmatprep.subr.mxu0 0.0
      %1245 = vmatpush1.msra.mxu0 0.0
      %1246 = vmatprep.subr.mxu0 0.0
      %1247 = vmatpush1.msra.mxu0 0.0
      %1248 = vmatprep.subr.mxu0 0.0
      %1249 = vmatpush1.msra.mxu0 0.0
      %1250 = vmatprep.subr.mxu0 0.0
      %1251 = vmatpush1.msra.mxu0 0.0
      %1252 = vmatprep.subr.mxu0 0.0
      %1253 = vmatpush1.msra.mxu0 0.0
      %1254 = vmatprep.subr.mxu0 0.0
      %1255 = vmatpush1.msra.mxu0 0.0
      %1256 = vmatprep.subr.mxu0 0.0
      %1257 = vmatpush1.msra.mxu0 0.0
      %1258 = vmatprep.subr.mxu0 0.0
      %1259 = vmatpush1.msra.mxu0 0.0
      %1260 = vmatprep.subr.mxu0 0.0
      %1261 = vmatpush1.msra.mxu0 0.0
      %1262 = vmatprep.subr.mxu0 0.0
      %1263 = vmatpush1.msra.mxu0 0.0
      %1264 = vmatprep.subr.mxu0 0.0
      %1265 = vmatpush1.msra.mxu0 0.0
      %1266 = vmatprep.subr.mxu0 0.0
      %1267 = vmatpush1.msra.mxu0 0.0
      %1268 = vmatprep.subr.mxu0 0.0
      %1269 = vmatpush1.msra.mxu0 0.0
      %1270 = vmatprep.subr.mxu0 0.0
      %1271 = vmatpush1.msra.mxu0 0.0
      %1272 = vmatprep.subr.mxu0 0.0
      %1273 = vmatpush1.msra.mxu0 0.0
      %1274 = vmatprep.subr.mxu0 0.0
      %1275 = vmatpush1.msra.mxu0 0.0
      %1276 = vmatprep.subr.mxu0 0.0
      %1277 = vmatpush1.msra.mxu0 0.0
      %1278 = vmatprep.subr.mxu0 0.0
      %1279 = vmatpush1.msra.mxu0 0.0
      %1280 = vmatprep.mubr.f32.mxu0 0.0
      %1281 = vmatmul.mubr.f32.gmra.mrb[0].mxu0 %v222
      %v1282 = vpop.f32.mrb[0].mxu0
      %v1283 = vadd.f32 0.0, %v1282
      %v1284 = vpop.f32.mrb[0].mxu0
      %1285 = vmatprep.mubr.f32.mxu0 0.0
      %1286 = vmatmul.mubr.f32.gmra.mrb[0].mxu0 %v225
      %v1287 = vpop.f32.mrb[0].mxu0
      %v1288 = vadd.f32 0.0, %v1287
      %v1289 = vpop.f32.mrb[0].mxu0
      %1290 = vmatprep.mubr.f32.mxu0 0.0
      %1291 = vmatmul.mubr.f32.gmra.mrb[0].mxu0 %v228
      %v1292 = vpop.f32.mrb[0].mxu0
      %v1293 = vadd.f32 0.0, %v1292
      %v1294 = vpop.f32.mrb[0].mxu0
      %1295 = vmatprep.mubr.f32.mxu0 0.0
      %1296 = vmatmul.mubr.f32.gmra.mrb[0].mxu0 %v231
      %v1297 = vpop.f32.mrb[0].mxu0
      %v1298 = vadd.f32 0.0, %v1297
      %v1299 = vpop.f32.mrb[0].mxu0
      %1300 = vmatprep.mubr.f32.mxu0 0.0
      %1301 = vmatmul.mubr.f32.gmra.mrb[0].mxu0 %v234
      %v1302 = vpop.f32.mrb[0].mxu0
      %v1303 = vadd.f32 0.0, %v1302
      %v1304 = vpop.f32.mrb[0].mxu0
      %1305 = vmatprep.mubr.f32.mxu0 0.0
      %1306 = vmatmul.mubr.f32.gmra.mrb[0].mxu0 %v237
      %v1307 = vpop.f32.mrb[0].mxu0
      %v1308 = vadd.f32 0.0, %v1307
      %v1309 = vpop.f32.mrb[0].mxu0
      %1310 = vmatprep.mubr.f32.mxu0 0.0
      %1311 = vmatmul.mubr.f32.gmra.mrb[0].mxu0 %v240
      %v1312 = vpop.f32.mrb[0].mxu0
      %v1313 = vadd.f32 0.0, %v1312
      %v1314 = vpop.f32.mrb[0].mxu0
      %1315 = vmatprep.mubr.f32.mxu0 0.0
      %1316 = vmatmul.mubr.f32.gmra.mrb[0].mxu0 %v243
      %v1317 = vpop.f32.mrb[0].mxu0
      %v1318 = vadd.f32 0.0, %v1317
      %v1319 = vpop.f32.mrb[0].mxu0
      %1320 = vdwg.mxu0
      %v1321 = vmax.f32 %v1283, %v1293
      %v1322 = vmax.f32 %v1288, %v1298
      %v1323 = vmax.f32 %v1303, %v1313
      %v1324 = vmax.f32 %v1308, %v1318
      %v1325 = vmax.f32 %v1321, %v1323
      %v1326 = vmax.f32 %v1322, %v1324
      %v1327 = vadd.f32 %v1325, %v359
      %v1328 = vadd.f32 %v1326, %v364
      %v1329 = vmax.f32 %v1327, 0.0
      %v1330 = vmax.f32 %v1328, 0.0
      %1331 = vst.msk [vmem:[%s206 + $0x80] sm:$0xff] %vm370, %v1329
      %1332 = vst.msk [vmem:[%s206 + $0x88] sm:$0xff] %vm370, %v1330
      %s1333 = scalar_lea.vmem %s197, 144
      %v1334 = vld [vmem:[%s1333] sm:$0xff]
      %v1335 = vld [vmem:[%s1333 + $0x8] sm:$0xff]
      %1336 = vmatprep.subr.mxu0 0.0
      %1337 = vmatpush1.msra.mxu0 %v1334
      %1338 = vmatprep.subr.mxu0 0.0
      %1339 = vmatpush1.msra.mxu0 %v1335
      %1340 = vmatprep.subr.mxu0 0.0
      %1341 = vmatpush1.msra.mxu0 0.0
      %1342 = vmatprep.subr.mxu0 0.0
      %1343 = vmatpush1.msra.mxu0 0.0
      %1344 = vmatprep.subr.mxu0 0.0
      %1345 = vmatpush1.msra.mxu0 0.0
      %1346 = vmatprep.subr.mxu0 0.0
      %1347 = vmatpush1.msra.mxu0 0.0
      %1348 = vmatprep.subr.mxu0 0.0
      %1349 = vmatpush1.msra.mxu0 0.0
      %1350 = vmatprep.subr.mxu0 0.0
      %1351 = vmatpush1.msra.mxu0 0.0
      %1352 = vmatprep.subr.mxu0 0.0
      %1353 = vmatpush1.msra.mxu0 0.0
      %1354 = vmatprep.subr.mxu0 0.0
      %1355 = vmatpush1.msra.mxu0 0.0
      %1356 = vmatprep.subr.mxu0 0.0
      %1357 = vmatpush1.msra.mxu0 0.0
      %1358 = vmatprep.subr.mxu0 0.0
      %1359 = vmatpush1.msra.mxu0 0.0
      %1360 = vmatprep.subr.mxu0 0.0
      %1361 = vmatpush1.msra.mxu0 0.0
      %1362 = vmatprep.subr.mxu0 0.0
      %1363 = vmatpush1.msra.mxu0 0.0
      %1364 = vmatprep.subr.mxu0 0.0
      %1365 = vmatpush1.msra.mxu0 0.0
      %1366 = vmatprep.subr.mxu0 0.0
      %1367 = vmatpush1.msra.mxu0 0.0
      %1368 = vmatprep.subr.mxu0 0.0
      %1369 = vmatpush1.msra.mxu0 0.0
      %1370 = vmatprep.subr.mxu0 0.0
      %1371 = vmatpush1.msra.mxu0 0.0
      %1372 = vmatprep.subr.mxu0 0.0
      %1373 = vmatpush1.msra.mxu0 0.0
      %1374 = vmatprep.subr.mxu0 0.0
      %1375 = vmatpush1.msra.mxu0 0.0
      %1376 = vmatprep.subr.mxu0 0.0
      %1377 = vmatpush1.msra.mxu0 0.0
      %1378 = vmatprep.subr.mxu0 0.0
      %1379 = vmatpush1.msra.mxu0 0.0
      %1380 = vmatprep.subr.mxu0 0.0
      %1381 = vmatpush1.msra.mxu0 0.0
      %1382 = vmatprep.subr.mxu0 0.0
      %1383 = vmatpush1.msra.mxu0 0.0
      %1384 = vmatprep.subr.mxu0 0.0
      %1385 = vmatpush1.msra.mxu0 0.0
      %1386 = vmatprep.subr.mxu0 0.0
      %1387 = vmatpush1.msra.mxu0 0.0
      %1388 = vmatprep.subr.mxu0 0.0
      %1389 = vmatpush1.msra.mxu0 0.0
      %1390 = vmatprep.subr.mxu0 0.0
      %1391 = vmatpush1.msra.mxu0 0.0
      %1392 = vmatprep.subr.mxu0 0.0
      %1393 = vmatpush1.msra.mxu0 0.0
      %1394 = vmatprep.subr.mxu0 0.0
      %1395 = vmatpush1.msra.mxu0 0.0
      %1396 = vmatprep.subr.mxu0 0.0
      %1397 = vmatpush1.msra.mxu0 0.0
      %1398 = vmatprep.subr.mxu0 0.0
      %1399 = vmatpush1.msra.mxu0 0.0
      %1400 = vmatprep.mubr.f32.mxu0 0.0
      %1401 = vmatmul.mubr.f32.gmra.mrb[0].mxu0 %v222
      %v1402 = vpop.f32.mrb[0].mxu0
      %v1403 = vadd.f32 0.0, %v1402
      %v1404 = vpop.f32.mrb[0].mxu0
      %1405 = vmatprep.mubr.f32.mxu0 0.0
      %1406 = vmatmul.mubr.f32.gmra.mrb[0].mxu0 %v225
      %v1407 = vpop.f32.mrb[0].mxu0
      %v1408 = vadd.f32 0.0, %v1407
      %v1409 = vpop.f32.mrb[0].mxu0
      %1410 = vmatprep.mubr.f32.mxu0 0.0
      %1411 = vmatmul.mubr.f32.gmra.mrb[0].mxu0 %v228
      %v1412 = vpop.f32.mrb[0].mxu0
      %v1413 = vadd.f32 0.0, %v1412
      %v1414 = vpop.f32.mrb[0].mxu0
      %1415 = vmatprep.mubr.f32.mxu0 0.0
      %1416 = vmatmul.mubr.f32.gmra.mrb[0].mxu0 %v231
      %v1417 = vpop.f32.mrb[0].mxu0
      %v1418 = vadd.f32 0.0, %v1417
      %v1419 = vpop.f32.mrb[0].mxu0
      %1420 = vmatprep.mubr.f32.mxu0 0.0
      %1421 = vmatmul.mubr.f32.gmra.mrb[0].mxu0 %v234
      %v1422 = vpop.f32.mrb[0].mxu0
      %v1423 = vadd.f32 0.0, %v1422
      %v1424 = vpop.f32.mrb[0].mxu0
      %1425 = vmatprep.mubr.f32.mxu0 0.0
      %1426 = vmatmul.mubr.f32.gmra.mrb[0].mxu0 %v237
      %v1427 = vpop.f32.mrb[0].mxu0
      %v1428 = vadd.f32 0.0, %v1427
      %v1429 = vpop.f32.mrb[0].mxu0
      %1430 = vmatprep.mubr.f32.mxu0 0.0
      %1431 = vmatmul.mubr.f32.gmra.mrb[0].mxu0 %v240
      %v1432 = vpop.f32.mrb[0].mxu0
      %v1433 = vadd.f32 0.0, %v1432
      %v1434 = vpop.f32.mrb[0].mxu0
      %1435 = vmatprep.mubr.f32.mxu0 0.0
      %1436 = vmatmul.mubr.f32.gmra.mrb[0].mxu0 %v243
      %v1437 = vpop.f32.mrb[0].mxu0
      %v1438 = vadd.f32 0.0, %v1437
      %v1439 = vpop.f32.mrb[0].mxu0
      %1440 = vdwg.mxu0
      %v1441 = vmax.f32 %v1403, %v1413
      %v1442 = vmax.f32 %v1408, %v1418
      %v1443 = vmax.f32 %v1423, %v1433
      %v1444 = vmax.f32 %v1428, %v1438
      %v1445 = vmax.f32 %v1441, %v1443
      %v1446 = vmax.f32 %v1442, %v1444
      %v1447 = vadd.f32 %v1445, %v359
      %v1448 = vadd.f32 %v1446, %v364
      %v1449 = vmax.f32 %v1447, 0.0
      %v1450 = vmax.f32 %v1448, 0.0
      %1451 = vst.msk [vmem:[%s206 + $0x90] sm:$0xff] %vm370, %v1449
      %1452 = vst.msk [vmem:[%s206 + $0x98] sm:$0xff] %vm370, %v1450
      %s1453 = scalar_lea.vmem %s197, 160
      %v1454 = vld [vmem:[%s1453] sm:$0xff]
      %v1455 = vld [vmem:[%s1453 + $0x8] sm:$0xff]
      %1456 = vmatprep.subr.mxu0 0.0
      %1457 = vmatpush1.msra.mxu0 %v1454
      %1458 = vmatprep.subr.mxu0 0.0
      %1459 = vmatpush1.msra.mxu0 %v1455
      %1460 = vmatprep.subr.mxu0 0.0
      %1461 = vmatpush1.msra.mxu0 0.0
      %1462 = vmatprep.subr.mxu0 0.0
      %1463 = vmatpush1.msra.mxu0 0.0
      %1464 = vmatprep.subr.mxu0 0.0
      %1465 = vmatpush1.msra.mxu0 0.0
      %1466 = vmatprep.subr.mxu0 0.0
      %1467 = vmatpush1.msra.mxu0 0.0
      %1468 = vmatprep.subr.mxu0 0.0
      %1469 = vmatpush1.msra.mxu0 0.0
      %1470 = vmatprep.subr.mxu0 0.0
      %1471 = vmatpush1.msra.mxu0 0.0
      %1472 = vmatprep.subr.mxu0 0.0
      %1473 = vmatpush1.msra.mxu0 0.0
      %1474 = vmatprep.subr.mxu0 0.0
      %1475 = vmatpush1.msra.mxu0 0.0
      %1476 = vmatprep.subr.mxu0 0.0
      %1477 = vmatpush1.msra.mxu0 0.0
      %1478 = vmatprep.subr.mxu0 0.0
      %1479 = vmatpush1.msra.mxu0 0.0
      %1480 = vmatprep.subr.mxu0 0.0
      %1481 = vmatpush1.msra.mxu0 0.0
      %1482 = vmatprep.subr.mxu0 0.0
      %1483 = vmatpush1.msra.mxu0 0.0
      %1484 = vmatprep.subr.mxu0 0.0
      %1485 = vmatpush1.msra.mxu0 0.0
      %1486 = vmatprep.subr.mxu0 0.0
      %1487 = vmatpush1.msra.mxu0 0.0
      %1488 = vmatprep.subr.mxu0 0.0
      %1489 = vmatpush1.msra.mxu0 0.0
      %1490 = vmatprep.subr.mxu0 0.0
      %1491 = vmatpush1.msra.mxu0 0.0
      %1492 = vmatprep.subr.mxu0 0.0
      %1493 = vmatpush1.msra.mxu0 0.0
      %1494 = vmatprep.subr.mxu0 0.0
      %1495 = vmatpush1.msra.mxu0 0.0
      %1496 = vmatprep.subr.mxu0 0.0
      %1497 = vmatpush1.msra.mxu0 0.0
      %1498 = vmatprep.subr.mxu0 0.0
      %1499 = vmatpush1.msra.mxu0 0.0
      %1500 = vmatprep.subr.mxu0 0.0
      %1501 = vmatpush1.msra.mxu0 0.0
      %1502 = vmatprep.subr.mxu0 0.0
      %1503 = vmatpush1.msra.mxu0 0.0
      %1504 = vmatprep.subr.mxu0 0.0
      %1505 = vmatpush1.msra.mxu0 0.0
      %1506 = vmatprep.subr.mxu0 0.0
      %1507 = vmatpush1.msra.mxu0 0.0
      %1508 = vmatprep.subr.mxu0 0.0
      %1509 = vmatpush1.msra.mxu0 0.0
      %1510 = vmatprep.subr.mxu0 0.0
      %1511 = vmatpush1.msra.mxu0 0.0
      %1512 = vmatprep.subr.mxu0 0.0
      %1513 = vmatpush1.msra.mxu0 0.0
      %1514 = vmatprep.subr.mxu0 0.0
      %1515 = vmatpush1.msra.mxu0 0.0
      %1516 = vmatprep.subr.mxu0 0.0
      %1517 = vmatpush1.msra.mxu0 0.0
      %1518 = vmatprep.subr.mxu0 0.0
      %1519 = vmatpush1.msra.mxu0 0.0
      %1520 = vmatprep.mubr.f32.mxu0 0.0
      %1521 = vmatmul.mubr.f32.gmra.mrb[0].mxu0 %v222
      %v1522 = vpop.f32.mrb[0].mxu0
      %v1523 = vadd.f32 0.0, %v1522
      %v1524 = vpop.f32.mrb[0].mxu0
      %1525 = vmatprep.mubr.f32.mxu0 0.0
      %1526 = vmatmul.mubr.f32.gmra.mrb[0].mxu0 %v225
      %v1527 = vpop.f32.mrb[0].mxu0
      %v1528 = vadd.f32 0.0, %v1527
      %v1529 = vpop.f32.mrb[0].mxu0
      %1530 = vmatprep.mubr.f32.mxu0 0.0
      %1531 = vmatmul.mubr.f32.gmra.mrb[0].mxu0 %v228
      %v1532 = vpop.f32.mrb[0].mxu0
      %v1533 = vadd.f32 0.0, %v1532
      %v1534 = vpop.f32.mrb[0].mxu0
      %1535 = vmatprep.mubr.f32.mxu0 0.0
      %1536 = vmatmul.mubr.f32.gmra.mrb[0].mxu0 %v231
      %v1537 = vpop.f32.mrb[0].mxu0
      %v1538 = vadd.f32 0.0, %v1537
      %v1539 = vpop.f32.mrb[0].mxu0
      %1540 = vmatprep.mubr.f32.mxu0 0.0
      %1541 = vmatmul.mubr.f32.gmra.mrb[0].mxu0 %v234
      %v1542 = vpop.f32.mrb[0].mxu0
      %v1543 = vadd.f32 0.0, %v1542
      %v1544 = vpop.f32.mrb[0].mxu0
      %1545 = vmatprep.mubr.f32.mxu0 0.0
      %1546 = vmatmul.mubr.f32.gmra.mrb[0].mxu0 %v237
      %v1547 = vpop.f32.mrb[0].mxu0
      %v1548 = vadd.f32 0.0, %v1547
      %v1549 = vpop.f32.mrb[0].mxu0
      %1550 = vmatprep.mubr.f32.mxu0 0.0
      %1551 = vmatmul.mubr.f32.gmra.mrb[0].mxu0 %v240
      %v1552 = vpop.f32.mrb[0].mxu0
      %v1553 = vadd.f32 0.0, %v1552
      %v1554 = vpop.f32.mrb[0].mxu0
      %1555 = vmatprep.mubr.f32.mxu0 0.0
      %1556 = vmatmul.mubr.f32.gmra.mrb[0].mxu0 %v243
      %v1557 = vpop.f32.mrb[0].mxu0
      %v1558 = vadd.f32 0.0, %v1557
      %v1559 = vpop.f32.mrb[0].mxu0
      %1560 = vdwg.mxu0
      %v1561 = vmax.f32 %v1523, %v1533
      %v1562 = vmax.f32 %v1528, %v1538
      %v1563 = vmax.f32 %v1543, %v1553
      %v1564 = vmax.f32 %v1548, %v1558
      %v1565 = vmax.f32 %v1561, %v1563
      %v1566 = vmax.f32 %v1562, %v1564
      %v1567 = vadd.f32 %v1565, %v359
      %v1568 = vadd.f32 %v1566, %v364
      %v1569 = vmax.f32 %v1567, 0.0
      %v1570 = vmax.f32 %v1568, 0.0
      %1571 = vst.msk [vmem:[%s206 + $0xa0] sm:$0xff] %vm370, %v1569
      %1572 = vst.msk [vmem:[%s206 + $0xa8] sm:$0xff] %vm370, %v1570
      %s1573 = scalar_lea.vmem %s197, 176
      %v1574 = vld [vmem:[%s1573] sm:$0xff]
      %v1575 = vld [vmem:[%s1573 + $0x8] sm:$0xff]
      %1576 = vmatprep.subr.mxu0 0.0
      %1577 = vmatpush1.msra.mxu0 %v1574
      %1578 = vmatprep.subr.mxu0 0.0
      %1579 = vmatpush1.msra.mxu0 %v1575
      %1580 = vmatprep.subr.mxu0 0.0
      %1581 = vmatpush1.msra.mxu0 0.0
      %1582 = vmatprep.subr.mxu0 0.0
      %1583 = vmatpush1.msra.mxu0 0.0
      %1584 = vmatprep.subr.mxu0 0.0
      %1585 = vmatpush1.msra.mxu0 0.0
      %1586 = vmatprep.subr.mxu0 0.0
      %1587 = vmatpush1.msra.mxu0 0.0
      %1588 = vmatprep.subr.mxu0 0.0
      %1589 = vmatpush1.msra.mxu0 0.0
      %1590 = vmatprep.subr.mxu0 0.0
      %1591 = vmatpush1.msra.mxu0 0.0
      %1592 = vmatprep.subr.mxu0 0.0
      %1593 = vmatpush1.msra.mxu0 0.0
      %1594 = vmatprep.subr.mxu0 0.0
      %1595 = vmatpush1.msra.mxu0 0.0
      %1596 = vmatprep.subr.mxu0 0.0
      %1597 = vmatpush1.msra.mxu0 0.0
      %1598 = vmatprep.subr.mxu0 0.0
      %1599 = vmatpush1.msra.mxu0 0.0
      %1600 = vmatprep.subr.mxu0 0.0
      %1601 = vmatpush1.msra.mxu0 0.0
      %1602 = vmatprep.subr.mxu0 0.0
      %1603 = vmatpush1.msra.mxu0 0.0
      %1604 = vmatprep.subr.mxu0 0.0
      %1605 = vmatpush1.msra.mxu0 0.0
      %1606 = vmatprep.subr.mxu0 0.0
      %1607 = vmatpush1.msra.mxu0 0.0
      %1608 = vmatprep.subr.mxu0 0.0
      %1609 = vmatpush1.msra.mxu0 0.0
      %1610 = vmatprep.subr.mxu0 0.0
      %1611 = vmatpush1.msra.mxu0 0.0
      %1612 = vmatprep.subr.mxu0 0.0
      %1613 = vmatpush1.msra.mxu0 0.0
      %1614 = vmatprep.subr.mxu0 0.0
      %1615 = vmatpush1.msra.mxu0 0.0
      %1616 = vmatprep.subr.mxu0 0.0
      %1617 = vmatpush1.msra.mxu0 0.0
      %1618 = vmatprep.subr.mxu0 0.0
      %1619 = vmatpush1.msra.mxu0 0.0
      %1620 = vmatprep.subr.mxu0 0.0
      %1621 = vmatpush1.msra.mxu0 0.0
      %1622 = vmatprep.subr.mxu0 0.0
      %1623 = vmatpush1.msra.mxu0 0.0
      %1624 = vmatprep.subr.mxu0 0.0
      %1625 = vmatpush1.msra.mxu0 0.0
      %1626 = vmatprep.subr.mxu0 0.0
      %1627 = vmatpush1.msra.mxu0 0.0
      %1628 = vmatprep.subr.mxu0 0.0
      %1629 = vmatpush1.msra.mxu0 0.0
      %1630 = vmatprep.subr.mxu0 0.0
      %1631 = vmatpush1.msra.mxu0 0.0
      %1632 = vmatprep.subr.mxu0 0.0
      %1633 = vmatpush1.msra.mxu0 0.0
      %1634 = vmatprep.subr.mxu0 0.0
      %1635 = vmatpush1.msra.mxu0 0.0
      %1636 = vmatprep.subr.mxu0 0.0
      %1637 = vmatpush1.msra.mxu0 0.0
      %1638 = vmatprep.subr.mxu0 0.0
      %1639 = vmatpush1.msra.mxu0 0.0
      %1640 = vmatprep.mubr.f32.mxu0 0.0
      %1641 = vmatmul.mubr.f32.gmra.mrb[0].mxu0 %v222
      %v1642 = vpop.f32.mrb[0].mxu0
      %v1643 = vadd.f32 0.0, %v1642
      %v1644 = vpop.f32.mrb[0].mxu0
      %1645 = vmatprep.mubr.f32.mxu0 0.0
      %1646 = vmatmul.mubr.f32.gmra.mrb[0].mxu0 %v225
      %v1647 = vpop.f32.mrb[0].mxu0
      %v1648 = vadd.f32 0.0, %v1647
      %v1649 = vpop.f32.mrb[0].mxu0
      %1650 = vmatprep.mubr.f32.mxu0 0.0
      %1651 = vmatmul.mubr.f32.gmra.mrb[0].mxu0 %v228
      %v1652 = vpop.f32.mrb[0].mxu0
      %v1653 = vadd.f32 0.0, %v1652
      %v1654 = vpop.f32.mrb[0].mxu0
      %1655 = vmatprep.mubr.f32.mxu0 0.0
      %1656 = vmatmul.mubr.f32.gmra.mrb[0].mxu0 %v231
      %v1657 = vpop.f32.mrb[0].mxu0
      %v1658 = vadd.f32 0.0, %v1657
      %v1659 = vpop.f32.mrb[0].mxu0
      %1660 = vmatprep.mubr.f32.mxu0 0.0
      %1661 = vmatmul.mubr.f32.gmra.mrb[0].mxu0 %v234
      %v1662 = vpop.f32.mrb[0].mxu0
      %v1663 = vadd.f32 0.0, %v1662
      %v1664 = vpop.f32.mrb[0].mxu0
      %1665 = vmatprep.mubr.f32.mxu0 0.0
      %1666 = vmatmul.mubr.f32.gmra.mrb[0].mxu0 %v237
      %v1667 = vpop.f32.mrb[0].mxu0
      %v1668 = vadd.f32 0.0, %v1667
      %v1669 = vpop.f32.mrb[0].mxu0
      %1670 = vmatprep.mubr.f32.mxu0 0.0
      %1671 = vmatmul.mubr.f32.gmra.mrb[0].mxu0 %v240
      %v1672 = vpop.f32.mrb[0].mxu0
      %v1673 = vadd.f32 0.0, %v1672
      %v1674 = vpop.f32.mrb[0].mxu0
      %1675 = vmatprep.mubr.f32.mxu0 0.0
      %1676 = vmatmul.mubr.f32.gmra.mrb[0].mxu0 %v243
      %v1677 = vpop.f32.mrb[0].mxu0
      %v1678 = vadd.f32 0.0, %v1677
      %v1679 = vpop.f32.mrb[0].mxu0
      %1680 = vdwg.mxu0
      %v1681 = vmax.f32 %v1643, %v1653
      %v1682 = vmax.f32 %v1648, %v1658
      %v1683 = vmax.f32 %v1663, %v1673
      %v1684 = vmax.f32 %v1668, %v1678
      %v1685 = vmax.f32 %v1681, %v1683
      %v1686 = vmax.f32 %v1682, %v1684
      %v1687 = vadd.f32 %v1685, %v359
      %v1688 = vadd.f32 %v1686, %v364
      %v1689 = vmax.f32 %v1687, 0.0
      %v1690 = vmax.f32 %v1688, 0.0
      %1691 = vst.msk [vmem:[%s206 + $0xb0] sm:$0xff] %vm370, %v1689
      %1692 = vst.msk [vmem:[%s206 + $0xb8] sm:$0xff] %vm370, %v1690
      %s1693 = scalar_lea.vmem %s197, 192
      %v1694 = vld [vmem:[%s1693] sm:$0xff]
      %v1695 = vld [vmem:[%s1693 + $0x8] sm:$0xff]
      %1696 = vmatprep.subr.mxu0 0.0
      %1697 = vmatpush1.msra.mxu0 %v1694
      %1698 = vmatprep.subr.mxu0 0.0
      %1699 = vmatpush1.msra.mxu0 %v1695
      %1700 = vmatprep.subr.mxu0 0.0
      %1701 = vmatpush1.msra.mxu0 0.0
      %1702 = vmatprep.subr.mxu0 0.0
      %1703 = vmatpush1.msra.mxu0 0.0
      %1704 = vmatprep.subr.mxu0 0.0
      %1705 = vmatpush1.msra.mxu0 0.0
      %1706 = vmatprep.subr.mxu0 0.0
      %1707 = vmatpush1.msra.mxu0 0.0
      %1708 = vmatprep.subr.mxu0 0.0
      %1709 = vmatpush1.msra.mxu0 0.0
      %1710 = vmatprep.subr.mxu0 0.0
      %1711 = vmatpush1.msra.mxu0 0.0
      %1712 = vmatprep.subr.mxu0 0.0
      %1713 = vmatpush1.msra.mxu0 0.0
      %1714 = vmatprep.subr.mxu0 0.0
      %1715 = vmatpush1.msra.mxu0 0.0
      %1716 = vmatprep.subr.mxu0 0.0
      %1717 = vmatpush1.msra.mxu0 0.0
      %1718 = vmatprep.subr.mxu0 0.0
      %1719 = vmatpush1.msra.mxu0 0.0
      %1720 = vmatprep.subr.mxu0 0.0
      %1721 = vmatpush1.msra.mxu0 0.0
      %1722 = vmatprep.subr.mxu0 0.0
      %1723 = vmatpush1.msra.mxu0 0.0
      %1724 = vmatprep.subr.mxu0 0.0
      %1725 = vmatpush1.msra.mxu0 0.0
      %1726 = vmatprep.subr.mxu0 0.0
      %1727 = vmatpush1.msra.mxu0 0.0
      %1728 = vmatprep.subr.mxu0 0.0
      %1729 = vmatpush1.msra.mxu0 0.0
      %1730 = vmatprep.subr.mxu0 0.0
      %1731 = vmatpush1.msra.mxu0 0.0
      %1732 = vmatprep.subr.mxu0 0.0
      %1733 = vmatpush1.msra.mxu0 0.0
      %1734 = vmatprep.subr.mxu0 0.0
      %1735 = vmatpush1.msra.mxu0 0.0
      %1736 = vmatprep.subr.mxu0 0.0
      %1737 = vmatpush1.msra.mxu0 0.0
      %1738 = vmatprep.subr.mxu0 0.0
      %1739 = vmatpush1.msra.mxu0 0.0
      %1740 = vmatprep.subr.mxu0 0.0
      %1741 = vmatpush1.msra.mxu0 0.0
      %1742 = vmatprep.subr.mxu0 0.0
      %1743 = vmatpush1.msra.mxu0 0.0
      %1744 = vmatprep.subr.mxu0 0.0
      %1745 = vmatpush1.msra.mxu0 0.0
      %1746 = vmatprep.subr.mxu0 0.0
      %1747 = vmatpush1.msra.mxu0 0.0
      %1748 = vmatprep.subr.mxu0 0.0
      %1749 = vmatpush1.msra.mxu0 0.0
      %1750 = vmatprep.subr.mxu0 0.0
      %1751 = vmatpush1.msra.mxu0 0.0
      %1752 = vmatprep.subr.mxu0 0.0
      %1753 = vmatpush1.msra.mxu0 0.0
      %1754 = vmatprep.subr.mxu0 0.0
      %1755 = vmatpush1.msra.mxu0 0.0
      %1756 = vmatprep.subr.mxu0 0.0
      %1757 = vmatpush1.msra.mxu0 0.0
      %1758 = vmatprep.subr.mxu0 0.0
      %1759 = vmatpush1.msra.mxu0 0.0
      %1760 = vmatprep.mubr.f32.mxu0 0.0
      %1761 = vmatmul.mubr.f32.gmra.mrb[0].mxu0 %v222
      %v1762 = vpop.f32.mrb[0].mxu0
      %v1763 = vadd.f32 0.0, %v1762
      %v1764 = vpop.f32.mrb[0].mxu0
      %1765 = vmatprep.mubr.f32.mxu0 0.0
      %1766 = vmatmul.mubr.f32.gmra.mrb[0].mxu0 %v225
      %v1767 = vpop.f32.mrb[0].mxu0
      %v1768 = vadd.f32 0.0, %v1767
      %v1769 = vpop.f32.mrb[0].mxu0
      %1770 = vmatprep.mubr.f32.mxu0 0.0
      %1771 = vmatmul.mubr.f32.gmra.mrb[0].mxu0 %v228
      %v1772 = vpop.f32.mrb[0].mxu0
      %v1773 = vadd.f32 0.0, %v1772
      %v1774 = vpop.f32.mrb[0].mxu0
      %1775 = vmatprep.mubr.f32.mxu0 0.0
      %1776 = vmatmul.mubr.f32.gmra.mrb[0].mxu0 %v231
      %v1777 = vpop.f32.mrb[0].mxu0
      %v1778 = vadd.f32 0.0, %v1777
      %v1779 = vpop.f32.mrb[0].mxu0
      %1780 = vmatprep.mubr.f32.mxu0 0.0
      %1781 = vmatmul.mubr.f32.gmra.mrb[0].mxu0 %v234
      %v1782 = vpop.f32.mrb[0].mxu0
      %v1783 = vadd.f32 0.0, %v1782
      %v1784 = vpop.f32.mrb[0].mxu0
      %1785 = vmatprep.mubr.f32.mxu0 0.0
      %1786 = vmatmul.mubr.f32.gmra.mrb[0].mxu0 %v237
      %v1787 = vpop.f32.mrb[0].mxu0
      %v1788 = vadd.f32 0.0, %v1787
      %v1789 = vpop.f32.mrb[0].mxu0
      %1790 = vmatprep.mubr.f32.mxu0 0.0
      %1791 = vmatmul.mubr.f32.gmra.mrb[0].mxu0 %v240
      %v1792 = vpop.f32.mrb[0].mxu0
      %v1793 = vadd.f32 0.0, %v1792
      %v1794 = vpop.f32.mrb[0].mxu0
      %1795 = vmatprep.mubr.f32.mxu0 0.0
      %1796 = vmatmul.mubr.f32.gmra.mrb[0].mxu0 %v243
      %v1797 = vpop.f32.mrb[0].mxu0
      %v1798 = vadd.f32 0.0, %v1797
      %v1799 = vpop.f32.mrb[0].mxu0
      %1800 = vdwg.mxu0
      %v1801 = vmax.f32 %v1763, %v1773
      %v1802 = vmax.f32 %v1768, %v1778
      %v1803 = vmax.f32 %v1783, %v1793
      %v1804 = vmax.f32 %v1788, %v1798
      %v1805 = vmax.f32 %v1801, %v1803
      %v1806 = vmax.f32 %v1802, %v1804
      %v1807 = vadd.f32 %v1805, %v359
      %v1808 = vadd.f32 %v1806, %v364
      %v1809 = vmax.f32 %v1807, 0.0
      %v1810 = vmax.f32 %v1808, 0.0
      %1811 = vst.msk [vmem:[%s206 + $0xc0] sm:$0xff] %vm370, %v1809
      %1812 = vst.msk [vmem:[%s206 + $0xc8] sm:$0xff] %vm370, %v1810
      %s1813 = smul.u32 26, %s18
      %p1814 = scmp.lt.s32.totalorder %s1813, 337
      %s1815 = scalar_select %p1814, %s1813, 337
      %p1816 = scmp.lt.s32.totalorder %s19, 0
      %s1817 = scalar_select %p1816, %s19, 0
      %s1818 = sadd.s32 %s1817, %s1815
      %s1819 = smul.addr %s1818, 8
      %s1820 = scalar_lea.vmem %s3, %s1819
      // Predicated region
      $region33: #{cnn_forward.2} parent=31 // pred_check
        %p1821 = pneg %p116
      $region34: #{cnn_forward.2} parent=31 // pred_check_branch
        %1823 = sbr.rel (%p1821) target = $region36
      $region35: #{cnn_forward.2} parent=31 // pred_region
        %s1824 = smul.u32 26, %s18
      $region36: #{cnn_forward.2} parent=31 // pred_fallthru
        _
    $region32: #{cnn_forward.2} parent=5 // pred_fallthru
      _
    %p1825 = scmp.le.s32.totalorder 2, %s9
    // Predicated region
    $region37: #{cnn_forward.2} parent=5 // pred_check
      %p1826 = pneg %p1825
    $region38: #{cnn_forward.2} parent=5 // pred_check_branch
      %1828 = sbr.rel (%p1826) target = $region40
    $region39: #{cnn_forward.2} parent=5 // pred_region
      %s1829 = ssub.s32 %s9, 2
      // Predicated region
      $region41: #{cnn_forward.2} parent=39 // pred_check
        %p1830 = pneg %p122
      $region42: #{cnn_forward.2} parent=39 // pred_check_branch
        %1832 = sbr.rel (%p1830) target = $region44
      $region43: #{cnn_forward.2} parent=39 // pred_region
        %s1833 = smul.u32 26, %s20
        %p1834 = scmp.lt.s32.totalorder %s1833, 337
        %s1835 = scalar_select %p1834, %s1833, 337
        %p1836 = scmp.lt.s32.totalorder %s21, 0
        %s1837 = scalar_select %p1836, %s21, 0
        %s1838 = sadd.s32 %s1837, %s1835
        %s1839 = smul.addr %s1838, 8
        %s1840 = scalar_lea.vmem %s3, %s1839
      $region44: #{cnn_forward.2} parent=39 // pred_fallthru
        _
    $region40: #{cnn_forward.2} parent=5 // pred_fallthru
      _
  $region6: #{cnn_forward.2} parent=0 // loop_footer
    %s13 = sadd.s32 1, %s9
  $region7: #{cnn_forward.2} parent=0 // loop_footer_branch
    %8 = sbr.rel target = $region3
  $region8: #{cnn_forward.2} parent=0 // loop_exit
    _

// kernel: cnn_forward.3
$region0: #{cnn_forward.3}
  #allocation0 [shape = 'u32[]', space=smem, size = 0x4, offset = 0x4, fixed_abs, tag = 'smem constant byte address 0x4 - core index']
  #allocation1 [shape = 'u32[144,128]{1,0:T(1,128)}', space=vmem, size = 0x12000, scoped, tag = 'internal scratch']
  %s0 = inlined_call_operand.vmem [shape: f32[2704,8], index: 0, kind: input, shape index: {}]
  %s1 = inlined_call_operand.vmem [shape: f32[64,2704], index: 1, kind: input, shape index: {}]
  %s2 = inlined_call_operand.vmem [shape: f32[64,1], index: 2, kind: input, shape index: {}]
  %s3 = inlined_call_operand.vmem [shape: f32[16,64], index: 3, kind: input, shape index: {}]
  %s4 = inlined_call_operand.vmem [shape: f32[16,1], index: 4, kind: input, shape index: {}]
  %s5 = inlined_call_operand.vmem [shape: f32[16,8], index: 5, kind: output, shape index: {}]
  %s6 = sld [smem:[#allocation0]]
  $region30: #{cnn_forward.3} parent=0
    _
  %s8 = ssub.s32 1, %s6
  %s9 = scalar_select 0, %s8, %s6
  // Predicated region
  $region2: #{cnn_forward.3} parent=0 // pred_check
    _
  $region3: #{cnn_forward.3} parent=0 // pred_check_branch
    %11 = sbr.rel (0) target = $region5
  $region4: #{cnn_forward.3} parent=0 // pred_region
    _
  $region5: #{cnn_forward.3} parent=0 // pred_fallthru
    _
  // Predicated region
  $region6: #{cnn_forward.3} parent=0 // pred_check
    _
  $region7: #{cnn_forward.3} parent=0 // pred_check_branch
    %13 = sbr.rel (0) target = $region9
  $region8: #{cnn_forward.3} parent=0 // pred_region
    _
  $region9: #{cnn_forward.3} parent=0 // pred_fallthru
    _
  // Predicated region
  $region10: #{cnn_forward.3} parent=0 // pred_check
    _
  $region11: #{cnn_forward.3} parent=0 // pred_check_branch
    %15 = sbr.rel (0) target = $region13
  $region12: #{cnn_forward.3} parent=0 // pred_region
    _
  $region13: #{cnn_forward.3} parent=0 // pred_fallthru
    _
  // Predicated region
  $region14: #{cnn_forward.3} parent=0 // pred_check
    _
  $region15: #{cnn_forward.3} parent=0 // pred_check_branch
    %17 = sbr.rel (0) target = $region17
  $region16: #{cnn_forward.3} parent=0 // pred_region
    _
  $region17: #{cnn_forward.3} parent=0 // pred_fallthru
    _
  // Predicated region
  $region18: #{cnn_forward.3} parent=0 // pred_check
    _
  $region19: #{cnn_forward.3} parent=0 // pred_check_branch
    %19 = sbr.rel (0) target = $region21
  $region20: #{cnn_forward.3} parent=0 // pred_region
    _
  $region21: #{cnn_forward.3} parent=0 // pred_fallthru
    _
  %v20 = vld [vmem:[%s1] sm:$0xff]
  %v21 = vld [vmem:[%s1 + $0x8] sm:$0xff]
  %v22 = vld [vmem:[%s1 + $0x10] sm:$0xff]
  %v23 = vld [vmem:[%s1 + $0x18] sm:$0xff]
  %v24 = vld [vmem:[%s1 + $0x20] sm:$0xff]
  %v25 = vld [vmem:[%s1 + $0x28] sm:$0xff]
  %v26 = vld [vmem:[%s1 + $0x30] sm:$0xff]
  %v27 = vld [vmem:[%s1 + $0x38] sm:$0xff]
  %v28 = vld [vmem:[%s1 + $0x40] sm:$0xff]
  %v29 = vld [vmem:[%s1 + $0x48] sm:$0xff]
  %v30 = vld [vmem:[%s1 + $0x50] sm:$0xff]
  %v31 = vld [vmem:[%s1 + $0x58] sm:$0xff]
  %v32 = vld [vmem:[%s1 + $0x60] sm:$0xff]
  %v33 = vld [vmem:[%s1 + $0x68] sm:$0xff]
  %v34 = vld [vmem:[%s1 + $0x70] sm:$0xff]
  %v35 = vld [vmem:[%s1 + $0x78] sm:$0xff]
  %v36 = vld [vmem:[%s1 + $0x80] sm:$0xff]
  %v37 = vld [vmem:[%s1 + $0x88] sm:$0xff]
  %v38 = vld [vmem:[%s1 + $0x90] sm:$0xff]
  %v39 = vld [vmem:[%s1 + $0x98] sm:$0xff]
  %v40 = vld [vmem:[%s1 + $0xa0] sm:$0xff]
  %v41 = vld [vmem:[%s1 + $0xa8] sm:$0xff]
  %v42 = vld [vmem:[%s1 + $0xb0] sm:$0xff]
  %v43 = vld [vmem:[%s1 + $0xb8] sm:$0xff]
  %v44 = vld [vmem:[%s1 + $0xc0] sm:$0xff]
  %v45 = vld [vmem:[%s1 + $0xc8] sm:$0xff]
  %v46 = vld [vmem:[%s1 + $0xd0] sm:$0xff]
  %v47 = vld [vmem:[%s1 + $0xd8] sm:$0xff]
  %v48 = vld [vmem:[%s1 + $0xe0] sm:$0xff]
  %v49 = vld [vmem:[%s1 + $0xe8] sm:$0xff]
  %v50 = vld [vmem:[%s1 + $0xf0] sm:$0xff]
  %v51 = vld [vmem:[%s1 + $0xf8] sm:$0xff]
  %v52 = vld [vmem:[%s1 + $0x100] sm:$0xff]
  %v53 = vld [vmem:[%s1 + $0x108] sm:$0xff]
  %v54 = vld [vmem:[%s1 + $0x110] sm:$0xff]
  %v55 = vld [vmem:[%s1 + $0x118] sm:$0xff]
  %v56 = vld [vmem:[%s1 + $0x120] sm:$0xff]
  %v57 = vld [vmem:[%s1 + $0x128] sm:$0xff]
  %v58 = vld [vmem:[%s1 + $0x130] sm:$0xff]
  %v59 = vld [vmem:[%s1 + $0x138] sm:$0xff]
  %v60 = vld [vmem:[%s1 + $0x140] sm:$0xff]
  %v61 = vld [vmem:[%s1 + $0x148] sm:$0xff]
  %v62 = vld [vmem:[%s1 + $0x150] sm:$0xff]
  %v63 = vld [vmem:[%s1 + $0x158] sm:$0xff]
  %v64 = vld [vmem:[%s1 + $0x160] sm:$0xff]
  %v65 = vld [vmem:[%s1 + $0x168] sm:$0xff]
  %v66 = vld [vmem:[%s1 + $0x170] sm:$0xff]
  %v67 = vld [vmem:[%s1 + $0x178] sm:$0xff]
  %v68 = vld [vmem:[%s1 + $0x180] sm:$0xff]
  %v69 = vld [vmem:[%s1 + $0x188] sm:$0xff]
  %v70 = vld [vmem:[%s1 + $0x190] sm:$0xff]
  %v71 = vld [vmem:[%s1 + $0x198] sm:$0xff]
  %v72 = vld [vmem:[%s1 + $0x1a0] sm:$0xff]
  %v73 = vld [vmem:[%s1 + $0x1a8] sm:$0xff]
  %v74 = vld [vmem:[%s1 + $0x1b0] sm:$0xff]
  %v75 = vld [vmem:[%s1 + $0x1b8] sm:$0xff]
  %v76 = vld [vmem:[%s1 + $0x1c0] sm:$0xff]
  %v77 = vld [vmem:[%s1 + $0x1c8] sm:$0xff]
  %v78 = vld [vmem:[%s1 + $0x1d0] sm:$0xff]
  %v79 = vld [vmem:[%s1 + $0x1d8] sm:$0xff]
  %v80 = vld [vmem:[%s1 + $0x1e0] sm:$0xff]
  %v81 = vld [vmem:[%s1 + $0x1e8] sm:$0xff]
  %v82 = vld [vmem:[%s1 + $0x1f0] sm:$0xff]
  %v83 = vld [vmem:[%s1 + $0x1f8] sm:$0xff]
  %v84 = vld [vmem:[%s1 + $0x200] sm:$0xff]
  %v85 = vld [vmem:[%s1 + $0x208] sm:$0xff]
  %v86 = vld [vmem:[%s1 + $0x210] sm:$0xff]
  %v87 = vld [vmem:[%s1 + $0x218] sm:$0xff]
  %v88 = vld [vmem:[%s1 + $0x220] sm:$0xff]
  %v89 = vld [vmem:[%s1 + $0x228] sm:$0xff]
  %v90 = vld [vmem:[%s1 + $0x230] sm:$0xff]
  %v91 = vld [vmem:[%s1 + $0x238] sm:$0xff]
  %v92 = vld [vmem:[%s1 + $0x240] sm:$0xff]
  %v93 = vld [vmem:[%s1 + $0x248] sm:$0xff]
  %v94 = vld [vmem:[%s1 + $0x250] sm:$0xff]
  %v95 = vld [vmem:[%s1 + $0x258] sm:$0xff]
  %v96 = vld [vmem:[%s1 + $0x260] sm:$0xff]
  %v97 = vld [vmem:[%s1 + $0x268] sm:$0xff]
  %v98 = vld [vmem:[%s1 + $0x270] sm:$0xff]
  %v99 = vld [vmem:[%s1 + $0x278] sm:$0xff]
  %v100 = vld [vmem:[%s1 + $0x280] sm:$0xff]
  %v101 = vld [vmem:[%s1 + $0x288] sm:$0xff]
  %v102 = vld [vmem:[%s1 + $0x290] sm:$0xff]
  %v103 = vld [vmem:[%s1 + $0x298] sm:$0xff]
  %v104 = vld [vmem:[%s1 + $0x2a0] sm:$0xff]
  %v105 = vld [vmem:[%s1 + $0x2a8] sm:$0xff]
  %v106 = vld [vmem:[%s1 + $0x2b0] sm:$0xff]
  %v107 = vld [vmem:[%s1 + $0x2b8] sm:$0xff]
  %v108 = vld [vmem:[%s1 + $0x2c0] sm:$0xff]
  %v109 = vld [vmem:[%s1 + $0x2c8] sm:$0xff]
  %v110 = vld [vmem:[%s1 + $0x2d0] sm:$0xff]
  %v111 = vld [vmem:[%s1 + $0x2d8] sm:$0xff]
  %v112 = vld [vmem:[%s1 + $0x2e0] sm:$0xff]
  %v113 = vld [vmem:[%s1 + $0x2e8] sm:$0xff]
  %v114 = vld [vmem:[%s1 + $0x2f0] sm:$0xff]
  %v115 = vld [vmem:[%s1 + $0x2f8] sm:$0xff]
  %v116 = vld [vmem:[%s1 + $0x300] sm:$0xff]
  %v117 = vld [vmem:[%s1 + $0x308] sm:$0xff]
  %v118 = vld [vmem:[%s1 + $0x310] sm:$0xff]
  %v119 = vld [vmem:[%s1 + $0x318] sm:$0xff]
  %v120 = vld [vmem:[%s1 + $0x320] sm:$0xff]
  %v121 = vld [vmem:[%s1 + $0x328] sm:$0xff]
  %v122 = vld [vmem:[%s1 + $0x330] sm:$0xff]
  %v123 = vld [vmem:[%s1 + $0x338] sm:$0xff]
  %v124 = vld [vmem:[%s1 + $0x340] sm:$0xff]
  %v125 = vld [vmem:[%s1 + $0x348] sm:$0xff]
  %v126 = vld [vmem:[%s1 + $0x350] sm:$0xff]
  %v127 = vld [vmem:[%s1 + $0x358] sm:$0xff]
  %v128 = vld [vmem:[%s1 + $0x360] sm:$0xff]
  %v129 = vld [vmem:[%s1 + $0x368] sm:$0xff]
  %v130 = vld [vmem:[%s1 + $0x370] sm:$0xff]
  %v131 = vld [vmem:[%s1 + $0x378] sm:$0xff]
  %v132 = vld [vmem:[%s1 + $0x380] sm:$0xff]
  %v133 = vld [vmem:[%s1 + $0x388] sm:$0xff]
  %v134 = vld [vmem:[%s1 + $0x390] sm:$0xff]
  %v135 = vld [vmem:[%s1 + $0x398] sm:$0xff]
  %v136 = vld [vmem:[%s1 + $0x3a0] sm:$0xff]
  %v137 = vld [vmem:[%s1 + $0x3a8] sm:$0xff]
  %v138 = vld [vmem:[%s1 + $0x3b0] sm:$0xff]
  %v139 = vld [vmem:[%s1 + $0x3b8] sm:$0xff]
  %v140 = vld [vmem:[%s1 + $0x3c0] sm:$0xff]
  %v141 = vld [vmem:[%s1 + $0x3c8] sm:$0xff]
  %v142 = vld [vmem:[%s1 + $0x3d0] sm:$0xff]
  %v143 = vld [vmem:[%s1 + $0x3d8] sm:$0xff]
  %v144 = vld [vmem:[%s1 + $0x3e0] sm:$0xff]
  %v145 = vld [vmem:[%s1 + $0x3e8] sm:$0xff]
  %v146 = vld [vmem:[%s1 + $0x3f0] sm:$0xff]
  %v147 = vld [vmem:[%s1 + $0x3f8] sm:$0xff]
  %v148 = vld [vmem:[%s1 + $0x400] sm:$0xff]
  %v149 = vld [vmem:[%s1 + $0x408] sm:$0xff]
  %v150 = vld [vmem:[%s1 + $0x410] sm:$0xff]
  %v151 = vld [vmem:[%s1 + $0x418] sm:$0xff]
  %v152 = vld [vmem:[%s1 + $0x420] sm:$0xff]
  %v153 = vld [vmem:[%s1 + $0x428] sm:$0xff]
  %v154 = vld [vmem:[%s1 + $0x430] sm:$0xff]
  %v155 = vld [vmem:[%s1 + $0x438] sm:$0xff]
  %v156 = vld [vmem:[%s1 + $0x440] sm:$0xff]
  %v157 = vld [vmem:[%s1 + $0x448] sm:$0xff]
  %v158 = vld [vmem:[%s1 + $0x450] sm:$0xff]
  %v159 = vld [vmem:[%s1 + $0x458] sm:$0xff]
  %v160 = vld [vmem:[%s1 + $0x460] sm:$0xff]
  %v161 = vld [vmem:[%s1 + $0x468] sm:$0xff]
  %v162 = vld [vmem:[%s1 + $0x470] sm:$0xff]
  %v163 = vld [vmem:[%s1 + $0x478] sm:$0xff]
  %v164 = vld [vmem:[%s1 + $0x480] sm:$0xff]
  %v165 = vld [vmem:[%s1 + $0x488] sm:$0xff]
  %v166 = vld [vmem:[%s1 + $0x490] sm:$0xff]
  %v167 = vld [vmem:[%s1 + $0x498] sm:$0xff]
  %v168 = vld [vmem:[%s1 + $0x4a0] sm:$0xff]
  %v169 = vld [vmem:[%s1 + $0x4a8] sm:$0xff]
  %v170 = vld [vmem:[%s1 + $0x4b0] sm:$0xff]
  %v171 = vld [vmem:[%s1 + $0x4b8] sm:$0xff]
  %v172 = vld [vmem:[%s1 + $0x4c0] sm:$0xff]
  %v173 = vld [vmem:[%s1 + $0x4c8] sm:$0xff]
  %v174 = vld [vmem:[%s1 + $0x4d0] sm:$0xff]
  %v175 = vld [vmem:[%s1 + $0x4d8] sm:$0xff]
  %v176 = vld [vmem:[%s1 + $0x4e0] sm:$0xff]
  %v177 = vld [vmem:[%s1 + $0x4e8] sm:$0xff]
  %v178 = vld [vmem:[%s1 + $0x4f0] sm:$0xff]
  %v179 = vld [vmem:[%s1 + $0x4f8] sm:$0xff]
  %v180 = vld [vmem:[%s1 + $0x500] sm:$0xff]
  %v181 = vld [vmem:[%s1 + $0x508] sm:$0xff]
  %v182 = vld [vmem:[%s1 + $0x510] sm:$0xff]
  %v183 = vld [vmem:[%s1 + $0x518] sm:$0xff]
  %v184 = vld [vmem:[%s1 + $0x520] sm:$0xff]
  %v185 = vld [vmem:[%s1 + $0x528] sm:$0xff]
  %v186 = vld [vmem:[%s1 + $0x530] sm:$0xff]
  %v187 = vld [vmem:[%s1 + $0x538] sm:$0xff]
  %v188 = vld [vmem:[%s1 + $0x540] sm:$0xff]
  %v189 = vld [vmem:[%s1 + $0x548] sm:$0xff]
  %v190 = vld [vmem:[%s1 + $0x550] sm:$0xff]
  %v191 = vld [vmem:[%s1 + $0x558] sm:$0xff]
  %v192 = vld [vmem:[%s1 + $0x560] sm:$0xff]
  %v193 = vld [vmem:[%s1 + $0x568] sm:$0xff]
  %v194 = vld [vmem:[%s1 + $0x570] sm:$0xff]
  %v195 = vld [vmem:[%s1 + $0x578] sm:$0xff]
  %v196 = vld [vmem:[%s0] sm:$0xff]
  %v197 = vld [vmem:[%s0 + $0x8] sm:$0xff]
  %v198 = vld [vmem:[%s0 + $0x10] sm:$0xff]
  %v199 = vld [vmem:[%s0 + $0x18] sm:$0xff]
  %v200 = vld [vmem:[%s0 + $0x20] sm:$0xff]
  %v201 = vld [vmem:[%s0 + $0x28] sm:$0xff]
  %v202 = vld [vmem:[%s0 + $0x30] sm:$0xff]
  %v203 = vld [vmem:[%s0 + $0x38] sm:$0xff]
  %v204 = vld [vmem:[%s0 + $0x40] sm:$0xff]
  %v205 = vld [vmem:[%s0 + $0x48] sm:$0xff]
  %v206 = vld [vmem:[%s0 + $0x50] sm:$0xff]
  %v207 = vld [vmem:[%s0 + $0x58] sm:$0xff]
  %v208 = vld [vmem:[%s0 + $0x60] sm:$0xff]
  %v209 = vld [vmem:[%s0 + $0x68] sm:$0xff]
  %v210 = vld [vmem:[%s0 + $0x70] sm:$0xff]
  %v211 = vld [vmem:[%s0 + $0x78] sm:$0xff]
  %v212 = vld [vmem:[%s0 + $0x80] sm:$0xff]
  %v213 = vld [vmem:[%s0 + $0x88] sm:$0xff]
  %v214 = vld [vmem:[%s0 + $0x90] sm:$0xff]
  %v215 = vld [vmem:[%s0 + $0x98] sm:$0xff]
  %v216 = vld [vmem:[%s0 + $0xa0] sm:$0xff]
  %v217 = vld [vmem:[%s0 + $0xa8] sm:$0xff]
  %v218 = vld [vmem:[%s0 + $0xb0] sm:$0xff]
  %v219 = vld [vmem:[%s0 + $0xb8] sm:$0xff]
  %v220 = vld [vmem:[%s0 + $0xc0] sm:$0xff]
  %v221 = vld [vmem:[%s0 + $0xc8] sm:$0xff]
  %v222 = vld [vmem:[%s0 + $0xd0] sm:$0xff]
  %v223 = vld [vmem:[%s0 + $0xd8] sm:$0xff]
  %v224 = vld [vmem:[%s0 + $0xe0] sm:$0xff]
  %v225 = vld [vmem:[%s0 + $0xe8] sm:$0xff]
  %v226 = vld [vmem:[%s0 + $0xf0] sm:$0xff]
  %v227 = vld [vmem:[%s0 + $0xf8] sm:$0xff]
  %v228 = vld [vmem:[%s0 + $0x100] sm:$0xff]
  %v229 = vld [vmem:[%s0 + $0x108] sm:$0xff]
  %v230 = vld [vmem:[%s0 + $0x110] sm:$0xff]
  %v231 = vld [vmem:[%s0 + $0x118] sm:$0xff]
  %v232 = vld [vmem:[%s0 + $0x120] sm:$0xff]
  %v233 = vld [vmem:[%s0 + $0x128] sm:$0xff]
  %v234 = vld [vmem:[%s0 + $0x130] sm:$0xff]
  %v235 = vld [vmem:[%s0 + $0x138] sm:$0xff]
  %v236 = vld [vmem:[%s0 + $0x140] sm:$0xff]
  %v237 = vld [vmem:[%s0 + $0x148] sm:$0xff]
  %v238 = vld [vmem:[%s0 + $0x150] sm:$0xff]
  %v239 = vld [vmem:[%s0 + $0x158] sm:$0xff]
  %v240 = vld [vmem:[%s0 + $0x160] sm:$0xff]
  %v241 = vld [vmem:[%s0 + $0x168] sm:$0xff]
  %v242 = vld [vmem:[%s0 + $0x170] sm:$0xff]
  %v243 = vld [vmem:[%s0 + $0x178] sm:$0xff]
  %v244 = vld [vmem:[%s0 + $0x180] sm:$0xff]
  %v245 = vld [vmem:[%s0 + $0x188] sm:$0xff]
  %v246 = vld [vmem:[%s0 + $0x190] sm:$0xff]
  %v247 = vld [vmem:[%s0 + $0x198] sm:$0xff]
  %v248 = vld [vmem:[%s0 + $0x1a0] sm:$0xff]
  %v249 = vld [vmem:[%s0 + $0x1a8] sm:$0xff]
  %v250 = vld [vmem:[%s0 + $0x1b0] sm:$0xff]
  %v251 = vld [vmem:[%s0 + $0x1b8] sm:$0xff]
  %v252 = vld [vmem:[%s0 + $0x1c0] sm:$0xff]
  %v253 = vld [vmem:[%s0 + $0x1c8] sm:$0xff]
  %v254 = vld [vmem:[%s0 + $0x1d0] sm:$0xff]
  %v255 = vld [vmem:[%s0 + $0x1d8] sm:$0xff]
  %v256 = vld [vmem:[%s0 + $0x1e0] sm:$0xff]
  %v257 = vld [vmem:[%s0 + $0x1e8] sm:$0xff]
  %v258 = vld [vmem:[%s0 + $0x1f0] sm:$0xff]
  %v259 = vld [vmem:[%s0 + $0x1f8] sm:$0xff]
  %v260 = vld [vmem:[%s0 + $0x200] sm:$0xff]
  %v261 = vld [vmem:[%s0 + $0x208] sm:$0xff]
  %v262 = vld [vmem:[%s0 + $0x210] sm:$0xff]
  %v263 = vld [vmem:[%s0 + $0x218] sm:$0xff]
  %v264 = vld [vmem:[%s0 + $0x220] sm:$0xff]
  %v265 = vld [vmem:[%s0 + $0x228] sm:$0xff]
  %v266 = vld [vmem:[%s0 + $0x230] sm:$0xff]
  %v267 = vld [vmem:[%s0 + $0x238] sm:$0xff]
  %v268 = vld [vmem:[%s0 + $0x240] sm:$0xff]
  %v269 = vld [vmem:[%s0 + $0x248] sm:$0xff]
  %v270 = vld [vmem:[%s0 + $0x250] sm:$0xff]
  %v271 = vld [vmem:[%s0 + $0x258] sm:$0xff]
  %v272 = vld [vmem:[%s0 + $0x260] sm:$0xff]
  %v273 = vld [vmem:[%s0 + $0x268] sm:$0xff]
  %v274 = vld [vmem:[%s0 + $0x270] sm:$0xff]
  %v275 = vld [vmem:[%s0 + $0x278] sm:$0xff]
  %v276 = vld [vmem:[%s0 + $0x280] sm:$0xff]
  %v277 = vld [vmem:[%s0 + $0x288] sm:$0xff]
  %v278 = vld [vmem:[%s0 + $0x290] sm:$0xff]
  %v279 = vld [vmem:[%s0 + $0x298] sm:$0xff]
  %v280 = vld [vmem:[%s0 + $0x2a0] sm:$0xff]
  %v281 = vld [vmem:[%s0 + $0x2a8] sm:$0xff]
  %v282 = vld [vmem:[%s0 + $0x2b0] sm:$0xff]
  %v283 = vld [vmem:[%s0 + $0x2b8] sm:$0xff]
  %v284 = vld [vmem:[%s0 + $0x2c0] sm:$0xff]
  %v285 = vld [vmem:[%s0 + $0x2c8] sm:$0xff]
  %v286 = vld [vmem:[%s0 + $0x2d0] sm:$0xff]
  %v287 = vld [vmem:[%s0 + $0x2d8] sm:$0xff]
  %v288 = vld [vmem:[%s0 + $0x2e0] sm:$0xff]
  %v289 = vld [vmem:[%s0 + $0x2e8] sm:$0xff]
  %v290 = vld [vmem:[%s0 + $0x2f0] sm:$0xff]
  %v291 = vld [vmem:[%s0 + $0x2f8] sm:$0xff]
  %v292 = vld [vmem:[%s0 + $0x300] sm:$0xff]
  %v293 = vld [vmem:[%s0 + $0x308] sm:$0xff]
  %v294 = vld [vmem:[%s0 + $0x310] sm:$0xff]
  %v295 = vld [vmem:[%s0 + $0x318] sm:$0xff]
  %v296 = vld [vmem:[%s0 + $0x320] sm:$0xff]
  %v297 = vld [vmem:[%s0 + $0x328] sm:$0xff]
  %v298 = vld [vmem:[%s0 + $0x330] sm:$0xff]
  %v299 = vld [vmem:[%s0 + $0x338] sm:$0xff]
  %v300 = vld [vmem:[%s0 + $0x340] sm:$0xff]
  %v301 = vld [vmem:[%s0 + $0x348] sm:$0xff]
  %v302 = vld [vmem:[%s0 + $0x350] sm:$0xff]
  %v303 = vld [vmem:[%s0 + $0x358] sm:$0xff]
  %v304 = vld [vmem:[%s0 + $0x360] sm:$0xff]
  %v305 = vld [vmem:[%s0 + $0x368] sm:$0xff]
  %v306 = vld [vmem:[%s0 + $0x370] sm:$0xff]
  %v307 = vld [vmem:[%s0 + $0x378] sm:$0xff]
  %v308 = vld [vmem:[%s0 + $0x380] sm:$0xff]
  %v309 = vld [vmem:[%s0 + $0x388] sm:$0xff]
  %v310 = vld [vmem:[%s0 + $0x390] sm:$0xff]
  %v311 = vld [vmem:[%s0 + $0x398] sm:$0xff]
  %v312 = vld [vmem:[%s0 + $0x3a0] sm:$0xff]
  %v313 = vld [vmem:[%s0 + $0x3a8] sm:$0xff]
  %v314 = vld [vmem:[%s0 + $0x3b0] sm:$0xff]
  %v315 = vld [vmem:[%s0 + $0x3b8] sm:$0xff]
  %v316 = vld [vmem:[%s0 + $0x3c0] sm:$0xff]
  %v317 = vld [vmem:[%s0 + $0x3c8] sm:$0xff]
  %v318 = vld [vmem:[%s0 + $0x3d0] sm:$0xff]
  %v319 = vld [vmem:[%s0 + $0x3d8] sm:$0xff]
  %v320 = vld [vmem:[%s0 + $0x3e0] sm:$0xff]
  %v321 = vld [vmem:[%s0 + $0x3e8] sm:$0xff]
  %v322 = vld [vmem:[%s0 + $0x3f0] sm:$0xff]
  %v323 = vld [vmem:[%s0 + $0x3f8] sm:$0xff]
  %v324 = vld [vmem:[%s0 + $0x400] sm:$0xff]
  %v325 = vld [vmem:[%s0 + $0x408] sm:$0xff]
  %v326 = vld [vmem:[%s0 + $0x410] sm:$0xff]
  %v327 = vld [vmem:[%s0 + $0x418] sm:$0xff]
  %v328 = vld [vmem:[%s0 + $0x420] sm:$0xff]
  %v329 = vld [vmem:[%s0 + $0x428] sm:$0xff]
  %v330 = vld [vmem:[%s0 + $0x430] sm:$0xff]
  %v331 = vld [vmem:[%s0 + $0x438] sm:$0xff]
  %v332 = vld [vmem:[%s0 + $0x440] sm:$0xff]
  %v333 = vld [vmem:[%s0 + $0x448] sm:$0xff]
  %v334 = vld [vmem:[%s0 + $0x450] sm:$0xff]
  %v335 = vld [vmem:[%s0 + $0x458] sm:$0xff]
  %v336 = vld [vmem:[%s0 + $0x460] sm:$0xff]
  %v337 = vld [vmem:[%s0 + $0x468] sm:$0xff]
  %v338 = vld [vmem:[%s0 + $0x470] sm:$0xff]
  %v339 = vld [vmem:[%s0 + $0x478] sm:$0xff]
  %v340 = vld [vmem:[%s0 + $0x480] sm:$0xff]
  %v341 = vld [vmem:[%s0 + $0x488] sm:$0xff]
  %v342 = vld [vmem:[%s0 + $0x490] sm:$0xff]
  %v343 = vld [vmem:[%s0 + $0x498] sm:$0xff]
  %v344 = vld [vmem:[%s0 + $0x4a0] sm:$0xff]
  %v345 = vld [vmem:[%s0 + $0x4a8] sm:$0xff]
  %v346 = vld [vmem:[%s0 + $0x4b0] sm:$0xff]
  %v347 = vld [vmem:[%s0 + $0x4b8] sm:$0xff]
  %v348 = vld [vmem:[%s0 + $0x4c0] sm:$0xff]
  %v349 = vld [vmem:[%s0 + $0x4c8] sm:$0xff]
  %v350 = vld [vmem:[%s0 + $0x4d0] sm:$0xff]
  %v351 = vld [vmem:[%s0 + $0x4d8] sm:$0xff]
  %v352 = vld [vmem:[%s0 + $0x4e0] sm:$0xff]
  %v353 = vld [vmem:[%s0 + $0x4e8] sm:$0xff]
  %v354 = vld [vmem:[%s0 + $0x4f0] sm:$0xff]
  %v355 = vld [vmem:[%s0 + $0x4f8] sm:$0xff]
  %v356 = vld [vmem:[%s0 + $0x500] sm:$0xff]
  %v357 = vld [vmem:[%s0 + $0x508] sm:$0xff]
  %v358 = vld [vmem:[%s0 + $0x510] sm:$0xff]
  %v359 = vld [vmem:[%s0 + $0x518] sm:$0xff]
  %v360 = vld [vmem:[%s0 + $0x520] sm:$0xff]
  %v361 = vld [vmem:[%s0 + $0x528] sm:$0xff]
  %v362 = vld [vmem:[%s0 + $0x530] sm:$0xff]
  %v363 = vld [vmem:[%s0 + $0x538] sm:$0xff]
  %v364 = vld [vmem:[%s0 + $0x540] sm:$0xff]
  %v365 = vld [vmem:[%s0 + $0x548] sm:$0xff]
  %v366 = vld [vmem:[%s0 + $0x550] sm:$0xff]
  %v367 = vld [vmem:[%s0 + $0x558] sm:$0xff]
  %v368 = vld [vmem:[%s0 + $0x560] sm:$0xff]
  %v369 = vld [vmem:[%s0 + $0x568] sm:$0xff]
  %v370 = vld [vmem:[%s0 + $0x570] sm:$0xff]
  %v371 = vld [vmem:[%s0 + $0x578] sm:$0xff]
  %v372 = vld [vmem:[%s0 + $0x580] sm:$0xff]
  %v373 = vld [vmem:[%s0 + $0x588] sm:$0xff]
  %v374 = vld [vmem:[%s0 + $0x590] sm:$0xff]
  %v375 = vld [vmem:[%s0 + $0x598] sm:$0xff]
  %v376 = vld [vmem:[%s0 + $0x5a0] sm:$0xff]
  %v377 = vld [vmem:[%s0 + $0x5a8] sm:$0xff]
  %v378 = vld [vmem:[%s0 + $0x5b0] sm:$0xff]
  %v379 = vld [vmem:[%s0 + $0x5b8] sm:$0xff]
  %v380 = vld [vmem:[%s0 + $0x5c0] sm:$0xff]
  %v381 = vld [vmem:[%s0 + $0x5c8] sm:$0xff]
  %v382 = vld [vmem:[%s0 + $0x5d0] sm:$0xff]
  %v383 = vld [vmem:[%s0 + $0x5d8] sm:$0xff]
  %v384 = vld [vmem:[%s0 + $0x5e0] sm:$0xff]
  %v385 = vld [vmem:[%s0 + $0x5e8] sm:$0xff]
  %v386 = vld [vmem:[%s0 + $0x5f0] sm:$0xff]
  %v387 = vld [vmem:[%s0 + $0x5f8] sm:$0xff]
  %v388 = vld [vmem:[%s0 + $0x600] sm:$0xff]
  %v389 = vld [vmem:[%s0 + $0x608] sm:$0xff]
  %v390 = vld [vmem:[%s0 + $0x610] sm:$0xff]
  %v391 = vld [vmem:[%s0 + $0x618] sm:$0xff]
  %v392 = vld [vmem:[%s0 + $0x620] sm:$0xff]
  %v393 = vld [vmem:[%s0 + $0x628] sm:$0xff]
  %v394 = vld [vmem:[%s0 + $0x630] sm:$0xff]
  %v395 = vld [vmem:[%s0 + $0x638] sm:$0xff]
  %v396 = vld [vmem:[%s0 + $0x640] sm:$0xff]
  %v397 = vld [vmem:[%s0 + $0x648] sm:$0xff]
  %v398 = vld [vmem:[%s0 + $0x650] sm:$0xff]
  %v399 = vld [vmem:[%s0 + $0x658] sm:$0xff]
  %v400 = vld [vmem:[%s0 + $0x660] sm:$0xff]
  %v401 = vld [vmem:[%s0 + $0x668] sm:$0xff]
  %v402 = vld [vmem:[%s0 + $0x670] sm:$0xff]
  %v403 = vld [vmem:[%s0 + $0x678] sm:$0xff]
  %v404 = vld [vmem:[%s0 + $0x680] sm:$0xff]
  %v405 = vld [vmem:[%s0 + $0x688] sm:$0xff]
  %v406 = vld [vmem:[%s0 + $0x690] sm:$0xff]
  %v407 = vld [vmem:[%s0 + $0x698] sm:$0xff]
  %v408 = vld [vmem:[%s0 + $0x6a0] sm:$0xff]
  %v409 = vld [vmem:[%s0 + $0x6a8] sm:$0xff]
  %v410 = vld [vmem:[%s0 + $0x6b0] sm:$0xff]
  %v411 = vld [vmem:[%s0 + $0x6b8] sm:$0xff]
  %v412 = vld [vmem:[%s0 + $0x6c0] sm:$0xff]
  %v413 = vld [vmem:[%s0 + $0x6c8] sm:$0xff]
  %v414 = vld [vmem:[%s0 + $0x6d0] sm:$0xff]
  %v415 = vld [vmem:[%s0 + $0x6d8] sm:$0xff]
  %v416 = vld [vmem:[%s0 + $0x6e0] sm:$0xff]
  %v417 = vld [vmem:[%s0 + $0x6e8] sm:$0xff]
  %v418 = vld [vmem:[%s0 + $0x6f0] sm:$0xff]
  %v419 = vld [vmem:[%s0 + $0x6f8] sm:$0xff]
  %v420 = vld [vmem:[%s0 + $0x700] sm:$0xff]
  %v421 = vld [vmem:[%s0 + $0x708] sm:$0xff]
  %v422 = vld [vmem:[%s0 + $0x710] sm:$0xff]
  %v423 = vld [vmem:[%s0 + $0x718] sm:$0xff]
  %v424 = vld [vmem:[%s0 + $0x720] sm:$0xff]
  %v425 = vld [vmem:[%s0 + $0x728] sm:$0xff]
  %v426 = vld [vmem:[%s0 + $0x730] sm:$0xff]
  %v427 = vld [vmem:[%s0 + $0x738] sm:$0xff]
  %v428 = vld [vmem:[%s0 + $0x740] sm:$0xff]
  %v429 = vld [vmem:[%s0 + $0x748] sm:$0xff]
  %v430 = vld [vmem:[%s0 + $0x750] sm:$0xff]
  %v431 = vld [vmem:[%s0 + $0x758] sm:$0xff]
  %v432 = vld [vmem:[%s0 + $0x760] sm:$0xff]
  %v433 = vld [vmem:[%s0 + $0x768] sm:$0xff]
  %v434 = vld [vmem:[%s0 + $0x770] sm:$0xff]
  %v435 = vld [vmem:[%s0 + $0x778] sm:$0xff]
  %v436 = vld [vmem:[%s0 + $0x780] sm:$0xff]
  %v437 = vld [vmem:[%s0 + $0x788] sm:$0xff]
  %v438 = vld [vmem:[%s0 + $0x790] sm:$0xff]
  %v439 = vld [vmem:[%s0 + $0x798] sm:$0xff]
  %v440 = vld [vmem:[%s0 + $0x7a0] sm:$0xff]
  %v441 = vld [vmem:[%s0 + $0x7a8] sm:$0xff]
  %v442 = vld [vmem:[%s0 + $0x7b0] sm:$0xff]
  %v443 = vld [vmem:[%s0 + $0x7b8] sm:$0xff]
  %v444 = vld [vmem:[%s0 + $0x7c0] sm:$0xff]
  %v445 = vld [vmem:[%s0 + $0x7c8] sm:$0xff]
  %v446 = vld [vmem:[%s0 + $0x7d0] sm:$0xff]
  %v447 = vld [vmem:[%s0 + $0x7d8] sm:$0xff]
  %v448 = vld [vmem:[%s0 + $0x7e0] sm:$0xff]
  %v449 = vld [vmem:[%s0 + $0x7e8] sm:$0xff]
  %v450 = vld [vmem:[%s0 + $0x7f0] sm:$0xff]
  %v451 = vld [vmem:[%s0 + $0x7f8] sm:$0xff]
  %v452 = vld [vmem:[%s0 + $0x800] sm:$0xff]
  %v453 = vld [vmem:[%s0 + $0x808] sm:$0xff]
  %v454 = vld [vmem:[%s0 + $0x810] sm:$0xff]
  %v455 = vld [vmem:[%s0 + $0x818] sm:$0xff]
  %v456 = vld [vmem:[%s0 + $0x820] sm:$0xff]
  %v457 = vld [vmem:[%s0 + $0x828] sm:$0xff]
  %v458 = vld [vmem:[%s0 + $0x830] sm:$0xff]
  %v459 = vld [vmem:[%s0 + $0x838] sm:$0xff]
  %v460 = vld [vmem:[%s0 + $0x840] sm:$0xff]
  %v461 = vld [vmem:[%s0 + $0x848] sm:$0xff]
  %v462 = vld [vmem:[%s0 + $0x850] sm:$0xff]
  %v463 = vld [vmem:[%s0 + $0x858] sm:$0xff]
  %v464 = vld [vmem:[%s0 + $0x860] sm:$0xff]
  %v465 = vld [vmem:[%s0 + $0x868] sm:$0xff]
  %v466 = vld [vmem:[%s0 + $0x870] sm:$0xff]
  %v467 = vld [vmem:[%s0 + $0x878] sm:$0xff]
  %v468 = vld [vmem:[%s0 + $0x880] sm:$0xff]
  %v469 = vld [vmem:[%s0 + $0x888] sm:$0xff]
  %v470 = vld [vmem:[%s0 + $0x890] sm:$0xff]
  %v471 = vld [vmem:[%s0 + $0x898] sm:$0xff]
  %v472 = vld [vmem:[%s0 + $0x8a0] sm:$0xff]
  %v473 = vld [vmem:[%s0 + $0x8a8] sm:$0xff]
  %v474 = vld [vmem:[%s0 + $0x8b0] sm:$0xff]
  %v475 = vld [vmem:[%s0 + $0x8b8] sm:$0xff]
  %v476 = vld [vmem:[%s0 + $0x8c0] sm:$0xff]
  %v477 = vld [vmem:[%s0 + $0x8c8] sm:$0xff]
  %v478 = vld [vmem:[%s0 + $0x8d0] sm:$0xff]
  %v479 = vld [vmem:[%s0 + $0x8d8] sm:$0xff]
  %v480 = vld [vmem:[%s0 + $0x8e0] sm:$0xff]
  %v481 = vld [vmem:[%s0 + $0x8e8] sm:$0xff]
  %v482 = vld [vmem:[%s0 + $0x8f0] sm:$0xff]
  %v483 = vld [vmem:[%s0 + $0x8f8] sm:$0xff]
  %v484 = vld [vmem:[%s0 + $0x900] sm:$0xff]
  %v485 = vld [vmem:[%s0 + $0x908] sm:$0xff]
  %v486 = vld [vmem:[%s0 + $0x910] sm:$0xff]
  %v487 = vld [vmem:[%s0 + $0x918] sm:$0xff]
  %v488 = vld [vmem:[%s0 + $0x920] sm:$0xff]
  %v489 = vld [vmem:[%s0 + $0x928] sm:$0xff]
  %v490 = vld [vmem:[%s0 + $0x930] sm:$0xff]
  %v491 = vld [vmem:[%s0 + $0x938] sm:$0xff]
  %v492 = vld [vmem:[%s0 + $0x940] sm:$0xff]
  %v493 = vld [vmem:[%s0 + $0x948] sm:$0xff]
  %v494 = vld [vmem:[%s0 + $0x950] sm:$0xff]
  %v495 = vld [vmem:[%s0 + $0x958] sm:$0xff]
  %v496 = vld [vmem:[%s0 + $0x960] sm:$0xff]
  %v497 = vld [vmem:[%s0 + $0x968] sm:$0xff]
  %v498 = vld [vmem:[%s0 + $0x970] sm:$0xff]
  %v499 = vld [vmem:[%s0 + $0x978] sm:$0xff]
  %v500 = vld [vmem:[%s0 + $0x980] sm:$0xff]
  %v501 = vld [vmem:[%s0 + $0x988] sm:$0xff]
  %v502 = vld [vmem:[%s0 + $0x990] sm:$0xff]
  %v503 = vld [vmem:[%s0 + $0x998] sm:$0xff]
  %v504 = vld [vmem:[%s0 + $0x9a0] sm:$0xff]
  %v505 = vld [vmem:[%s0 + $0x9a8] sm:$0xff]
  %v506 = vld [vmem:[%s0 + $0x9b0] sm:$0xff]
  %v507 = vld [vmem:[%s0 + $0x9b8] sm:$0xff]
  %v508 = vld [vmem:[%s0 + $0x9c0] sm:$0xff]
  %v509 = vld [vmem:[%s0 + $0x9c8] sm:$0xff]
  %v510 = vld [vmem:[%s0 + $0x9d0] sm:$0xff]
  %v511 = vld [vmem:[%s0 + $0x9d8] sm:$0xff]
  %v512 = vld [vmem:[%s0 + $0x9e0] sm:$0xff]
  %v513 = vld [vmem:[%s0 + $0x9e8] sm:$0xff]
  %v514 = vld [vmem:[%s0 + $0x9f0] sm:$0xff]
  %v515 = vld [vmem:[%s0 + $0x9f8] sm:$0xff]
  %v516 = vld [vmem:[%s0 + $0xa00] sm:$0xff]
  %v517 = vld [vmem:[%s0 + $0xa08] sm:$0xff]
  %v518 = vld [vmem:[%s0 + $0xa10] sm:$0xff]
  %v519 = vld [vmem:[%s0 + $0xa18] sm:$0xff]
  %v520 = vld [vmem:[%s0 + $0xa20] sm:$0xff]
  %v521 = vld [vmem:[%s0 + $0xa28] sm:$0xff]
  %v522 = vld [vmem:[%s0 + $0xa30] sm:$0xff]
  %v523 = vld [vmem:[%s0 + $0xa38] sm:$0xff]
  %v524 = vld [vmem:[%s0 + $0xa40] sm:$0xff]
  %v525 = vld [vmem:[%s0 + $0xa48] sm:$0xff]
  %v526 = vld [vmem:[%s0 + $0xa50] sm:$0xff]
  %v527 = vld [vmem:[%s0 + $0xa58] sm:$0xff]
  %v528 = vld [vmem:[%s0 + $0xa60] sm:$0xff]
  %v529 = vld [vmem:[%s0 + $0xa68] sm:$0xff]
  %v530 = vld [vmem:[%s0 + $0xa70] sm:$0xff]
  %v531 = vld [vmem:[%s0 + $0xa78] sm:$0xff]
  %v532 = vld [vmem:[%s0 + $0xa80] sm:$0xff]
  %v533 = vld [vmem:[%s0 + $0xa88] sm:$0xff]
  %v534 = vld [vmem:[%s2] sm:$0xff]
  %v535 = vld [vmem:[%s2 + $0x8] sm:$0xff]
  %v536 = vld [vmem:[%s2 + $0x10] sm:$0xff]
  %v537 = vld [vmem:[%s2 + $0x18] sm:$0xff]
  %v538 = vld [vmem:[%s2 + $0x20] sm:$0xff]
  %v539 = vld [vmem:[%s2 + $0x28] sm:$0xff]
  %v540 = vld [vmem:[%s2 + $0x30] sm:$0xff]
  %v541 = vld [vmem:[%s2 + $0x38] sm:$0xff]
  %543 = vset.pattern.permute.xlu0 0
  %544 = vperm.xlu0 %543, %v534
  %v545 = vpop.permute.xlu0 %544
  %548 = vset.pattern.permute.xlu0 0
  %549 = vperm.xlu0 %548, %v535
  %v550 = vpop.permute.xlu0 %549
  %553 = vset.pattern.permute.xlu0 0
  %554 = vperm.xlu0 %553, %v536
  %v555 = vpop.permute.xlu0 %554
  %558 = vset.pattern.permute.xlu0 0
  %559 = vperm.xlu0 %558, %v537
  %v560 = vpop.permute.xlu0 %559
  %563 = vset.pattern.permute.xlu0 0
  %564 = vperm.xlu0 %563, %v538
  %v565 = vpop.permute.xlu0 %564
  %568 = vset.pattern.permute.xlu0 0
  %569 = vperm.xlu0 %568, %v539
  %v570 = vpop.permute.xlu0 %569
  %573 = vset.pattern.permute.xlu0 0
  %574 = vperm.xlu0 %573, %v540
  %v575 = vpop.permute.xlu0 %574
  %578 = vset.pattern.permute.xlu0 0
  %579 = vperm.xlu0 %578, %v541
  %v580 = vpop.permute.xlu0 %579
  %vm582 = vcmask 130048
  %v584 = vsel %vm582, %v41, 0
  %v587 = vsel %vm582, %v63, 0
  %v590 = vsel %vm582, %v85, 0
  %v593 = vsel %vm582, %v107, 0
  %v596 = vsel %vm582, %v129, 0
  %v599 = vsel %vm582, %v151, 0
  %v602 = vsel %vm582, %v173, 0
  %v605 = vsel %vm582, %v195, 0
  %607 = vmatprep.subr.mxu0 0.0
  %608 = vmatpush1.msra.mxu0 %v196
  %609 = vmatprep.subr.mxu0 0.0
  %610 = vmatpush1.msra.mxu0 %v197
  %611 = vmatprep.subr.mxu0 0.0
  %612 = vmatpush1.msra.mxu0 %v198
  %613 = vmatprep.subr.mxu0 0.0
  %614 = vmatpush1.msra.mxu0 %v199
  %615 = vmatprep.subr.mxu0 0.0
  %616 = vmatpush1.msra.mxu0 %v200
  %617 = vmatprep.subr.mxu0 0.0
  %618 = vmatpush1.msra.mxu0 %v201
  %619 = vmatprep.subr.mxu0 0.0
  %620 = vmatpush1.msra.mxu0 %v202
  %621 = vmatprep.subr.mxu0 0.0
  %622 = vmatpush1.msra.mxu0 %v203
  %623 = vmatprep.subr.mxu0 0.0
  %624 = vmatpush1.msra.mxu0 %v204
  %625 = vmatprep.subr.mxu0 0.0
  %626 = vmatpush1.msra.mxu0 %v205
  %627 = vmatprep.subr.mxu0 0.0
  %628 = vmatpush1.msra.mxu0 %v206
  %629 = vmatprep.subr.mxu0 0.0
  %630 = vmatpush1.msra.mxu0 %v207
  %631 = vmatprep.subr.mxu0 0.0
  %632 = vmatpush1.msra.mxu0 %v208
  %633 = vmatprep.subr.mxu0 0.0
  %634 = vmatpush1.msra.mxu0 %v209
  %635 = vmatprep.subr.mxu0 0.0
  %636 = vmatpush1.msra.mxu0 %v210
  %637 = vmatprep.subr.mxu0 0.0
  %638 = vmatpush1.msra.mxu0 %v211
  %639 = vmatprep.subr.mxu0 0.0
  %640 = vmatpush1.msra.mxu0 %v212
  %641 = vmatprep.subr.mxu0 0.0
  %642 = vmatpush1.msra.mxu0 %v213
  %643 = vmatprep.subr.mxu0 0.0
  %644 = vmatpush1.msra.mxu0 %v214
  %645 = vmatprep.subr.mxu0 0.0
  %646 = vmatpush1.msra.mxu0 %v215
  %647 = vmatprep.subr.mxu0 0.0
  %648 = vmatpush1.msra.mxu0 %v216
  %649 = vmatprep.subr.mxu0 0.0
  %650 = vmatpush1.msra.mxu0 %v217
  %651 = vmatprep.subr.mxu0 0.0
  %652 = vmatpush1.msra.mxu0 %v218
  %653 = vmatprep.subr.mxu0 0.0
  %654 = vmatpush1.msra.mxu0 %v219
  %655 = vmatprep.subr.mxu0 0.0
  %656 = vmatpush1.msra.mxu0 %v220
  %657 = vmatprep.subr.mxu0 0.0
  %658 = vmatpush1.msra.mxu0 %v221
  %659 = vmatprep.subr.mxu0 0.0
  %660 = vmatpush1.msra.mxu0 %v222
  %661 = vmatprep.subr.mxu0 0.0
  %662 = vmatpush1.msra.mxu0 %v223
  %663 = vmatprep.subr.mxu0 0.0
  %664 = vmatpush1.msra.mxu0 %v224
  %665 = vmatprep.subr.mxu0 0.0
  %666 = vmatpush1.msra.mxu0 %v225
  %667 = vmatprep.subr.mxu0 0.0
  %668 = vmatpush1.msra.mxu0 %v226
  %669 = vmatprep.subr.mxu0 0.0
  %670 = vmatpush1.msra.mxu0 %v227
  %671 = vmatprep.mubr.f32.mxu0 %v21
  %672 = vmatmul.mubr.f32.gmra.mrb[0].mxu0 %v20
  %v673 = vpop.f32.mrb[0].mxu0
  %v674 = vadd.f32 %v545, %v673
  %v675 = vpop.f32.mrb[0].mxu0
  %676 = vmatprep.mubr.f32.mxu0 %v43
  %677 = vmatmul.mubr.f32.gmra.mrb[0].mxu0 %v42
  %v678 = vpop.f32.mrb[0].mxu0
  %v679 = vadd.f32 %v550, %v678
  %v680 = vpop.f32.mrb[0].mxu0
  %681 = vmatprep.mubr.f32.mxu0 %v65
  %682 = vmatmul.mubr.f32.gmra.mrb[0].mxu0 %v64
  %v683 = vpop.f32.mrb[0].mxu0
  %v684 = vadd.f32 %v555, %v683
  %v685 = vpop.f32.mrb[0].mxu0
  %686 = vmatprep.mubr.f32.mxu0 %v87
  %687 = vmatmul.mubr.f32.gmra.mrb[0].mxu0 %v86
  %v688 = vpop.f32.mrb[0].mxu0
  %v689 = vadd.f32 %v560, %v688
  %v690 = vpop.f32.mrb[0].mxu0
  %691 = vmatprep.mubr.f32.mxu0 %v109
  %692 = vmatmul.mubr.f32.gmra.mrb[0].mxu0 %v108
  %v693 = vpop.f32.mrb[0].mxu0
  %v694 = vadd.f32 %v565, %v693
  %v695 = vpop.f32.mrb[0].mxu0
  %696 = vmatprep.mubr.f32.mxu0 %v131
  %697 = vmatmul.mubr.f32.gmra.mrb[0].mxu0 %v130
  %v698 = vpop.f32.mrb[0].mxu0
  %v699 = vadd.f32 %v570, %v698
  %v700 = vpop.f32.mrb[0].mxu0
  %701 = vmatprep.mubr.f32.mxu0 %v153
  %702 = vmatmul.mubr.f32.gmra.mrb[0].mxu0 %v152
  %v703 = vpop.f32.mrb[0].mxu0
  %v704 = vadd.f32 %v575, %v703
  %v705 = vpop.f32.mrb[0].mxu0
  %706 = vmatprep.mubr.f32.mxu0 %v175
  %707 = vmatmul.mubr.f32.gmra.mrb[0].mxu0 %v174
  %v708 = vpop.f32.mrb[0].mxu0
  %v709 = vadd.f32 %v580, %v708
  %v710 = vpop.f32.mrb[0].mxu0
  %711 = vdwg.mxu0
  %712 = vmatprep.subr.mxu0 0.0
  %713 = vmatpush1.msra.mxu0 %v228
  %714 = vmatprep.subr.mxu0 0.0
  %715 = vmatpush1.msra.mxu0 %v229
  %716 = vmatprep.subr.mxu0 0.0
  %717 = vmatpush1.msra.mxu0 %v230
  %718 = vmatprep.subr.mxu0 0.0
  %719 = vmatpush1.msra.mxu0 %v231
  %720 = vmatprep.subr.mxu0 0.0
  %721 = vmatpush1.msra.mxu0 %v232
  %722 = vmatprep.subr.mxu0 0.0
  %723 = vmatpush1.msra.mxu0 %v233
  %724 = vmatprep.subr.mxu0 0.0
  %725 = vmatpush1.msra.mxu0 %v234
  %726 = vmatprep.subr.mxu0 0.0
  %727 = vmatpush1.msra.mxu0 %v235
  %728 = vmatprep.subr.mxu0 0.0
  %729 = vmatpush1.msra.mxu0 %v236
  %730 = vmatprep.subr.mxu0 0.0
  %731 = vmatpush1.msra.mxu0 %v237
  %732 = vmatprep.subr.mxu0 0.0
  %733 = vmatpush1.msra.mxu0 %v238
  %734 = vmatprep.subr.mxu0 0.0
  %735 = vmatpush1.msra.mxu0 %v239
  %736 = vmatprep.subr.mxu0 0.0
  %737 = vmatpush1.msra.mxu0 %v240
  %738 = vmatprep.subr.mxu0 0.0
  %739 = vmatpush1.msra.mxu0 %v241
  %740 = vmatprep.subr.mxu0 0.0
  %741 = vmatpush1.msra.mxu0 %v242
  %742 = vmatprep.subr.mxu0 0.0
  %743 = vmatpush1.msra.mxu0 %v243
  %744 = vmatprep.subr.mxu0 0.0
  %745 = vmatpush1.msra.mxu0 %v244
  %746 = vmatprep.subr.mxu0 0.0
  %747 = vmatpush1.msra.mxu0 %v245
  %748 = vmatprep.subr.mxu0 0.0
  %749 = vmatpush1.msra.mxu0 %v246
  %750 = vmatprep.subr.mxu0 0.0
  %751 = vmatpush1.msra.mxu0 %v247
  %752 = vmatprep.subr.mxu0 0.0
  %753 = vmatpush1.msra.mxu0 %v248
  %754 = vmatprep.subr.mxu0 0.0
  %755 = vmatpush1.msra.mxu0 %v249
  %756 = vmatprep.subr.mxu0 0.0
  %757 = vmatpush1.msra.mxu0 %v250
  %758 = vmatprep.subr.mxu0 0.0
  %759 = vmatpush1.msra.mxu0 %v251
  %760 = vmatprep.subr.mxu0 0.0
  %761 = vmatpush1.msra.mxu0 %v252
  %762 = vmatprep.subr.mxu0 0.0
  %763 = vmatpush1.msra.mxu0 %v253
  %764 = vmatprep.subr.mxu0 0.0
  %765 = vmatpush1.msra.mxu0 %v254
  %766 = vmatprep.subr.mxu0 0.0
  %767 = vmatpush1.msra.mxu0 %v255
  %768 = vmatprep.subr.mxu0 0.0
  %769 = vmatpush1.msra.mxu0 %v256
  %770 = vmatprep.subr.mxu0 0.0
  %771 = vmatpush1.msra.mxu0 %v257
  %772 = vmatprep.subr.mxu0 0.0
  %773 = vmatpush1.msra.mxu0 %v258
  %774 = vmatprep.subr.mxu0 0.0
  %775 = vmatpush1.msra.mxu0 %v259
  %776 = vmatprep.mubr.f32.mxu0 %v23
  %777 = vmatmul.mubr.f32.gmra.mrb[0].mxu0 %v22
  %v778 = vpop.f32.mrb[0].mxu0
  %v779 = vadd.f32 %v674, %v778
  %v780 = vpop.f32.mrb[0].mxu0
  %781 = vmatprep.mubr.f32.mxu0 %v45
  %782 = vmatmul.mubr.f32.gmra.mrb[0].mxu0 %v44
  %v783 = vpop.f32.mrb[0].mxu0
  %v784 = vadd.f32 %v679, %v783
  %v785 = vpop.f32.mrb[0].mxu0
  %786 = vmatprep.mubr.f32.mxu0 %v67
  %787 = vmatmul.mubr.f32.gmra.mrb[0].mxu0 %v66
  %v788 = vpop.f32.mrb[0].mxu0
  %v789 = vadd.f32 %v684, %v788
  %v790 = vpop.f32.mrb[0].mxu0
  %791 = vmatprep.mubr.f32.mxu0 %v89
  %792 = vmatmul.mubr.f32.gmra.mrb[0].mxu0 %v88
  %v793 = vpop.f32.mrb[0].mxu0
  %v794 = vadd.f32 %v689, %v793
  %v795 = vpop.f32.mrb[0].mxu0
  %796 = vmatprep.mubr.f32.mxu0 %v111
  %797 = vmatmul.mubr.f32.gmra.mrb[0].mxu0 %v110
  %v798 = vpop.f32.mrb[0].mxu0
  %v799 = vadd.f32 %v694, %v798
  %v800 = vpop.f32.mrb[0].mxu0
  %801 = vmatprep.mubr.f32.mxu0 %v133
  %802 = vmatmul.mubr.f32.gmra.mrb[0].mxu0 %v132
  %v803 = vpop.f32.mrb[0].mxu0
  %v804 = vadd.f32 %v699, %v803
  %v805 = vpop.f32.mrb[0].mxu0
  %806 = vmatprep.mubr.f32.mxu0 %v155
  %807 = vmatmul.mubr.f32.gmra.mrb[0].mxu0 %v154
  %v808 = vpop.f32.mrb[0].mxu0
  %v809 = vadd.f32 %v704, %v808
  %v810 = vpop.f32.mrb[0].mxu0
  %811 = vmatprep.mubr.f32.mxu0 %v177
  %812 = vmatmul.mubr.f32.gmra.mrb[0].mxu0 %v176
  %v813 = vpop.f32.mrb[0].mxu0
  %v814 = vadd.f32 %v709, %v813
  %v815 = vpop.f32.mrb[0].mxu0
  %816 = vdwg.mxu0
  %817 = vmatprep.subr.mxu0 0.0
  %818 = vmatpush1.msra.mxu0 %v260
  %819 = vmatprep.subr.mxu0 0.0
  %820 = vmatpush1.msra.mxu0 %v261
  %821 = vmatprep.subr.mxu0 0.0
  %822 = vmatpush1.msra.mxu0 %v262
  %823 = vmatprep.subr.mxu0 0.0
  %824 = vmatpush1.msra.mxu0 %v263
  %825 = vmatprep.subr.mxu0 0.0
  %826 = vmatpush1.msra.mxu0 %v264
  %827 = vmatprep.subr.mxu0 0.0
  %828 = vmatpush1.msra.mxu0 %v265
  %829 = vmatprep.subr.mxu0 0.0
  %830 = vmatpush1.msra.mxu0 %v266
  %831 = vmatprep.subr.mxu0 0.0
  %832 = vmatpush1.msra.mxu0 %v267
  %833 = vmatprep.subr.mxu0 0.0
  %834 = vmatpush1.msra.mxu0 %v268
  %835 = vmatprep.subr.mxu0 0.0
  %836 = vmatpush1.msra.mxu0 %v269
  %837 = vmatprep.subr.mxu0 0.0
  %838 = vmatpush1.msra.mxu0 %v270
  %839 = vmatprep.subr.mxu0 0.0
  %840 = vmatpush1.msra.mxu0 %v271
  %841 = vmatprep.subr.mxu0 0.0
  %842 = vmatpush1.msra.mxu0 %v272
  %843 = vmatprep.subr.mxu0 0.0
  %844 = vmatpush1.msra.mxu0 %v273
  %845 = vmatprep.subr.mxu0 0.0
  %846 = vmatpush1.msra.mxu0 %v274
  %847 = vmatprep.subr.mxu0 0.0
  %848 = vmatpush1.msra.mxu0 %v275
  %849 = vmatprep.subr.mxu0 0.0
  %850 = vmatpush1.msra.mxu0 %v276
  %851 = vmatprep.subr.mxu0 0.0
  %852 = vmatpush1.msra.mxu0 %v277
  %853 = vmatprep.subr.mxu0 0.0
  %854 = vmatpush1.msra.mxu0 %v278
  %855 = vmatprep.subr.mxu0 0.0
  %856 = vmatpush1.msra.mxu0 %v279
  %857 = vmatprep.subr.mxu0 0.0
  %858 = vmatpush1.msra.mxu0 %v280
  %859 = vmatprep.subr.mxu0 0.0
  %860 = vmatpush1.msra.mxu0 %v281
  %861 = vmatprep.subr.mxu0 0.0
  %862 = vmatpush1.msra.mxu0 %v282
  %863 = vmatprep.subr.mxu0 0.0
  %864 = vmatpush1.msra.mxu0 %v283
  %865 = vmatprep.subr.mxu0 0.0
  %866 = vmatpush1.msra.mxu0 %v284
  %867 = vmatprep.subr.mxu0 0.0
  %868 = vmatpush1.msra.mxu0 %v285
  %869 = vmatprep.subr.mxu0 0.0
  %870 = vmatpush1.msra.mxu0 %v286
  %871 = vmatprep.subr.mxu0 0.0
  %872 = vmatpush1.msra.mxu0 %v287
  %873 = vmatprep.subr.mxu0 0.0
  %874 = vmatpush1.msra.mxu0 %v288
  %875 = vmatprep.subr.mxu0 0.0
  %876 = vmatpush1.msra.mxu0 %v289
  %877 = vmatprep.subr.mxu0 0.0
  %878 = vmatpush1.msra.mxu0 %v290
  %879 = vmatprep.subr.mxu0 0.0
  %880 = vmatpush1.msra.mxu0 %v291
  %881 = vmatprep.mubr.f32.mxu0 %v25
  %882 = vmatmul.mubr.f32.gmra.mrb[0].mxu0 %v24
  %v883 = vpop.f32.mrb[0].mxu0
  %v884 = vadd.f32 %v779, %v883
  %v885 = vpop.f32.mrb[0].mxu0
  %886 = vmatprep.mubr.f32.mxu0 %v47
  %887 = vmatmul.mubr.f32.gmra.mrb[0].mxu0 %v46
  %v888 = vpop.f32.mrb[0].mxu0
  %v889 = vadd.f32 %v784, %v888
  %v890 = vpop.f32.mrb[0].mxu0
  %891 = vmatprep.mubr.f32.mxu0 %v69
  %892 = vmatmul.mubr.f32.gmra.mrb[0].mxu0 %v68
  %v893 = vpop.f32.mrb[0].mxu0
  %v894 = vadd.f32 %v789, %v893
  %v895 = vpop.f32.mrb[0].mxu0
  %896 = vmatprep.mubr.f32.mxu0 %v91
  %897 = vmatmul.mubr.f32.gmra.mrb[0].mxu0 %v90
  %v898 = vpop.f32.mrb[0].mxu0
  %v899 = vadd.f32 %v794, %v898
  %v900 = vpop.f32.mrb[0].mxu0
  %901 = vmatprep.mubr.f32.mxu0 %v113
  %902 = vmatmul.mubr.f32.gmra.mrb[0].mxu0 %v112
  %v903 = vpop.f32.mrb[0].mxu0
  %v904 = vadd.f32 %v799, %v903
  %v905 = vpop.f32.mrb[0].mxu0
  %906 = vmatprep.mubr.f32.mxu0 %v135
  %907 = vmatmul.mubr.f32.gmra.mrb[0].mxu0 %v134
  %v908 = vpop.f32.mrb[0].mxu0
  %v909 = vadd.f32 %v804, %v908
  %v910 = vpop.f32.mrb[0].mxu0
  %911 = vmatprep.mubr.f32.mxu0 %v157
  %912 = vmatmul.mubr.f32.gmra.mrb[0].mxu0 %v156
  %v913 = vpop.f32.mrb[0].mxu0
  %v914 = vadd.f32 %v809, %v913
  %v915 = vpop.f32.mrb[0].mxu0
  %916 = vmatprep.mubr.f32.mxu0 %v179
  %917 = vmatmul.mubr.f32.gmra.mrb[0].mxu0 %v178
  %v918 = vpop.f32.mrb[0].mxu0
  %v919 = vadd.f32 %v814, %v918
  %v920 = vpop.f32.mrb[0].mxu0
  %921 = vdwg.mxu0
  %922 = vmatprep.subr.mxu0 0.0
  %923 = vmatpush1.msra.mxu0 %v292
  %924 = vmatprep.subr.mxu0 0.0
  %925 = vmatpush1.msra.mxu0 %v293
  %926 = vmatprep.subr.mxu0 0.0
  %927 = vmatpush1.msra.mxu0 %v294
  %928 = vmatprep.subr.mxu0 0.0
  %929 = vmatpush1.msra.mxu0 %v295
  %930 = vmatprep.subr.mxu0 0.0
  %931 = vmatpush1.msra.mxu0 %v296
  %932 = vmatprep.subr.mxu0 0.0
  %933 = vmatpush1.msra.mxu0 %v297
  %934 = vmatprep.subr.mxu0 0.0
  %935 = vmatpush1.msra.mxu0 %v298
  %936 = vmatprep.subr.mxu0 0.0
  %937 = vmatpush1.msra.mxu0 %v299
  %938 = vmatprep.subr.mxu0 0.0
  %939 = vmatpush1.msra.mxu0 %v300
  %940 = vmatprep.subr.mxu0 0.0
  %941 = vmatpush1.msra.mxu0 %v301
  %942 = vmatprep.subr.mxu0 0.0
  %943 = vmatpush1.msra.mxu0 %v302
  %944 = vmatprep.subr.mxu0 0.0
  %945 = vmatpush1.msra.mxu0 %v303
  %946 = vmatprep.subr.mxu0 0.0
  %947 = vmatpush1.msra.mxu0 %v304
  %948 = vmatprep.subr.mxu0 0.0
  %949 = vmatpush1.msra.mxu0 %v305
  %950 = vmatprep.subr.mxu0 0.0
  %951 = vmatpush1.msra.mxu0 %v306
  %952 = vmatprep.subr.mxu0 0.0
  %953 = vmatpush1.msra.mxu0 %v307
  %954 = vmatprep.subr.mxu0 0.0
  %955 = vmatpush1.msra.mxu0 %v308
  %956 = vmatprep.subr.mxu0 0.0
  %957 = vmatpush1.msra.mxu0 %v309
  %958 = vmatprep.subr.mxu0 0.0
  %959 = vmatpush1.msra.mxu0 %v310
  %960 = vmatprep.subr.mxu0 0.0
  %961 = vmatpush1.msra.mxu0 %v311
  %962 = vmatprep.subr.mxu0 0.0
  %963 = vmatpush1.msra.mxu0 %v312
  %964 = vmatprep.subr.mxu0 0.0
  %965 = vmatpush1.msra.mxu0 %v313
  %966 = vmatprep.subr.mxu0 0.0
  %967 = vmatpush1.msra.mxu0 %v314
  %968 = vmatprep.subr.mxu0 0.0
  %969 = vmatpush1.msra.mxu0 %v315
  %970 = vmatprep.subr.mxu0 0.0
  %971 = vmatpush1.msra.mxu0 %v316
  %972 = vmatprep.subr.mxu0 0.0
  %973 = vmatpush1.msra.mxu0 %v317
  %974 = vmatprep.subr.mxu0 0.0
  %975 = vmatpush1.msra.mxu0 %v318
  %976 = vmatprep.subr.mxu0 0.0
  %977 = vmatpush1.msra.mxu0 %v319
  %978 = vmatprep.subr.mxu0 0.0
  %979 = vmatpush1.msra.mxu0 %v320
  %980 = vmatprep.subr.mxu0 0.0
  %981 = vmatpush1.msra.mxu0 %v321
  %982 = vmatprep.subr.mxu0 0.0
  %983 = vmatpush1.msra.mxu0 %v322
  %984 = vmatprep.subr.mxu0 0.0
  %985 = vmatpush1.msra.mxu0 %v323
  %986 = vmatprep.mubr.f32.mxu0 %v27
  %987 = vmatmul.mubr.f32.gmra.mrb[0].mxu0 %v26
  %v988 = vpop.f32.mrb[0].mxu0
  %v989 = vadd.f32 %v884, %v988
  %v990 = vpop.f32.mrb[0].mxu0
  %991 = vmatprep.mubr.f32.mxu0 %v49
  %992 = vmatmul.mubr.f32.gmra.mrb[0].mxu0 %v48
  %v993 = vpop.f32.mrb[0].mxu0
  %v994 = vadd.f32 %v889, %v993
  %v995 = vpop.f32.mrb[0].mxu0
  %996 = vmatprep.mubr.f32.mxu0 %v71
  %997 = vmatmul.mubr.f32.gmra.mrb[0].mxu0 %v70
  %v998 = vpop.f32.mrb[0].mxu0
  %v999 = vadd.f32 %v894, %v998
  %v1000 = vpop.f32.mrb[0].mxu0
  %1001 = vmatprep.mubr.f32.mxu0 %v93
  %1002 = vmatmul.mubr.f32.gmra.mrb[0].mxu0 %v92
  %v1003 = vpop.f32.mrb[0].mxu0
  %v1004 = vadd.f32 %v899, %v1003
  %v1005 = vpop.f32.mrb[0].mxu0
  %1006 = vmatprep.mubr.f32.mxu0 %v115
  %1007 = vmatmul.mubr.f32.gmra.mrb[0].mxu0 %v114
  %v1008 = vpop.f32.mrb[0].mxu0
  %v1009 = vadd.f32 %v904, %v1008
  %v1010 = vpop.f32.mrb[0].mxu0
  %1011 = vmatprep.mubr.f32.mxu0 %v137
  %1012 = vmatmul.mubr.f32.gmra.mrb[0].mxu0 %v136
  %v1013 = vpop.f32.mrb[0].mxu0
  %v1014 = vadd.f32 %v909, %v1013
  %v1015 = vpop.f32.mrb[0].mxu0
  %1016 = vmatprep.mubr.f32.mxu0 %v159
  %1017 = vmatmul.mubr.f32.gmra.mrb[0].mxu0 %v158
  %v1018 = vpop.f32.mrb[0].mxu0
  %v1019 = vadd.f32 %v914, %v1018
  %v1020 = vpop.f32.mrb[0].mxu0
  %1021 = vmatprep.mubr.f32.mxu0 %v181
  %1022 = vmatmul.mubr.f32.gmra.mrb[0].mxu0 %v180
  %v1023 = vpop.f32.mrb[0].mxu0
  %v1024 = vadd.f32 %v919, %v1023
  %v1025 = vpop.f32.mrb[0].mxu0
  %1026 = vdwg.mxu0
  %1027 = vmatprep.subr.mxu0 0.0
  %1028 = vmatpush1.msra.mxu0 %v324
  %1029 = vmatprep.subr.mxu0 0.0
  %1030 = vmatpush1.msra.mxu0 %v325
  %1031 = vmatprep.subr.mxu0 0.0
  %1032 = vmatpush1.msra.mxu0 %v326
  %1033 = vmatprep.subr.mxu0 0.0
  %1034 = vmatpush1.msra.mxu0 %v327
  %1035 = vmatprep.subr.mxu0 0.0
  %1036 = vmatpush1.msra.mxu0 %v328
  %1037 = vmatprep.subr.mxu0 0.0
  %1038 = vmatpush1.msra.mxu0 %v329
  %1039 = vmatprep.subr.mxu0 0.0
  %1040 = vmatpush1.msra.mxu0 %v330
  %1041 = vmatprep.subr.mxu0 0.0
  %1042 = vmatpush1.msra.mxu0 %v331
  %1043 = vmatprep.subr.mxu0 0.0
  %1044 = vmatpush1.msra.mxu0 %v332
  %1045 = vmatprep.subr.mxu0 0.0
  %1046 = vmatpush1.msra.mxu0 %v333
  %1047 = vmatprep.subr.mxu0 0.0
  %1048 = vmatpush1.msra.mxu0 %v334
  %1049 = vmatprep.subr.mxu0 0.0
  %1050 = vmatpush1.msra.mxu0 %v335
  %1051 = vmatprep.subr.mxu0 0.0
  %1052 = vmatpush1.msra.mxu0 %v336
  %1053 = vmatprep.subr.mxu0 0.0
  %1054 = vmatpush1.msra.mxu0 %v337
  %1055 = vmatprep.subr.mxu0 0.0
  %1056 = vmatpush1.msra.mxu0 %v338
  %1057 = vmatprep.subr.mxu0 0.0
  %1058 = vmatpush1.msra.mxu0 %v339
  %1059 = vmatprep.subr.mxu0 0.0
  %1060 = vmatpush1.msra.mxu0 %v340
  %1061 = vmatprep.subr.mxu0 0.0
  %1062 = vmatpush1.msra.mxu0 %v341
  %1063 = vmatprep.subr.mxu0 0.0
  %1064 = vmatpush1.msra.mxu0 %v342
  %1065 = vmatprep.subr.mxu0 0.0
  %1066 = vmatpush1.msra.mxu0 %v343
  %1067 = vmatprep.subr.mxu0 0.0
  %1068 = vmatpush1.msra.mxu0 %v344
  %1069 = vmatprep.subr.mxu0 0.0
  %1070 = vmatpush1.msra.mxu0 %v345
  %1071 = vmatprep.subr.mxu0 0.0
  %1072 = vmatpush1.msra.mxu0 %v346
  %1073 = vmatprep.subr.mxu0 0.0
  %1074 = vmatpush1.msra.mxu0 %v347
  %1075 = vmatprep.subr.mxu0 0.0
  %1076 = vmatpush1.msra.mxu0 %v348
  %1077 = vmatprep.subr.mxu0 0.0
  %1078 = vmatpush1.msra.mxu0 %v349
  %1079 = vmatprep.subr.mxu0 0.0
  %1080 = vmatpush1.msra.mxu0 %v350
  %1081 = vmatprep.subr.mxu0 0.0
  %1082 = vmatpush1.msra.mxu0 %v351
  %1083 = vmatprep.subr.mxu0 0.0
  %1084 = vmatpush1.msra.mxu0 %v352
  %1085 = vmatprep.subr.mxu0 0.0
  %1086 = vmatpush1.msra.mxu0 %v353
  %1087 = vmatprep.subr.mxu0 0.0
  %1088 = vmatpush1.msra.mxu0 %v354
  %1089 = vmatprep.subr.mxu0 0.0
  %1090 = vmatpush1.msra.mxu0 %v355
  %1091 = vmatprep.mubr.f32.mxu0 %v29
  %1092 = vmatmul.mubr.f32.gmra.mrb[0].mxu0 %v28
  %v1093 = vpop.f32.mrb[0].mxu0
  %v1094 = vadd.f32 %v989, %v1093
  %v1095 = vpop.f32.mrb[0].mxu0
  %1096 = vmatprep.mubr.f32.mxu0 %v51
  %1097 = vmatmul.mubr.f32.gmra.mrb[0].mxu0 %v50
  %v1098 = vpop.f32.mrb[0].mxu0
  %v1099 = vadd.f32 %v994, %v1098
  %v1100 = vpop.f32.mrb[0].mxu0
  %1101 = vmatprep.mubr.f32.mxu0 %v73
  %1102 = vmatmul.mubr.f32.gmra.mrb[0].mxu0 %v72
  %v1103 = vpop.f32.mrb[0].mxu0
  %v1104 = vadd.f32 %v999, %v1103
  %v1105 = vpop.f32.mrb[0].mxu0
  %1106 = vmatprep.mubr.f32.mxu0 %v95
  %1107 = vmatmul.mubr.f32.gmra.mrb[0].mxu0 %v94
  %v1108 = vpop.f32.mrb[0].mxu0
  %v1109 = vadd.f32 %v1004, %v1108
  %v1110 = vpop.f32.mrb[0].mxu0
  %1111 = vmatprep.mubr.f32.mxu0 %v117
  %1112 = vmatmul.mubr.f32.gmra.mrb[0].mxu0 %v116
  %v1113 = vpop.f32.mrb[0].mxu0
  %v1114 = vadd.f32 %v1009, %v1113
  %v1115 = vpop.f32.mrb[0].mxu0
  %1116 = vmatprep.mubr.f32.mxu0 %v139
  %1117 = vmatmul.mubr.f32.gmra.mrb[0].mxu0 %v138
  %v1118 = vpop.f32.mrb[0].mxu0
  %v1119 = vadd.f32 %v1014, %v1118
  %v1120 = vpop.f32.mrb[0].mxu0
  %1121 = vmatprep.mubr.f32.mxu0 %v161
  %1122 = vmatmul.mubr.f32.gmra.mrb[0].mxu0 %v160
  %v1123 = vpop.f32.mrb[0].mxu0
  %v1124 = vadd.f32 %v1019, %v1123
  %v1125 = vpop.f32.mrb[0].mxu0
  %1126 = vmatprep.mubr.f32.mxu0 %v183
  %1127 = vmatmul.mubr.f32.gmra.mrb[0].mxu0 %v182
  %v1128 = vpop.f32.mrb[0].mxu0
  %v1129 = vadd.f32 %v1024, %v1128
  %v1130 = vpop.f32.mrb[0].mxu0
  %1131 = vdwg.mxu0
  %1132 = vmatprep.subr.mxu0 0.0
  %1133 = vmatpush1.msra.mxu0 %v356
  %1134 = vmatprep.subr.mxu0 0.0
  %1135 = vmatpush1.msra.mxu0 %v357
  %1136 = vmatprep.subr.mxu0 0.0
  %1137 = vmatpush1.msra.mxu0 %v358
  %1138 = vmatprep.subr.mxu0 0.0
  %1139 = vmatpush1.msra.mxu0 %v359
  %1140 = vmatprep.subr.mxu0 0.0
  %1141 = vmatpush1.msra.mxu0 %v360
  %1142 = vmatprep.subr.mxu0 0.0
  %1143 = vmatpush1.msra.mxu0 %v361
  %1144 = vmatprep.subr.mxu0 0.0
  %1145 = vmatpush1.msra.mxu0 %v362
  %1146 = vmatprep.subr.mxu0 0.0
  %1147 = vmatpush1.msra.mxu0 %v363
  %1148 = vmatprep.subr.mxu0 0.0
  %1149 = vmatpush1.msra.mxu0 %v364
  %1150 = vmatprep.subr.mxu0 0.0
  %1151 = vmatpush1.msra.mxu0 %v365
  %1152 = vmatprep.subr.mxu0 0.0
  %1153 = vmatpush1.msra.mxu0 %v366
  %1154 = vmatprep.subr.mxu0 0.0
  %1155 = vmatpush1.msra.mxu0 %v367
  %1156 = vmatprep.subr.mxu0 0.0
  %1157 = vmatpush1.msra.mxu0 %v368
  %1158 = vmatprep.subr.mxu0 0.0
  %1159 = vmatpush1.msra.mxu0 %v369
  %1160 = vmatprep.subr.mxu0 0.0
  %1161 = vmatpush1.msra.mxu0 %v370
  %1162 = vmatprep.subr.mxu0 0.0
  %1163 = vmatpush1.msra.mxu0 %v371
  %1164 = vmatprep.subr.mxu0 0.0
  %1165 = vmatpush1.msra.mxu0 %v372
  %1166 = vmatprep.subr.mxu0 0.0
  %1167 = vmatpush1.msra.mxu0 %v373
  %1168 = vmatprep.subr.mxu0 0.0
  %1169 = vmatpush1.msra.mxu0 %v374
  %1170 = vmatprep.subr.mxu0 0.0
  %1171 = vmatpush1.msra.mxu0 %v375
  %1172 = vmatprep.subr.mxu0 0.0
  %1173 = vmatpush1.msra.mxu0 %v376
  %1174 = vmatprep.subr.mxu0 0.0
  %1175 = vmatpush1.msra.mxu0 %v377
  %1176 = vmatprep.subr.mxu0 0.0
  %1177 = vmatpush1.msra.mxu0 %v378
  %1178 = vmatprep.subr.mxu0 0.0
  %1179 = vmatpush1.msra.mxu0 %v379
  %1180 = vmatprep.subr.mxu0 0.0
  %1181 = vmatpush1.msra.mxu0 %v380
  %1182 = vmatprep.subr.mxu0 0.0
  %1183 = vmatpush1.msra.mxu0 %v381
  %1184 = vmatprep.subr.mxu0 0.0
  %1185 = vmatpush1.msra.mxu0 %v382
  %1186 = vmatprep.subr.mxu0 0.0
  %1187 = vmatpush1.msra.mxu0 %v383
  %1188 = vmatprep.subr.mxu0 0.0
  %1189 = vmatpush1.msra.mxu0 %v384
  %1190 = vmatprep.subr.mxu0 0.0
  %1191 = vmatpush1.msra.mxu0 %v385
  %1192 = vmatprep.subr.mxu0 0.0
  %1193 = vmatpush1.msra.mxu0 %v386
  %1194 = vmatprep.subr.mxu0 0.0
  %1195 = vmatpush1.msra.mxu0 %v387
  %1196 = vmatprep.mubr.f32.mxu0 %v31
  %1197 = vmatmul.mubr.f32.gmra.mrb[0].mxu0 %v30
  %v1198 = vpop.f32.mrb[0].mxu0
  %v1199 = vadd.f32 %v1094, %v1198
  %v1200 = vpop.f32.mrb[0].mxu0
  %1201 = vmatprep.mubr.f32.mxu0 %v53
  %1202 = vmatmul.mubr.f32.gmra.mrb[0].mxu0 %v52
  %v1203 = vpop.f32.mrb[0].mxu0
  %v1204 = vadd.f32 %v1099, %v1203
  %v1205 = vpop.f32.mrb[0].mxu0
  %1206 = vmatprep.mubr.f32.mxu0 %v75
  %1207 = vmatmul.mubr.f32.gmra.mrb[0].mxu0 %v74
  %v1208 = vpop.f32.mrb[0].mxu0
  %v1209 = vadd.f32 %v1104, %v1208
  %v1210 = vpop.f32.mrb[0].mxu0
  %1211 = vmatprep.mubr.f32.mxu0 %v97
  %1212 = vmatmul.mubr.f32.gmra.mrb[0].mxu0 %v96
  %v1213 = vpop.f32.mrb[0].mxu0
  %v1214 = vadd.f32 %v1109, %v1213
  %v1215 = vpop.f32.mrb[0].mxu0
  %1216 = vmatprep.mubr.f32.mxu0 %v119
  %1217 = vmatmul.mubr.f32.gmra.mrb[0].mxu0 %v118
  %v1218 = vpop.f32.mrb[0].mxu0
  %v1219 = vadd.f32 %v1114, %v1218
  %v1220 = vpop.f32.mrb[0].mxu0
  %1221 = vmatprep.mubr.f32.mxu0 %v141
  %1222 = vmatmul.mubr.f32.gmra.mrb[0].mxu0 %v140
  %v1223 = vpop.f32.mrb[0].mxu0
  %v1224 = vadd.f32 %v1119, %v1223
  %v1225 = vpop.f32.mrb[0].mxu0
  %1226 = vmatprep.mubr.f32.mxu0 %v163
  %1227 = vmatmul.mubr.f32.gmra.mrb[0].mxu0 %v162
  %v1228 = vpop.f32.mrb[0].mxu0
  %v1229 = vadd.f32 %v1124, %v1228
  %v1230 = vpop.f32.mrb[0].mxu0
  %1231 = vmatprep.mubr.f32.mxu0 %v185
  %1232 = vmatmul.mubr.f32.gmra.mrb[0].mxu0 %v184
  %v1233 = vpop.f32.mrb[0].mxu0
  %v1234 = vadd.f32 %v1129, %v1233
  %v1235 = vpop.f32.mrb[0].mxu0
  %1236 = vdwg.mxu0
  %1237 = vmatprep.subr.mxu0 0.0
  %1238 = vmatpush1.msra.mxu0 %v388
  %1239 = vmatprep.subr.mxu0 0.0
  %1240 = vmatpush1.msra.mxu0 %v389
  %1241 = vmatprep.subr.mxu0 0.0
  %1242 = vmatpush1.msra.mxu0 %v390
  %1243 = vmatprep.subr.mxu0 0.0
  %1244 = vmatpush1.msra.mxu0 %v391
  %1245 = vmatprep.subr.mxu0 0.0
  %1246 = vmatpush1.msra.mxu0 %v392
  %1247 = vmatprep.subr.mxu0 0.0
  %1248 = vmatpush1.msra.mxu0 %v393
  %1249 = vmatprep.subr.mxu0 0.0
  %1250 = vmatpush1.msra.mxu0 %v394
  %1251 = vmatprep.subr.mxu0 0.0
  %1252 = vmatpush1.msra.mxu0 %v395
  %1253 = vmatprep.subr.mxu0 0.0
  %1254 = vmatpush1.msra.mxu0 %v396
  %1255 = vmatprep.subr.mxu0 0.0
  %1256 = vmatpush1.msra.mxu0 %v397
  %1257 = vmatprep.subr.mxu0 0.0
  %1258 = vmatpush1.msra.mxu0 %v398
  %1259 = vmatprep.subr.mxu0 0.0
  %1260 = vmatpush1.msra.mxu0 %v399
  %1261 = vmatprep.subr.mxu0 0.0
  %1262 = vmatpush1.msra.mxu0 %v400
  %1263 = vmatprep.subr.mxu0 0.0
  %1264 = vmatpush1.msra.mxu0 %v401
  %1265 = vmatprep.subr.mxu0 0.0
  %1266 = vmatpush1.msra.mxu0 %v402
  %1267 = vmatprep.subr.mxu0 0.0
  %1268 = vmatpush1.msra.mxu0 %v403
  %1269 = vmatprep.subr.mxu0 0.0
  %1270 = vmatpush1.msra.mxu0 %v404
  %1271 = vmatprep.subr.mxu0 0.0
  %1272 = vmatpush1.msra.mxu0 %v405
  %1273 = vmatprep.subr.mxu0 0.0
  %1274 = vmatpush1.msra.mxu0 %v406
  %1275 = vmatprep.subr.mxu0 0.0
  %1276 = vmatpush1.msra.mxu0 %v407
  %1277 = vmatprep.subr.mxu0 0.0
  %1278 = vmatpush1.msra.mxu0 %v408
  %1279 = vmatprep.subr.mxu0 0.0
  %1280 = vmatpush1.msra.mxu0 %v409
  %1281 = vmatprep.subr.mxu0 0.0
  %1282 = vmatpush1.msra.mxu0 %v410
  %1283 = vmatprep.subr.mxu0 0.0
  %1284 = vmatpush1.msra.mxu0 %v411
  %1285 = vmatprep.subr.mxu0 0.0
  %1286 = vmatpush1.msra.mxu0 %v412
  %1287 = vmatprep.subr.mxu0 0.0
  %1288 = vmatpush1.msra.mxu0 %v413
  %1289 = vmatprep.subr.mxu0 0.0
  %1290 = vmatpush1.msra.mxu0 %v414
  %1291 = vmatprep.subr.mxu0 0.0
  %1292 = vmatpush1.msra.mxu0 %v415
  %1293 = vmatprep.subr.mxu0 0.0
  %1294 = vmatpush1.msra.mxu0 %v416
  %1295 = vmatprep.subr.mxu0 0.0
  %1296 = vmatpush1.msra.mxu0 %v417
  %1297 = vmatprep.subr.mxu0 0.0
  %1298 = vmatpush1.msra.mxu0 %v418
  %1299 = vmatprep.subr.mxu0 0.0
  %1300 = vmatpush1.msra.mxu0 %v419
  %1301 = vmatprep.mubr.f32.mxu0 %v33
  %1302 = vmatmul.mubr.f32.gmra.mrb[0].mxu0 %v32
  %v1303 = vpop.f32.mrb[0].mxu0
  %v1304 = vadd.f32 %v1199, %v1303
  %v1305 = vpop.f32.mrb[0].mxu0
  %1306 = vmatprep.mubr.f32.mxu0 %v55
  %1307 = vmatmul.mubr.f32.gmra.mrb[0].mxu0 %v54
  %v1308 = vpop.f32.mrb[0].mxu0
  %v1309 = vadd.f32 %v1204, %v1308
  %v1310 = vpop.f32.mrb[0].mxu0
  %1311 = vmatprep.mubr.f32.mxu0 %v77
  %1312 = vmatmul.mubr.f32.gmra.mrb[0].mxu0 %v76
  %v1313 = vpop.f32.mrb[0].mxu0
  %v1314 = vadd.f32 %v1209, %v1313
  %v1315 = vpop.f32.mrb[0].mxu0
  %1316 = vmatprep.mubr.f32.mxu0 %v99
  %1317 = vmatmul.mubr.f32.gmra.mrb[0].mxu0 %v98
  %v1318 = vpop.f32.mrb[0].mxu0
  %v1319 = vadd.f32 %v1214, %v1318
  %v1320 = vpop.f32.mrb[0].mxu0
  %1321 = vmatprep.mubr.f32.mxu0 %v121
  %1322 = vmatmul.mubr.f32.gmra.mrb[0].mxu0 %v120
  %v1323 = vpop.f32.mrb[0].mxu0
  %v1324 = vadd.f32 %v1219, %v1323
  %v1325 = vpop.f32.mrb[0].mxu0
  %1326 = vmatprep.mubr.f32.mxu0 %v143
  %1327 = vmatmul.mubr.f32.gmra.mrb[0].mxu0 %v142
  %v1328 = vpop.f32.mrb[0].mxu0
  %v1329 = vadd.f32 %v1224, %v1328
  %v1330 = vpop.f32.mrb[0].mxu0
  %1331 = vmatprep.mubr.f32.mxu0 %v165
  %1332 = vmatmul.mubr.f32.gmra.mrb[0].mxu0 %v164
  %v1333 = vpop.f32.mrb[0].mxu0
  %v1334 = vadd.f32 %v1229, %v1333
  %v1335 = vpop.f32.mrb[0].mxu0
  %1336 = vmatprep.mubr.f32.mxu0 %v187
  %1337 = vmatmul.mubr.f32.gmra.mrb[0].mxu0 %v186
  %v1338 = vpop.f32.mrb[0].mxu0
  %v1339 = vadd.f32 %v1234, %v1338
  %v1340 = vpop.f32.mrb[0].mxu0
  %1341 = vdwg.mxu0
  %1342 = vmatprep.subr.mxu0 0.0
  %1343 = vmatpush1.msra.mxu0 %v420
  %1344 = vmatprep.subr.mxu0 0.0
  %1345 = vmatpush1.msra.mxu0 %v421
  %1346 = vmatprep.subr.mxu0 0.0
  %1347 = vmatpush1.msra.mxu0 %v422
  %1348 = vmatprep.subr.mxu0 0.0
  %1349 = vmatpush1.msra.mxu0 %v423
  %1350 = vmatprep.subr.mxu0 0.0
  %1351 = vmatpush1.msra.mxu0 %v424
  %1352 = vmatprep.subr.mxu0 0.0
  %1353 = vmatpush1.msra.mxu0 %v425
  %1354 = vmatprep.subr.mxu0 0.0
  %1355 = vmatpush1.msra.mxu0 %v426
  %1356 = vmatprep.subr.mxu0 0.0
  %1357 = vmatpush1.msra.mxu0 %v427
  %1358 = vmatprep.subr.mxu0 0.0
  %1359 = vmatpush1.msra.mxu0 %v428
  %1360 = vmatprep.subr.mxu0 0.0
  %1361 = vmatpush1.msra.mxu0 %v429
  %1362 = vmatprep.subr.mxu0 0.0
  %1363 = vmatpush1.msra.mxu0 %v430
  %1364 = vmatprep.subr.mxu0 0.0
  %1365 = vmatpush1.msra.mxu0 %v431
  %1366 = vmatprep.subr.mxu0 0.0
  %1367 = vmatpush1.msra.mxu0 %v432
  %1368 = vmatprep.subr.mxu0 0.0
  %1369 = vmatpush1.msra.mxu0 %v433
  %1370 = vmatprep.subr.mxu0 0.0
  %1371 = vmatpush1.msra.mxu0 %v434
  %1372 = vmatprep.subr.mxu0 0.0
  %1373 = vmatpush1.msra.mxu0 %v435
  %1374 = vmatprep.subr.mxu0 0.0
  %1375 = vmatpush1.msra.mxu0 %v436
  %1376 = vmatprep.subr.mxu0 0.0
  %1377 = vmatpush1.msra.mxu0 %v437
  %1378 = vmatprep.subr.mxu0 0.0
  %1379 = vmatpush1.msra.mxu0 %v438
  %1380 = vmatprep.subr.mxu0 0.0
  %1381 = vmatpush1.msra.mxu0 %v439
  %1382 = vmatprep.subr.mxu0 0.0
  %1383 = vmatpush1.msra.mxu0 %v440
  %1384 = vmatprep.subr.mxu0 0.0
  %1385 = vmatpush1.msra.mxu0 %v441
  %1386 = vmatprep.subr.mxu0 0.0
  %1387 = vmatpush1.msra.mxu0 %v442
  %1388 = vmatprep.subr.mxu0 0.0
  %1389 = vmatpush1.msra.mxu0 %v443
  %1390 = vmatprep.subr.mxu0 0.0
  %1391 = vmatpush1.msra.mxu0 %v444
  %1392 = vmatprep.subr.mxu0 0.0
  %1393 = vmatpush1.msra.mxu0 %v445
  %1394 = vmatprep.subr.mxu0 0.0
  %1395 = vmatpush1.msra.mxu0 %v446
  %1396 = vmatprep.subr.mxu0 0.0
  %1397 = vmatpush1.msra.mxu0 %v447
  %1398 = vmatprep.subr.mxu0 0.0
  %1399 = vmatpush1.msra.mxu0 %v448
  %1400 = vmatprep.subr.mxu0 0.0
  %1401 = vmatpush1.msra.mxu0 %v449
  %1402 = vmatprep.subr.mxu0 0.0
  %1403 = vmatpush1.msra.mxu0 %v450
  %1404 = vmatprep.subr.mxu0 0.0
  %1405 = vmatpush1.msra.mxu0 %v451
  %1406 = vmatprep.mubr.f32.mxu0 %v35
  %1407 = vmatmul.mubr.f32.gmra.mrb[0].mxu0 %v34
  %v1408 = vpop.f32.mrb[0].mxu0
  %v1409 = vadd.f32 %v1304, %v1408
  %v1410 = vpop.f32.mrb[0].mxu0
  %1411 = vmatprep.mubr.f32.mxu0 %v57
  %1412 = vmatmul.mubr.f32.gmra.mrb[0].mxu0 %v56
  %v1413 = vpop.f32.mrb[0].mxu0
  %v1414 = vadd.f32 %v1309, %v1413
  %v1415 = vpop.f32.mrb[0].mxu0
  %1416 = vmatprep.mubr.f32.mxu0 %v79
  %1417 = vmatmul.mubr.f32.gmra.mrb[0].mxu0 %v78
  %v1418 = vpop.f32.mrb[0].mxu0
  %v1419 = vadd.f32 %v1314, %v1418
  %v1420 = vpop.f32.mrb[0].mxu0
  %1421 = vmatprep.mubr.f32.mxu0 %v101
  %1422 = vmatmul.mubr.f32.gmra.mrb[0].mxu0 %v100
  %v1423 = vpop.f32.mrb[0].mxu0
  %v1424 = vadd.f32 %v1319, %v1423
  %v1425 = vpop.f32.mrb[0].mxu0
  %1426 = vmatprep.mubr.f32.mxu0 %v123
  %1427 = vmatmul.mubr.f32.gmra.mrb[0].mxu0 %v122
  %v1428 = vpop.f32.mrb[0].mxu0
  %v1429 = vadd.f32 %v1324, %v1428
  %v1430 = vpop.f32.mrb[0].mxu0
  %1431 = vmatprep.mubr.f32.mxu0 %v145
  %1432 = vmatmul.mubr.f32.gmra.mrb[0].mxu0 %v144
  %v1433 = vpop.f32.mrb[0].mxu0
  %v1434 = vadd.f32 %v1329, %v1433
  %v1435 = vpop.f32.mrb[0].mxu0
  %1436 = vmatprep.mubr.f32.mxu0 %v167
  %1437 = vmatmul.mubr.f32.gmra.mrb[0].mxu0 %v166
  %v1438 = vpop.f32.mrb[0].mxu0
  %v1439 = vadd.f32 %v1334, %v1438
  %v1440 = vpop.f32.mrb[0].mxu0
  %1441 = vmatprep.mubr.f32.mxu0 %v189
  %1442 = vmatmul.mubr.f32.gmra.mrb[0].mxu0 %v188
  %v1443 = vpop.f32.mrb[0].mxu0
  %v1444 = vadd.f32 %v1339, %v1443
  %v1445 = vpop.f32.mrb[0].mxu0
  %1446 = vdwg.mxu0
  %1447 = vmatprep.subr.mxu0 0.0
  %1448 = vmatpush1.msra.mxu0 %v452
  %1449 = vmatprep.subr.mxu0 0.0
  %1450 = vmatpush1.msra.mxu0 %v453
  %1451 = vmatprep.subr.mxu0 0.0
  %1452 = vmatpush1.msra.mxu0 %v454
  %1453 = vmatprep.subr.mxu0 0.0
  %1454 = vmatpush1.msra.mxu0 %v455
  %1455 = vmatprep.subr.mxu0 0.0
  %1456 = vmatpush1.msra.mxu0 %v456
  %1457 = vmatprep.subr.mxu0 0.0
  %1458 = vmatpush1.msra.mxu0 %v457
  %1459 = vmatprep.subr.mxu0 0.0
  %1460 = vmatpush1.msra.mxu0 %v458
  %1461 = vmatprep.subr.mxu0 0.0
  %1462 = vmatpush1.msra.mxu0 %v459
  %1463 = vmatprep.subr.mxu0 0.0
  %1464 = vmatpush1.msra.mxu0 %v460
  %1465 = vmatprep.subr.mxu0 0.0
  %1466 = vmatpush1.msra.mxu0 %v461
  %1467 = vmatprep.subr.mxu0 0.0
  %1468 = vmatpush1.msra.mxu0 %v462
  %1469 = vmatprep.subr.mxu0 0.0
  %1470 = vmatpush1.msra.mxu0 %v463
  %1471 = vmatprep.subr.mxu0 0.0
  %1472 = vmatpush1.msra.mxu0 %v464
  %1473 = vmatprep.subr.mxu0 0.0
  %1474 = vmatpush1.msra.mxu0 %v465
  %1475 = vmatprep.subr.mxu0 0.0
  %1476 = vmatpush1.msra.mxu0 %v466
  %1477 = vmatprep.subr.mxu0 0.0
  %1478 = vmatpush1.msra.mxu0 %v467
  %1479 = vmatprep.subr.mxu0 0.0
  %1480 = vmatpush1.msra.mxu0 %v468
  %1481 = vmatprep.subr.mxu0 0.0
  %1482 = vmatpush1.msra.mxu0 %v469
  %1483 = vmatprep.subr.mxu0 0.0
  %1484 = vmatpush1.msra.mxu0 %v470
  %1485 = vmatprep.subr.mxu0 0.0
  %1486 = vmatpush1.msra.mxu0 %v471
  %1487 = vmatprep.subr.mxu0 0.0
  %1488 = vmatpush1.msra.mxu0 %v472
  %1489 = vmatprep.subr.mxu0 0.0
  %1490 = vmatpush1.msra.mxu0 %v473
  %1491 = vmatprep.subr.mxu0 0.0
  %1492 = vmatpush1.msra.mxu0 %v474
  %1493 = vmatprep.subr.mxu0 0.0
  %1494 = vmatpush1.msra.mxu0 %v475
  %1495 = vmatprep.subr.mxu0 0.0
  %1496 = vmatpush1.msra.mxu0 %v476
  %1497 = vmatprep.subr.mxu0 0.0
  %1498 = vmatpush1.msra.mxu0 %v477
  %1499 = vmatprep.subr.mxu0 0.0
  %1500 = vmatpush1.msra.mxu0 %v478
  %1501 = vmatprep.subr.mxu0 0.0
  %1502 = vmatpush1.msra.mxu0 %v479
  %1503 = vmatprep.subr.mxu0 0.0
  %1504 = vmatpush1.msra.mxu0 %v480
  %1505 = vmatprep.subr.mxu0 0.0
  %1506 = vmatpush1.msra.mxu0 %v481
  %1507 = vmatprep.subr.mxu0 0.0
  %1508 = vmatpush1.msra.mxu0 %v482
  %1509 = vmatprep.subr.mxu0 0.0
  %1510 = vmatpush1.msra.mxu0 %v483
  %1511 = vmatprep.mubr.f32.mxu0 %v37
  %1512 = vmatmul.mubr.f32.gmra.mrb[0].mxu0 %v36
  %v1513 = vpop.f32.mrb[0].mxu0
  %v1514 = vadd.f32 %v1409, %v1513
  %v1515 = vpop.f32.mrb[0].mxu0
  %1516 = vmatprep.mubr.f32.mxu0 %v59
  %1517 = vmatmul.mubr.f32.gmra.mrb[0].mxu0 %v58
  %v1518 = vpop.f32.mrb[0].mxu0
  %v1519 = vadd.f32 %v1414, %v1518
  %v1520 = vpop.f32.mrb[0].mxu0
  %1521 = vmatprep.mubr.f32.mxu0 %v81
  %1522 = vmatmul.mubr.f32.gmra.mrb[0].mxu0 %v80
  %v1523 = vpop.f32.mrb[0].mxu0
  %v1524 = vadd.f32 %v1419, %v1523
  %v1525 = vpop.f32.mrb[0].mxu0
  %1526 = vmatprep.mubr.f32.mxu0 %v103
  %1527 = vmatmul.mubr.f32.gmra.mrb[0].mxu0 %v102
  %v1528 = vpop.f32.mrb[0].mxu0
  %v1529 = vadd.f32 %v1424, %v1528
  %v1530 = vpop.f32.mrb[0].mxu0
  %1531 = vmatprep.mubr.f32.mxu0 %v125
  %1532 = vmatmul.mubr.f32.gmra.mrb[0].mxu0 %v124
  %v1533 = vpop.f32.mrb[0].mxu0
  %v1534 = vadd.f32 %v1429, %v1533
  %v1535 = vpop.f32.mrb[0].mxu0
  %1536 = vmatprep.mubr.f32.mxu0 %v147
  %1537 = vmatmul.mubr.f32.gmra.mrb[0].mxu0 %v146
  %v1538 = vpop.f32.mrb[0].mxu0
  %v1539 = vadd.f32 %v1434, %v1538
  %v1540 = vpop.f32.mrb[0].mxu0
  %1541 = vmatprep.mubr.f32.mxu0 %v169
  %1542 = vmatmul.mubr.f32.gmra.mrb[0].mxu0 %v168
  %v1543 = vpop.f32.mrb[0].mxu0
  %v1544 = vadd.f32 %v1439, %v1543
  %v1545 = vpop.f32.mrb[0].mxu0
  %1546 = vmatprep.mubr.f32.mxu0 %v191
  %1547 = vmatmul.mubr.f32.gmra.mrb[0].mxu0 %v190
  %v1548 = vpop.f32.mrb[0].mxu0
  %v1549 = vadd.f32 %v1444, %v1548
  %v1550 = vpop.f32.mrb[0].mxu0
  %1551 = vdwg.mxu0
  %1552 = vmatprep.subr.mxu0 0.0
  %1553 = vmatpush1.msra.mxu0 %v484
  %1554 = vmatprep.subr.mxu0 0.0
  %1555 = vmatpush1.msra.mxu0 %v485
  %1556 = vmatprep.subr.mxu0 0.0
  %1557 = vmatpush1.msra.mxu0 %v486
  %1558 = vmatprep.subr.mxu0 0.0
  %1559 = vmatpush1.msra.mxu0 %v487
  %1560 = vmatprep.subr.mxu0 0.0
  %1561 = vmatpush1.msra.mxu0 %v488
  %1562 = vmatprep.subr.mxu0 0.0
  %1563 = vmatpush1.msra.mxu0 %v489
  %1564 = vmatprep.subr.mxu0 0.0
  %1565 = vmatpush1.msra.mxu0 %v490
  %1566 = vmatprep.subr.mxu0 0.0
  %1567 = vmatpush1.msra.mxu0 %v491
  %1568 = vmatprep.subr.mxu0 0.0
  %1569 = vmatpush1.msra.mxu0 %v492
  %1570 = vmatprep.subr.mxu0 0.0
  %1571 = vmatpush1.msra.mxu0 %v493
  %1572 = vmatprep.subr.mxu0 0.0
  %1573 = vmatpush1.msra.mxu0 %v494
  %1574 = vmatprep.subr.mxu0 0.0
  %1575 = vmatpush1.msra.mxu0 %v495
  %1576 = vmatprep.subr.mxu0 0.0
  %1577 = vmatpush1.msra.mxu0 %v496
  %1578 = vmatprep.subr.mxu0 0.0
  %1579 = vmatpush1.msra.mxu0 %v497
  %1580 = vmatprep.subr.mxu0 0.0
  %1581 = vmatpush1.msra.mxu0 %v498
  %1582 = vmatprep.subr.mxu0 0.0
  %1583 = vmatpush1.msra.mxu0 %v499
  %1584 = vmatprep.subr.mxu0 0.0
  %1585 = vmatpush1.msra.mxu0 %v500
  %1586 = vmatprep.subr.mxu0 0.0
  %1587 = vmatpush1.msra.mxu0 %v501
  %1588 = vmatprep.subr.mxu0 0.0
  %1589 = vmatpush1.msra.mxu0 %v502
  %1590 = vmatprep.subr.mxu0 0.0
  %1591 = vmatpush1.msra.mxu0 %v503
  %1592 = vmatprep.subr.mxu0 0.0
  %1593 = vmatpush1.msra.mxu0 %v504
  %1594 = vmatprep.subr.mxu0 0.0
  %1595 = vmatpush1.msra.mxu0 %v505
  %1596 = vmatprep.subr.mxu0 0.0
  %1597 = vmatpush1.msra.mxu0 %v506
  %1598 = vmatprep.subr.mxu0 0.0
  %1599 = vmatpush1.msra.mxu0 %v507
  %1600 = vmatprep.subr.mxu0 0.0
  %1601 = vmatpush1.msra.mxu0 %v508
  %1602 = vmatprep.subr.mxu0 0.0
  %1603 = vmatpush1.msra.mxu0 %v509
  %1604 = vmatprep.subr.mxu0 0.0
  %1605 = vmatpush1.msra.mxu0 %v510
  %1606 = vmatprep.subr.mxu0 0.0
  %1607 = vmatpush1.msra.mxu0 %v511
  %1608 = vmatprep.subr.mxu0 0.0
  %1609 = vmatpush1.msra.mxu0 %v512
  %1610 = vmatprep.subr.mxu0 0.0
  %1611 = vmatpush1.msra.mxu0 %v513
  %1612 = vmatprep.subr.mxu0 0.0
  %1613 = vmatpush1.msra.mxu0 %v514
  %1614 = vmatprep.subr.mxu0 0.0
  %1615 = vmatpush1.msra.mxu0 %v515
  %1616 = vmatprep.mubr.f32.mxu0 %v39
  %1617 = vmatmul.mubr.f32.gmra.mrb[0].mxu0 %v38
  %v1618 = vpop.f32.mrb[0].mxu0
  %v1619 = vadd.f32 %v1514, %v1618
  %v1620 = vpop.f32.mrb[0].mxu0
  %1621 = vmatprep.mubr.f32.mxu0 %v61
  %1622 = vmatmul.mubr.f32.gmra.mrb[0].mxu0 %v60
  %v1623 = vpop.f32.mrb[0].mxu0
  %v1624 = vadd.f32 %v1519, %v1623
  %v1625 = vpop.f32.mrb[0].mxu0
  %1626 = vmatprep.mubr.f32.mxu0 %v83
  %1627 = vmatmul.mubr.f32.gmra.mrb[0].mxu0 %v82
  %v1628 = vpop.f32.mrb[0].mxu0
  %v1629 = vadd.f32 %v1524, %v1628
  %v1630 = vpop.f32.mrb[0].mxu0
  %1631 = vmatprep.mubr.f32.mxu0 %v105
  %1632 = vmatmul.mubr.f32.gmra.mrb[0].mxu0 %v104
  %v1633 = vpop.f32.mrb[0].mxu0
  %v1634 = vadd.f32 %v1529, %v1633
  %v1635 = vpop.f32.mrb[0].mxu0
  %1636 = vmatprep.mubr.f32.mxu0 %v127
  %1637 = vmatmul.mubr.f32.gmra.mrb[0].mxu0 %v126
  %v1638 = vpop.f32.mrb[0].mxu0
  %v1639 = vadd.f32 %v1534, %v1638
  %v1640 = vpop.f32.mrb[0].mxu0
  %1641 = vmatprep.mubr.f32.mxu0 %v149
  %1642 = vmatmul.mubr.f32.gmra.mrb[0].mxu0 %v148
  %v1643 = vpop.f32.mrb[0].mxu0
  %v1644 = vadd.f32 %v1539, %v1643
  %v1645 = vpop.f32.mrb[0].mxu0
  %1646 = vmatprep.mubr.f32.mxu0 %v171
  %1647 = vmatmul.mubr.f32.gmra.mrb[0].mxu0 %v170
  %v1648 = vpop.f32.mrb[0].mxu0
  %v1649 = vadd.f32 %v1544, %v1648
  %v1650 = vpop.f32.mrb[0].mxu0
  %1651 = vmatprep.mubr.f32.mxu0 %v193
  %1652 = vmatmul.mubr.f32.gmra.mrb[0].mxu0 %v192
  %v1653 = vpop.f32.mrb[0].mxu0
  %v1654 = vadd.f32 %v1549, %v1653
  %v1655 = vpop.f32.mrb[0].mxu0
  %1656 = vdwg.mxu0
  %1657 = vmatprep.subr.mxu0 0.0
  %1658 = vmatpush1.msra.mxu0 %v516
  %1659 = vmatprep.subr.mxu0 0.0
  %1660 = vmatpush1.msra.mxu0 %v517
  %1661 = vmatprep.subr.mxu0 0.0
  %1662 = vmatpush1.msra.mxu0 %v518
  %1663 = vmatprep.subr.mxu0 0.0
  %1664 = vmatpush1.msra.mxu0 %v519
  %1665 = vmatprep.subr.mxu0 0.0
  %1666 = vmatpush1.msra.mxu0 %v520
  %1667 = vmatprep.subr.mxu0 0.0
  %1668 = vmatpush1.msra.mxu0 %v521
  %1669 = vmatprep.subr.mxu0 0.0
  %1670 = vmatpush1.msra.mxu0 %v522
  %1671 = vmatprep.subr.mxu0 0.0
  %1672 = vmatpush1.msra.mxu0 %v523
  %1673 = vmatprep.subr.mxu0 0.0
  %1674 = vmatpush1.msra.mxu0 %v524
  %1675 = vmatprep.subr.mxu0 0.0
  %1676 = vmatpush1.msra.mxu0 %v525
  %1677 = vmatprep.subr.mxu0 0.0
  %1678 = vmatpush1.msra.mxu0 %v526
  %1679 = vmatprep.subr.mxu0 0.0
  %1680 = vmatpush1.msra.mxu0 %v527
  %1681 = vmatprep.subr.mxu0 0.0
  %1682 = vmatpush1.msra.mxu0 %v528
  %1683 = vmatprep.subr.mxu0 0.0
  %1684 = vmatpush1.msra.mxu0 %v529
  %1685 = vmatprep.subr.mxu0 0.0
  %1686 = vmatpush1.msra.mxu0 %v530
  %1687 = vmatprep.subr.mxu0 0.0
  %1688 = vmatpush1.msra.mxu0 %v531
  %1689 = vmatprep.subr.mxu0 0.0
  %1690 = vmatpush1.msra.mxu0 %v532
  %1691 = vmatprep.subr.mxu0 0.0
  %1692 = vmatpush1.msra.mxu0 %v533
  %1693 = vmatprep.subr.mxu0 0.0
  %1694 = vmatpush1.msra.mxu0 0.0
  %1695 = vmatprep.subr.mxu0 0.0
  %1696 = vmatpush1.msra.mxu0 0.0
  %1697 = vmatprep.subr.mxu0 0.0
  %1698 = vmatpush1.msra.mxu0 0.0
  %1699 = vmatprep.subr.mxu0 0.0
  %1700 = vmatpush1.msra.mxu0 0.0
  %1701 = vmatprep.subr.mxu0 0.0
  %1702 = vmatpush1.msra.mxu0 0.0
  %1703 = vmatprep.subr.mxu0 0.0
  %1704 = vmatpush1.msra.mxu0 0.0
  %1705 = vmatprep.subr.mxu0 0.0
  %1706 = vmatpush1.msra.mxu0 0.0
  %1707 = vmatprep.subr.mxu0 0.0
  %1708 = vmatpush1.msra.mxu0 0.0
  %1709 = vmatprep.subr.mxu0 0.0
  %1710 = vmatpush1.msra.mxu0 0.0
  %1711 = vmatprep.subr.mxu0 0.0
  %1712 = vmatpush1.msra.mxu0 0.0
  %1713 = vmatprep.subr.mxu0 0.0
  %1714 = vmatpush1.msra.mxu0 0.0
  %1715 = vmatprep.subr.mxu0 0.0
  %1716 = vmatpush1.msra.mxu0 0.0
  %1717 = vmatprep.subr.mxu0 0.0
  %1718 = vmatpush1.msra.mxu0 0.0
  %1719 = vmatprep.subr.mxu0 0.0
  %1720 = vmatpush1.msra.mxu0 0.0
  %1721 = vmatprep.mubr.f32.mxu0 %v584
  %1722 = vmatmul.mubr.f32.gmra.mrb[0].mxu0 %v40
  %v1723 = vpop.f32.mrb[0].mxu0
  %v1724 = vadd.f32 %v1619, %v1723
  %v1725 = vpop.f32.mrb[0].mxu0
  %1726 = vmatprep.mubr.f32.mxu0 %v587
  %1727 = vmatmul.mubr.f32.gmra.mrb[0].mxu0 %v62
  %v1728 = vpop.f32.mrb[0].mxu0
  %v1729 = vadd.f32 %v1624, %v1728
  %v1730 = vpop.f32.mrb[0].mxu0
  %1731 = vmatprep.mubr.f32.mxu0 %v590
  %1732 = vmatmul.mubr.f32.gmra.mrb[0].mxu0 %v84
  %v1733 = vpop.f32.mrb[0].mxu0
  %v1734 = vadd.f32 %v1629, %v1733
  %v1735 = vpop.f32.mrb[0].mxu0
  %1736 = vmatprep.mubr.f32.mxu0 %v593
  %1737 = vmatmul.mubr.f32.gmra.mrb[0].mxu0 %v106
  %v1738 = vpop.f32.mrb[0].mxu0
  %v1739 = vadd.f32 %v1634, %v1738
  %v1740 = vpop.f32.mrb[0].mxu0
  %1741 = vmatprep.mubr.f32.mxu0 %v596
  %1742 = vmatmul.mubr.f32.gmra.mrb[0].mxu0 %v128
  %v1743 = vpop.f32.mrb[0].mxu0
  %v1744 = vadd.f32 %v1639, %v1743
  %v1745 = vpop.f32.mrb[0].mxu0
  %1746 = vmatprep.mubr.f32.mxu0 %v599
  %1747 = vmatmul.mubr.f32.gmra.mrb[0].mxu0 %v150
  %v1748 = vpop.f32.mrb[0].mxu0
  %v1749 = vadd.f32 %v1644, %v1748
  %v1750 = vpop.f32.mrb[0].mxu0
  %1751 = vmatprep.mubr.f32.mxu0 %v602
  %1752 = vmatmul.mubr.f32.gmra.mrb[0].mxu0 %v172
  %v1753 = vpop.f32.mrb[0].mxu0
  %v1754 = vadd.f32 %v1649, %v1753
  %v1755 = vpop.f32.mrb[0].mxu0
  %1756 = vmatprep.mubr.f32.mxu0 %v605
  %1757 = vmatmul.mubr.f32.gmra.mrb[0].mxu0 %v194
  %v1758 = vpop.f32.mrb[0].mxu0
  %v1759 = vadd.f32 %v1654, %v1758
  %v1760 = vpop.f32.mrb[0].mxu0
  %1761 = vdwg.mxu0
  %v1762 = vmax.f32 %v1724, 0.0
  %v1763 = vmax.f32 %v1729, 0.0
  %v1764 = vmax.f32 %v1734, 0.0
  %v1765 = vmax.f32 %v1739, 0.0
  %v1766 = vmax.f32 %v1744, 0.0
  %v1767 = vmax.f32 %v1749, 0.0
  %v1768 = vmax.f32 %v1754, 0.0
  %v1769 = vmax.f32 %v1759, 0.0
  %v1770 = vld [vmem:[%s3] sm:$0xff]
  %v1771 = vld [vmem:[%s3 + $0x8] sm:$0xff]
  %v1772 = vld [vmem:[%s4] sm:$0xff]
  %v1773 = vld [vmem:[%s4 + $0x8] sm:$0xff]
  %1775 = vset.pattern.permute.xlu0 0
  %1776 = vperm.xlu0 %1775, %v1772
  %v1777 = vpop.permute.xlu0 %1776
  %1780 = vset.pattern.permute.xlu0 0
  %1781 = vperm.xlu0 %1780, %v1773
  %v1782 = vpop.permute.xlu0 %1781
  %vm1784 = vcmask 523264
  %v1786 = vsel %vm1784, %v1770, 0
  %v1789 = vsel %vm1784, %v1771, 0
  %1791 = vmatprep.subr.mxu0 0.0
  %1792 = vmatpush1.msra.mxu0 %v1762
  %1793 = vmatprep.subr.mxu0 0.0
  %1794 = vmatpush1.msra.mxu0 %v1763
  %1795 = vmatprep.subr.mxu0 0.0
  %1796 = vmatpush1.msra.mxu0 %v1764
  %1797 = vmatprep.subr.mxu0 0.0
  %1798 = vmatpush1.msra.mxu0 %v1765
  %1799 = vmatprep.subr.mxu0 0.0
  %1800 = vmatpush1.msra.mxu0 %v1766
  %1801 = vmatprep.subr.mxu0 0.0
  %1802 = vmatpush1.msra.mxu0 %v1767
  %1803 = vmatprep.subr.mxu0 0.0
  %1804 = vmatpush1.msra.mxu0 %v1768
  %1805 = vmatprep.subr.mxu0 0.0
  %1806 = vmatpush1.msra.mxu0 %v1769
  %1807 = vmatprep.subr.mxu0 0.0
  %1808 = vmatpush1.msra.mxu0 0.0
  %1809 = vmatprep.subr.mxu0 0.0
  %1810 = vmatpush1.msra.mxu0 0.0
  %1811 = vmatprep.subr.mxu0 0.0
  %1812 = vmatpush1.msra.mxu0 0.0
  %1813 = vmatprep.subr.mxu0 0.0
  %1814 = vmatpush1.msra.mxu0 0.0
  %1815 = vmatprep.subr.mxu0 0.0
  %1816 = vmatpush1.msra.mxu0 0.0
  %1817 = vmatprep.subr.mxu0 0.0
  %1818 = vmatpush1.msra.mxu0 0.0
  %1819 = vmatprep.subr.mxu0 0.0
  %1820 = vmatpush1.msra.mxu0 0.0
  %1821 = vmatprep.subr.mxu0 0.0
  %1822 = vmatpush1.msra.mxu0 0.0
  %1823 = vmatprep.subr.mxu0 0.0
  %1824 = vmatpush1.msra.mxu0 0.0
  %1825 = vmatprep.subr.mxu0 0.0
  %1826 = vmatpush1.msra.mxu0 0.0
  %1827 = vmatprep.subr.mxu0 0.0
  %1828 = vmatpush1.msra.mxu0 0.0
  %1829 = vmatprep.subr.mxu0 0.0
  %1830 = vmatpush1.msra.mxu0 0.0
  %1831 = vmatprep.subr.mxu0 0.0
  %1832 = vmatpush1.msra.mxu0 0.0
  %1833 = vmatprep.subr.mxu0 0.0
  %1834 = vmatpush1.msra.mxu0 0.0
  %1835 = vmatprep.subr.mxu0 0.0
  %1836 = vmatpush1.msra.mxu0 0.0
  %1837 = vmatprep.subr.mxu0 0.0
  %1838 = vmatpush1.msra.mxu0 0.0
  %1839 = vmatprep.subr.mxu0 0.0
  %1840 = vmatpush1.msra.mxu0 0.0
  %1841 = vmatprep.subr.mxu0 0.0
  %1842 = vmatpush1.msra.mxu0 0.0
  %1843 = vmatprep.subr.mxu0 0.0
  %1844 = vmatpush1.msra.mxu0 0.0
  %1845 = vmatprep.subr.mxu0 0.0
  %1846 = vmatpush1.msra.mxu0 0.0
  %1847 = vmatprep.subr.mxu0 0.0
  %1848 = vmatpush1.msra.mxu0 0.0
  %1849 = vmatprep.subr.mxu0 0.0
  %1850 = vmatpush1.msra.mxu0 0.0
  %1851 = vmatprep.subr.mxu0 0.0
  %1852 = vmatpush1.msra.mxu0 0.0
  %1853 = vmatprep.subr.mxu0 0.0
  %1854 = vmatpush1.msra.mxu0 0.0
  %1855 = vmatprep.mubr.f32.mxu0 0.0
  %1856 = vmatmul.mubr.f32.gmra.mrb[0].mxu0 %v1786
  %v1857 = vpop.f32.mrb[0].mxu0
  %v1858 = vadd.f32 %v1777, %v1857
  %v1859 = vpop.f32.mrb[0].mxu0
  %1860 = vmatprep.mubr.f32.mxu0 0.0
  %1861 = vmatmul.mubr.f32.gmra.mrb[0].mxu0 %v1789
  %v1862 = vpop.f32.mrb[0].mxu0
  %v1863 = vadd.f32 %v1782, %v1862
  %v1864 = vpop.f32.mrb[0].mxu0
  %1865 = vdwg.mxu0
  %vm1866 = vcmask 64512
  %1867 = vst.msk [vmem:[%s5] sm:$0xff] %vm1866, %v1858
  %1868 = vst.msk [vmem:[%s5 + $0x8] sm:$0xff] %vm1866, %v1863
  // Predicated region
  $region22: #{cnn_forward.3} parent=0 // pred_check
    _
  $region23: #{cnn_forward.3} parent=0 // pred_check_branch
    %1870 = sbr.rel (0) target = $region25
  $region24: #{cnn_forward.3} parent=0 // pred_region
    _
  $region25: #{cnn_forward.3} parent=0 // pred_fallthru
    _
  // Predicated region
  $region26: #{cnn_forward.3} parent=0 // pred_check
    _
  $region27: #{cnn_forward.3} parent=0 // pred_check_branch
    %1872 = sbr.rel (0) target = $region29
  $region28: #{cnn_forward.3} parent=0 // pred_region
    _
  $region29: #{cnn_forward.3} parent=0 // pred_fallthru
    _

</llo_original>
